<compile_context>
chip_gen: v7x
topology: tpu7x:2x2x1
jax: 0.10.0
libtpu: 0.0.40
codegen_flags: <defaults>
</compile_context>

<pallas_src>
import jax
import jax.numpy as jnp
from jax.experimental import pallas as pl
from jax.experimental.pallas import tpu as pltpu


NUM_BRANCHES = 4


# -----------------------------------------------------------------------------
# Fused head kernel (one batch tile per grid step):
#   per-branch: sum/max pool -> fc1 (BN2 pre-folded) -> ReLU   (batched, M=4*TB)
#   then:       ftrs tile = branch column slabs of h (lane-dense stores)
#               out  tile = sum_br h_br @ fc_w[br]  (BN1 pre-folded, dropout=id)
# -----------------------------------------------------------------------------
def fused_head_kernel(x_ref, w_avg_ref, w_max_ref, b1_ref, wfc_ref, bfc_ref,
                      ftrs_ref, out_ref):
    # x_ref: (4, TB, HW, C) bf16, C on the lane axis -> pooling = sublane reduce.
    x = x_ref[...]
    sum_pool = jnp.sum(x, axis=-2, dtype=jnp.float32)   # (4, TB, C) f32 accumulate
    max_pool = jnp.max(x, axis=-2)                       # (4, TB, C) bf16

    nb, tb, c = sum_pool.shape
    # BN2 and 1/HW are folded into w_avg / w_max / b1 in the wrapper, so the
    # pooled results feed the MXU directly (bf16 operands, f32 accumulation).
    lhs_avg = sum_pool.reshape(nb * tb, c).astype(jnp.bfloat16)
    lhs_max = max_pool.reshape(nb * tb, c)

    h = (jnp.dot(lhs_avg, w_avg_ref[...], preferred_element_type=jnp.float32)
         + jnp.dot(lhs_max, w_max_ref[...], preferred_element_type=jnp.float32)
         + b1_ref[...])
    h = jnp.maximum(h, 0.0)                              # (4*TB, C2) f32, pre-BN1

    c2 = h.shape[-1]
    h_bf = h.astype(jnp.bfloat16)

    # torch.cat((ftrs1..ftrs4), 1): each branch's rows of h become its
    # 128-aligned column slab of ftrs.  The final fc (with BN1 folded into
    # wfc/bfc) is accumulated branch-by-branch so we never read ftrs back.
    acc = bfc_ref[...]                                   # (1, nc_pad) f32
    for br in range(nb):                                 # static unroll (nb = 4)
        h_br = h[br * tb:(br + 1) * tb, :]
        ftrs_ref[:, br * c2:(br + 1) * c2] = h_br
        acc = acc + jnp.dot(h_bf[br * tb:(br + 1) * tb, :],
                            wfc_ref[br * c2:(br + 1) * c2, :],
                            preferred_element_type=jnp.float32)
    out_ref[...] = acc                                   # Dropout = identity (eval)


def network_cuong_forward(fms_nhwc, params, tb=8):
    """fms_nhwc: (4, B, H, W, C) channels-last backbone feature maps of x1..x4."""
    nb, B, H, W, C = fms_nhwc.shape
    assert nb == NUM_BRANCHES
    HW = H * W
    fc1_w = params["fc1_w"]                       # (2C, C2) f32
    C2 = fc1_w.shape[1]
    num_ftrs = nb * C2                            # == 2*C for this module
    num_classes = params["fc_w"].shape[1]
    nc_pad = ((num_classes + 127) // 128) * 128   # lane-dense output width
    assert C2 % 128 == 0, "fc1 output width must be a multiple of 128"

    # Pad batch to a multiple of the tile (keeps stores sublane-aligned).
    tb = min(tb, B)
    B_pad = ((B + tb - 1) // tb) * tb

    # Channels-last reshape is free; bf16 halves input DMA.  Ideally the
    # backbone emits bf16 NHWC directly so even this cast disappears.
    x = fms_nhwc.reshape(nb, B, HW, C).astype(jnp.bfloat16)
    if B_pad != B:
        x = jnp.pad(x, ((0, 0), (0, B_pad - B), (0, 0), (0, 0)))

    # --- Fold BN2 (eval affine) + 1/HW of the mean into the fc1 halves. ---
    bn2_scale = params["bn2_scale"].reshape(-1)
    bn2_shift = params["bn2_shift"].reshape(-1)
    w_avg_f32 = fc1_w[:C]
    w_max_f32 = fc1_w[C:]
    w_avg = ((bn2_scale[:C] / HW)[:, None] * w_avg_f32).astype(jnp.bfloat16)
    w_max = (bn2_scale[C:][:, None] * w_max_f32).astype(jnp.bfloat16)
    b1 = (params["fc1_b"].reshape(1, C2)
          + bn2_shift[:C] @ w_avg_f32
          + bn2_shift[C:] @ w_max_f32).astype(jnp.float32)

    # --- Fold BN1 (eval affine) into the final fc weight/bias. ---
    bn1_s = params["bn1_scale"].reshape(-1)
    bn1_t = params["bn1_shift"].reshape(-1)
    fc_w = params["fc_w"]
    fc_b = params["fc_b"].reshape(-1)
    wfc = jnp.pad(bn1_s[:, None] * fc_w,
                  ((0, 0), (0, nc_pad - num_classes))).astype(jnp.bfloat16)
    bfc = jnp.pad((fc_b + bn1_t @ fc_w).reshape(1, -1),
                  ((0, 0), (0, nc_pad - num_classes))).astype(jnp.float32)

    # VMEM budget: double-buffered x tile + resident weights + output tiles,
    # with margin for in-kernel f32 temporaries.  Clamp to v7x's 64 MiB.
    x_block = nb * tb * HW * C * 2
    weights = (2 * C * C2 + num_ftrs * nc_pad) * 2 + (C2 + nc_pad) * 4
    outs = tb * (num_ftrs + nc_pad) * 4
    vmem_bytes = 6 * x_block + 2 * weights + 2 * outs + (2 << 20)
    vmem_bytes = int(min(64 * 1024 * 1024, max(vmem_bytes, 16 * 1024 * 1024)))

    grid = (B_pad // tb,)
    ftrs, out_pad = pl.pallas_call(
        fused_head_kernel,
        grid=grid,
        in_specs=[
            pl.BlockSpec((nb, tb, HW, C), lambda i: (0, i, 0, 0)),   # x tile
            pl.BlockSpec((C, C2), lambda i: (0, 0)),                 # w_avg (resident)
            pl.BlockSpec((C, C2), lambda i: (0, 0)),                 # w_max (resident)
            pl.BlockSpec((1, C2), lambda i: (0, 0)),                 # b1
            pl.BlockSpec((num_ftrs, nc_pad), lambda i: (0, 0)),      # wfc (resident)
            pl.BlockSpec((1, nc_pad), lambda i: (0, 0)),             # bfc
        ],
        out_specs=(
            pl.BlockSpec((tb, num_ftrs), lambda i: (i, 0)),
            pl.BlockSpec((tb, nc_pad), lambda i: (i, 0)),
        ),
        out_shape=(
            jax.ShapeDtypeStruct((B_pad, num_ftrs), jnp.float32),
            jax.ShapeDtypeStruct((B_pad, nc_pad), jnp.float32),
        ),
        compiler_params=pltpu.CompilerParams(
            dimension_semantics=("parallel",),        # 2 TCs on v7x; no-op v5e/v6e
            vmem_limit_bytes=vmem_bytes),
    )(x, w_avg, w_max, b1, wfc, bfc)

    out = out_pad[:B, :num_classes]
    return out, ftrs[:B]


def reference_forward(fms_nhwc, params):
    """Pure-JAX f32 reference (mirrors the PyTorch forward in eval mode)."""
    f = fms_nhwc.astype(jnp.float32)
    avg = f.mean(axis=(2, 3))                            # (4, B, C)
    mx = f.max(axis=(2, 3))                              # (4, B, C)
    feat = jnp.concatenate([avg, mx], axis=-1)           # (4, B, 2C)
    bn = feat * params["bn2_scale"] + params["bn2_shift"]
    h = jax.nn.relu(bn @ params["fc1_w"] + params["fc1_b"])    # (4, B, C2)
    ftrs = jnp.concatenate([h[0], h[1], h[2], h[3]], axis=-1)  # (B, 4*C2)
    x = ftrs * params["bn1_scale"] + params["bn1_shift"]
    out = x @ params["fc_w"] + params["fc_b"]
    return out, ftrs


if __name__ == "__main__":
    # Small synthetic shapes (stand-ins for resnet50's 2048-ch, 7x7 maps).
    B, C, H, W = 16, 256, 8, 8
    num_ftrs = 2 * C          # 512   (torch: 2048 * 2 = 4096)
    C2 = num_ftrs // 4        # 128   (fc1 output width)
    num_classes = 10

    key = jax.random.PRNGKey(0)
    keys = jax.random.split(key, 12)

    # Backbone feature maps for the four inputs x1..x4, channels-last.
    fms = jax.random.normal(keys[0], (NUM_BRANCHES, B, H, W, C), jnp.float32)

    eps = 1e-5
    # BN2: BatchNorm1d(num_ftrs) applied to the pooled 2C features (eval stats).
    bn2_gamma = 1.0 + 0.1 * jax.random.normal(keys[4], (num_ftrs,), jnp.float32)
    bn2_beta = 0.1 * jax.random.normal(keys[5], (num_ftrs,), jnp.float32)
    bn2_mean = 0.05 * jax.random.normal(keys[6], (num_ftrs,), jnp.float32)
    bn2_var = jnp.abs(1.0 + 0.1 * jax.random.normal(keys[7], (num_ftrs,), jnp.float32))
    bn2_scale = (bn2_gamma / jnp.sqrt(bn2_var + eps)).reshape(1, num_ftrs)
    bn2_shift = (bn2_beta - bn2_mean * bn2_scale[0]).reshape(1, num_ftrs)

    # BN1: BatchNorm1d(num_ftrs) applied to the concatenated fc1 outputs.
    bn1_gamma = 1.0 + 0.1 * jax.random.normal(keys[8], (num_ftrs,), jnp.float32)
    bn1_beta = 0.1 * jax.random.normal(keys[9], (num_ftrs,), jnp.float32)
    bn1_mean = jnp.zeros((num_ftrs,), jnp.float32)
    bn1_var = jnp.ones((num_ftrs,), jnp.float32)
    bn1_scale = (bn1_gamma / jnp.sqrt(bn1_var + eps)).reshape(1, num_ftrs)
    bn1_shift = (bn1_beta - bn1_mean * bn1_scale[0]).reshape(1, num_ftrs)

    # fc1: Linear(num_ftrs, num_ftrs // 4); fc: Linear(num_ftrs, num_classes).
    fc1_w = 0.05 * jax.random.normal(keys[10], (num_ftrs, C2), jnp.float32)
    fc1_b = jnp.zeros((1, C2), jnp.float32)
    fc_w = 0.05 * jax.random.normal(keys[11], (num_ftrs, num_classes), jnp.float32)
    fc_b = jnp.zeros((1, num_classes), jnp.float32)

    params = dict(
        bn2_scale=bn2_scale, bn2_shift=bn2_shift,
        bn1_scale=bn1_scale, bn1_shift=bn1_shift,
        fc1_w=fc1_w, fc1_b=fc1_b, fc_w=fc_w, fc_b=fc_b,
    )

    out, ftrs = jax.jit(network_cuong_forward)(fms, params)
    jax.block_until_ready((out, ftrs))

    out_ref, ftrs_ref = reference_forward(fms, params)
    assert out.shape == (B, num_classes) and ftrs.shape == (B, num_ftrs)
    # bf16 activations AND bf16 (BN-folded) weights vs. the pure-f32 reference:
    # atol covers near-zero ReLU outputs, rtol the O(1) magnitudes.
    assert jnp.allclose(ftrs, ftrs_ref, atol=5e-2, rtol=2e-2)
    assert jnp.allclose(out, out_ref, atol=5e-2, rtol=2e-2)

    print("KERNEL_OK")
</pallas_src>

<mosaic_0001>
module attributes {stable_mosaic.version = 11 : i64} {
  func.func @fused_head_kernel(%arg0: i32, %arg1: memref<4x8x64x256xbf16, #tpu.memory_space<vmem>>, %arg2: memref<256x128xbf16, #tpu.memory_space<vmem>>, %arg3: memref<256x128xbf16, #tpu.memory_space<vmem>>, %arg4: memref<1x128xf32, #tpu.memory_space<vmem>>, %arg5: memref<512x128xbf16, #tpu.memory_space<vmem>>, %arg6: memref<1x128xf32, #tpu.memory_space<vmem>>, %arg7: memref<8x512xf32, #tpu.memory_space<vmem>>, %arg8: memref<8x128xf32, #tpu.memory_space<vmem>>) attributes {dimension_semantics = [#tpu.dimension_semantics<parallel>], iteration_bounds = array<i64: 2>, scalar_prefetch = 0 : i64, scratch_operands = 0 : i64, tpu.core_type = #tpu.core_type<tc>, window_params = [{transform_indices = @transform_0, window_bounds = array<i64: 4, 8, 64, 256>}, {pipeline_mode = #tpu.pipeline_mode<synchronous>, transform_indices = @transform_1, window_bounds = array<i64: 256, 128>}, {pipeline_mode = #tpu.pipeline_mode<synchronous>, transform_indices = @transform_2, window_bounds = array<i64: 256, 128>}, {pipeline_mode = #tpu.pipeline_mode<synchronous>, transform_indices = @transform_3, window_bounds = array<i64: 1, 128>}, {pipeline_mode = #tpu.pipeline_mode<synchronous>, transform_indices = @transform_4, window_bounds = array<i64: 512, 128>}, {pipeline_mode = #tpu.pipeline_mode<synchronous>, transform_indices = @transform_5, window_bounds = array<i64: 1, 128>}, {transform_indices = @transform_6, window_bounds = array<i64: 8, 512>}, {transform_indices = @transform_7, window_bounds = array<i64: 8, 128>}]} {
    %c0 = arith.constant 0 : index
    %c0_0 = arith.constant 0 : index
    %c0_1 = arith.constant 0 : index
    %c0_2 = arith.constant 0 : index
    %0 = vector.load %arg1[%c0, %c0_0, %c0_1, %c0_2] : memref<4x8x64x256xbf16, #tpu.memory_space<vmem>>, vector<4x8x64x256xbf16>
    %1 = arith.extf %0 : vector<4x8x64x256xbf16> to vector<4x8x64x256xf32>
    %cst = arith.constant dense<0.000000e+00> : vector<4x8x256xf32>
    %2 = vector.multi_reduction <add>, %1, %cst [2] : vector<4x8x64x256xf32> to vector<4x8x256xf32>
    %cst_3 = arith.constant dense<0xFF80> : vector<4x8x256xbf16>
    %3 = vector.multi_reduction <maximumf>, %0, %cst_3 [2] : vector<4x8x64x256xbf16> to vector<4x8x256xbf16>
    %4 = vector.shape_cast %2 : vector<4x8x256xf32> to vector<32x256xf32>
    %5 = arith.truncf %4 : vector<32x256xf32> to vector<32x256xbf16>
    %6 = vector.shape_cast %3 : vector<4x8x256xbf16> to vector<32x256xbf16>
    %c0_4 = arith.constant 0 : index
    %c0_5 = arith.constant 0 : index
    %7 = vector.load %arg2[%c0_4, %c0_5] : memref<256x128xbf16, #tpu.memory_space<vmem>>, vector<256x128xbf16>
    %cst_6 = arith.constant dense<0.000000e+00> : vector<32x128xf32>
    %8 = tpu.matmul %5, %7, %cst_6 {dimension_numbers = #tpu.dot_dimension_numbers<[1], [0], [0], [1], [0, 0, 1, 1], [], []>} : vector<32x256xbf16>, vector<256x128xbf16>, vector<32x128xf32> -> vector<32x128xf32>
    %c0_7 = arith.constant 0 : index
    %c0_8 = arith.constant 0 : index
    %9 = vector.load %arg3[%c0_7, %c0_8] : memref<256x128xbf16, #tpu.memory_space<vmem>>, vector<256x128xbf16>
    %cst_9 = arith.constant dense<0.000000e+00> : vector<32x128xf32>
    %10 = tpu.matmul %6, %9, %cst_9 {dimension_numbers = #tpu.dot_dimension_numbers<[1], [0], [0], [1], [0, 0, 1, 1], [], []>} : vector<32x256xbf16>, vector<256x128xbf16>, vector<32x128xf32> -> vector<32x128xf32>
    %11 = arith.addf %8, %10 : vector<32x128xf32>
    %c0_10 = arith.constant 0 : index
    %c0_11 = arith.constant 0 : index
    %12 = vector.load %arg4[%c0_10, %c0_11] : memref<1x128xf32, #tpu.memory_space<vmem>>, vector<1x128xf32>
    %13 = vector.broadcast %12 : vector<1x128xf32> to vector<32x128xf32>
    %14 = arith.addf %11, %13 : vector<32x128xf32>
    %cst_12 = arith.constant 0.000000e+00 : f32
    %15 = vector.broadcast %cst_12 : f32 to vector<32x128xf32>
    %16 = arith.maximumf %14, %15 : vector<32x128xf32>
    %17 = arith.truncf %16 : vector<32x128xf32> to vector<32x128xbf16>
    %c0_13 = arith.constant 0 : index
    %c0_14 = arith.constant 0 : index
    %18 = vector.load %arg6[%c0_13, %c0_14] : memref<1x128xf32, #tpu.memory_space<vmem>>, vector<1x128xf32>
    %19 = vector.extract_strided_slice %16 {offsets = [0, 0], sizes = [8, 128], strides = [1, 1]} : vector<32x128xf32> to vector<8x128xf32>
    %c0_15 = arith.constant 0 : index
    %c0_16 = arith.constant 0 : index
    %20 = vector.load %arg7[%c0_15, %c0_16] : memref<8x512xf32, #tpu.memory_space<vmem>>, vector<8x128xf32>
    tpu.vector_store %arg7[%c0_15, %c0_16], %19 {strides = array<i32>} : memref<8x512xf32, #tpu.memory_space<vmem>>, vector<8x128xf32>,
    %21 = vector.extract_strided_slice %17 {offsets = [0, 0], sizes = [8, 128], strides = [1, 1]} : vector<32x128xbf16> to vector<8x128xbf16>
    %c0_17 = arith.constant 0 : index
    %c0_18 = arith.constant 0 : index
    %22 = vector.load %arg5[%c0_17, %c0_18] : memref<512x128xbf16, #tpu.memory_space<vmem>>, vector<128x128xbf16>
    %cst_19 = arith.constant dense<0.000000e+00> : vector<8x128xf32>
    %23 = tpu.matmul %21, %22, %cst_19 {dimension_numbers = #tpu.dot_dimension_numbers<[1], [0], [0], [1], [0, 0, 1, 1], [], []>} : vector<8x128xbf16>, vector<128x128xbf16>, vector<8x128xf32> -> vector<8x128xf32>
    %24 = vector.broadcast %18 : vector<1x128xf32> to vector<8x128xf32>
    %25 = arith.addf %24, %23 : vector<8x128xf32>
    %26 = vector.extract_strided_slice %16 {offsets = [8, 0], sizes = [8, 128], strides = [1, 1]} : vector<32x128xf32> to vector<8x128xf32>
    %c0_20 = arith.constant 0 : index
    %c128 = arith.constant 128 : index
    %27 = vector.load %arg7[%c0_20, %c128] : memref<8x512xf32, #tpu.memory_space<vmem>>, vector<8x128xf32>
    tpu.vector_store %arg7[%c0_20, %c128], %26 {strides = array<i32>} : memref<8x512xf32, #tpu.memory_space<vmem>>, vector<8x128xf32>,
    %28 = vector.extract_strided_slice %17 {offsets = [8, 0], sizes = [8, 128], strides = [1, 1]} : vector<32x128xbf16> to vector<8x128xbf16>
    %c128_21 = arith.constant 128 : index
    %c0_22 = arith.constant 0 : index
    %29 = vector.load %arg5[%c128_21, %c0_22] : memref<512x128xbf16, #tpu.memory_space<vmem>>, vector<128x128xbf16>
    %cst_23 = arith.constant dense<0.000000e+00> : vector<8x128xf32>
    %30 = tpu.matmul %28, %29, %cst_23 {dimension_numbers = #tpu.dot_dimension_numbers<[1], [0], [0], [1], [0, 0, 1, 1], [], []>} : vector<8x128xbf16>, vector<128x128xbf16>, vector<8x128xf32> -> vector<8x128xf32>
    %31 = arith.addf %25, %30 : vector<8x128xf32>
    %32 = vector.extract_strided_slice %16 {offsets = [16, 0], sizes = [8, 128], strides = [1, 1]} : vector<32x128xf32> to vector<8x128xf32>
    %c0_24 = arith.constant 0 : index
    %c256 = arith.constant 256 : index
    %33 = vector.load %arg7[%c0_24, %c256] : memref<8x512xf32, #tpu.memory_space<vmem>>, vector<8x128xf32>
    tpu.vector_store %arg7[%c0_24, %c256], %32 {strides = array<i32>} : memref<8x512xf32, #tpu.memory_space<vmem>>, vector<8x128xf32>,
    %34 = vector.extract_strided_slice %17 {offsets = [16, 0], sizes = [8, 128], strides = [1, 1]} : vector<32x128xbf16> to vector<8x128xbf16>
    %c256_25 = arith.constant 256 : index
    %c0_26 = arith.constant 0 : index
    %35 = vector.load %arg5[%c256_25, %c0_26] : memref<512x128xbf16, #tpu.memory_space<vmem>>, vector<128x128xbf16>
    %cst_27 = arith.constant dense<0.000000e+00> : vector<8x128xf32>
    %36 = tpu.matmul %34, %35, %cst_27 {dimension_numbers = #tpu.dot_dimension_numbers<[1], [0], [0], [1], [0, 0, 1, 1], [], []>} : vector<8x128xbf16>, vector<128x128xbf16>, vector<8x128xf32> -> vector<8x128xf32>
    %37 = arith.addf %31, %36 : vector<8x128xf32>
    %38 = vector.extract_strided_slice %16 {offsets = [24, 0], sizes = [8, 128], strides = [1, 1]} : vector<32x128xf32> to vector<8x128xf32>
    %c0_28 = arith.constant 0 : index
    %c384 = arith.constant 384 : index
    %39 = vector.load %arg7[%c0_28, %c384] : memref<8x512xf32, #tpu.memory_space<vmem>>, vector<8x128xf32>
    tpu.vector_store %arg7[%c0_28, %c384], %38 {strides = array<i32>} : memref<8x512xf32, #tpu.memory_space<vmem>>, vector<8x128xf32>,
    %40 = vector.extract_strided_slice %17 {offsets = [24, 0], sizes = [8, 128], strides = [1, 1]} : vector<32x128xbf16> to vector<8x128xbf16>
    %c384_29 = arith.constant 384 : index
    %c0_30 = arith.constant 0 : index
    %41 = vector.load %arg5[%c384_29, %c0_30] : memref<512x128xbf16, #tpu.memory_space<vmem>>, vector<128x128xbf16>
    %cst_31 = arith.constant dense<0.000000e+00> : vector<8x128xf32>
    %42 = tpu.matmul %40, %41, %cst_31 {dimension_numbers = #tpu.dot_dimension_numbers<[1], [0], [0], [1], [0, 0, 1, 1], [], []>} : vector<8x128xbf16>, vector<128x128xbf16>, vector<8x128xf32> -> vector<8x128xf32>
    %43 = arith.addf %37, %42 : vector<8x128xf32>
    %c0_32 = arith.constant 0 : index
    %c0_33 = arith.constant 0 : index
    %44 = vector.load %arg8[%c0_32, %c0_33] : memref<8x128xf32, #tpu.memory_space<vmem>>, vector<8x128xf32>
    tpu.vector_store %arg8[%c0_32, %c0_33], %43 {strides = array<i32>} : memref<8x128xf32, #tpu.memory_space<vmem>>, vector<8x128xf32>,
    return
  }
  func.func @transform_0(%arg0: i32) -> (i32, i32, i32, i32) {
    %c0_i32 = arith.constant 0 : i32
    %c0_i32_0 = arith.constant 0 : i32
    %c0_i32_1 = arith.constant 0 : i32
    %c0_i32_2 = arith.constant 0 : i32
    return %c0_i32, %arg0, %c0_i32_0, %c0_i32_1 : i32, i32, i32, i32
  }
  func.func @transform_1(%arg0: i32) -> (i32, i32) {
    %c0_i32 = arith.constant 0 : i32
    %c0_i32_0 = arith.constant 0 : i32
    %c0_i32_1 = arith.constant 0 : i32
    return %c0_i32, %c0_i32_0 : i32, i32
  }
  func.func @transform_2(%arg0: i32) -> (i32, i32) {
    %c0_i32 = arith.constant 0 : i32
    %c0_i32_0 = arith.constant 0 : i32
    %c0_i32_1 = arith.constant 0 : i32
    return %c0_i32, %c0_i32_0 : i32, i32
  }
  func.func @transform_3(%arg0: i32) -> (i32, i32) {
    %c0_i32 = arith.constant 0 : i32
    %c0_i32_0 = arith.constant 0 : i32
    %c0_i32_1 = arith.constant 0 : i32
    return %c0_i32, %c0_i32_0 : i32, i32
  }
  func.func @transform_4(%arg0: i32) -> (i32, i32) {
    %c0_i32 = arith.constant 0 : i32
    %c0_i32_0 = arith.constant 0 : i32
    %c0_i32_1 = arith.constant 0 : i32
    return %c0_i32, %c0_i32_0 : i32, i32
  }
  func.func @transform_5(%arg0: i32) -> (i32, i32) {
    %c0_i32 = arith.constant 0 : i32
    %c0_i32_0 = arith.constant 0 : i32
    %c0_i32_1 = arith.constant 0 : i32
    return %c0_i32, %c0_i32_0 : i32, i32
  }
  func.func @transform_6(%arg0: i32) -> (i32, i32) {
    %c0_i32 = arith.constant 0 : i32
    %c0_i32_0 = arith.constant 0 : i32
    return %arg0, %c0_i32 : i32, i32
  }
  func.func @transform_7(%arg0: i32) -> (i32, i32) {
    %c0_i32 = arith.constant 0 : i32
    %c0_i32_0 = arith.constant 0 : i32
    return %arg0, %c0_i32 : i32, i32
  }
}

</mosaic_0001>

<llo_original>
// kernel: network_cuong_forward.1
$region0: #{network_cuong_forward.1}
  #allocation0 [shape = 'u32[]', space=smem, size = 0x4, offset = 0x4, fixed_abs, tag = 'smem constant byte address 0x4 - core index']
  #allocation1 [shape = 'u32[144,128]{1,0:T(1,128)}', space=vmem, size = 0x12000, scoped, tag = 'internal scratch']
  %s0 = inlined_call_operand.vmem [shape: bf16[4,16,64,256], index: 0, kind: input, shape index: {}]
  %s1 = inlined_call_operand.vmem [shape: bf16[256,128], index: 1, kind: input, shape index: {}]
  %s2 = inlined_call_operand.vmem [shape: bf16[256,128], index: 2, kind: input, shape index: {}]
  %s3 = inlined_call_operand.vmem [shape: f32[1,128], index: 3, kind: input, shape index: {}]
  %s4 = inlined_call_operand.vmem [shape: bf16[512,128], index: 4, kind: input, shape index: {}]
  %s5 = inlined_call_operand.vmem [shape: f32[1,128], index: 5, kind: input, shape index: {}]
  %s6 = inlined_call_operand.hbm [shape: f32[16,512], index: 6, kind: output, shape index: {0}]
  %s7 = inlined_call_operand.hbm [shape: f32[16,128], index: 7, kind: output, shape index: {1}]
  %8 = xla_tuple %s6, %s7
  %s9 = sld [smem:[#allocation0]]
  $region103: #{network_cuong_forward.1} parent=0
    _
  %s11 = ssub.s32 1, %s9
  %s12 = scalar_select 0, %s11, %s9
  $region1: #{network_cuong_forward.1} parent=0
    #allocation2 [shape = 'u8[2097152]{0}', space=vmem, size = 0x200000, scoped, tag = 'input window, operand 0']
    #allocation3 [shape = 'u8[32768]{0}', space=vmem, size = 0x8000, scoped, tag = 'output window, operand 0']
    #allocation4 [shape = 's32[2]{0}', space=sflag, size = 0x8, scoped, tag = 'scoped memory for network_cuong_forward.1']
    #allocation5 [shape = 'u8[8192]{0}', space=vmem, size = 0x2000, scoped, tag = 'output window, operand 1']
    #allocation6 [shape = 's32[2]{0}', space=sflag, size = 0x8, scoped, tag = 'scoped memory for network_cuong_forward.1']
    %13 = vsyncpa [#allocation4], 0
    %s14 = scalar_lea.sflag [#allocation4], 1
    %15 = vsyncpa %s14, 0
    %16 = vsyncpa [#allocation6], 0
    %s17 = scalar_lea.sflag [#allocation6], 1
    %18 = vsyncpa %s17, 0
    loop: start=0, step=1, limit=4
    $region2: #{network_cuong_forward.1} parent=1 // loop_pre_header
      _
    $region3: #{network_cuong_forward.1} parent=1 // loop_header
      %s20 = sphi 0, %s24
      %p21 = scmp.ge.s32.totalorder %s20, 4
      %s30 = sphi 0, %s32
      %s33 = sphi 0, %s30
      %s34 = sphi 0, %s33
      %s50 = sphi 0, %s34
      %s54 = sphi 0, %s54
      %s56 = sphi 0, %s54
      %s57 = sphi 0, %s56
      %s71 = sphi 0, %s57
      %s75 = sphi 0, %s75
      %s77 = sphi 0, %s75
      %s78 = sphi 0, %s77
      %s92 = sphi 0, %s78
      %s96 = sphi 0, %s96
      %s98 = sphi 0, %s96
      %s99 = sphi 0, %s98
      %s113 = sphi 0, %s99
      %s117 = sphi 0, %s117
      %s119 = sphi 0, %s117
      %s120 = sphi 0, %s119
      %s134 = sphi 0, %s120
      %s138 = sphi 0, %s138
      %s140 = sphi 0, %s138
      %s141 = sphi 0, %s140
      %s155 = sphi 0, %s141
      %s161 = sphi 0, %s163
      %s164 = sphi 0, %s161
      %s165 = sphi 0, %s164
      %s181 = sphi 0, %s165
      %s187 = sphi 0, %s189
      %s190 = sphi 0, %s187
      %s191 = sphi 0, %s190
      %s207 = sphi 0, %s191
    $region4: #{network_cuong_forward.1} parent=1 // loop_header_branch
      %23 = sbr.rel (%p21) target = $region8
    $region5: #{network_cuong_forward.1} parent=1 // loop_body
      %s25 = ssub.s32 %s20, 1
      %s26 = ssub.s32 %s20, 2
      %s27 = sadd.s32 %s20, 1
      %s28 = ssub.s32 %s20, %s27
      %p29 = scmp.eq.s32.totalorder %s28, 0
      %s31 = sadd.s32 %s30, 1
      %s32 = scalar_select %p29, %s30, %s31
      %p35 = pneg %p29
      %p36 = scmp.eq.s32.totalorder %s20, 1
      %p37 = por %p35, %p36
      %p38 = scmp.ne.s32.totalorder %s30, %s33
      %p39 = scmp.eq.s32.totalorder %s20, 0
      %p40 = por %p38, %p39
      %p41 = scmp.ne.s32.totalorder %s30, %s33
      %p42 = scmp.eq.s32.totalorder %s25, 1
      %p43 = por %p41, %p42
      %p44 = scmp.ne.s32.totalorder %s33, %s34
      %p45 = scmp.eq.s32.totalorder %s25, 0
      %p46 = por %p44, %p45
      %p47 = scmp.ne.s32.totalorder %s33, %s34
      %p48 = scmp.eq.s32.totalorder %s26, 1
      %p49 = por %p47, %p48
      %p51 = scmp.ne.s32.totalorder %s34, %s50
      %p52 = scmp.eq.s32.totalorder %s26, 0
      %p53 = por %p51, %p52
      %s55 = sadd.s32 %s54, 1
      %p58 = scmp.eq.s32.totalorder %s20, 1
      %p59 = scmp.ne.s32.totalorder %s54, %s56
      %p60 = scmp.eq.s32.totalorder %s20, 0
      %p61 = por %p59, %p60
      %p62 = scmp.ne.s32.totalorder %s54, %s56
      %p63 = scmp.eq.s32.totalorder %s25, 1
      %p64 = por %p62, %p63
      %p65 = scmp.ne.s32.totalorder %s56, %s57
      %p66 = scmp.eq.s32.totalorder %s25, 0
      %p67 = por %p65, %p66
      %p68 = scmp.ne.s32.totalorder %s56, %s57
      %p69 = scmp.eq.s32.totalorder %s26, 1
      %p70 = por %p68, %p69
      %p72 = scmp.ne.s32.totalorder %s57, %s71
      %p73 = scmp.eq.s32.totalorder %s26, 0
      %p74 = por %p72, %p73
      %s76 = sadd.s32 %s75, 1
      %p79 = scmp.eq.s32.totalorder %s20, 1
      %p80 = scmp.ne.s32.totalorder %s75, %s77
      %p81 = scmp.eq.s32.totalorder %s20, 0
      %p82 = por %p80, %p81
      %p83 = scmp.ne.s32.totalorder %s75, %s77
      %p84 = scmp.eq.s32.totalorder %s25, 1
      %p85 = por %p83, %p84
      %p86 = scmp.ne.s32.totalorder %s77, %s78
      %p87 = scmp.eq.s32.totalorder %s25, 0
      %p88 = por %p86, %p87
      %p89 = scmp.ne.s32.totalorder %s77, %s78
      %p90 = scmp.eq.s32.totalorder %s26, 1
      %p91 = por %p89, %p90
      %p93 = scmp.ne.s32.totalorder %s78, %s92
      %p94 = scmp.eq.s32.totalorder %s26, 0
      %p95 = por %p93, %p94
      %s97 = sadd.s32 %s96, 1
      %p100 = scmp.eq.s32.totalorder %s20, 1
      %p101 = scmp.ne.s32.totalorder %s96, %s98
      %p102 = scmp.eq.s32.totalorder %s20, 0
      %p103 = por %p101, %p102
      %p104 = scmp.ne.s32.totalorder %s96, %s98
      %p105 = scmp.eq.s32.totalorder %s25, 1
      %p106 = por %p104, %p105
      %p107 = scmp.ne.s32.totalorder %s98, %s99
      %p108 = scmp.eq.s32.totalorder %s25, 0
      %p109 = por %p107, %p108
      %p110 = scmp.ne.s32.totalorder %s98, %s99
      %p111 = scmp.eq.s32.totalorder %s26, 1
      %p112 = por %p110, %p111
      %p114 = scmp.ne.s32.totalorder %s99, %s113
      %p115 = scmp.eq.s32.totalorder %s26, 0
      %p116 = por %p114, %p115
      %s118 = sadd.s32 %s117, 1
      %p121 = scmp.eq.s32.totalorder %s20, 1
      %p122 = scmp.ne.s32.totalorder %s117, %s119
      %p123 = scmp.eq.s32.totalorder %s20, 0
      %p124 = por %p122, %p123
      %p125 = scmp.ne.s32.totalorder %s117, %s119
      %p126 = scmp.eq.s32.totalorder %s25, 1
      %p127 = por %p125, %p126
      %p128 = scmp.ne.s32.totalorder %s119, %s120
      %p129 = scmp.eq.s32.totalorder %s25, 0
      %p130 = por %p128, %p129
      %p131 = scmp.ne.s32.totalorder %s119, %s120
      %p132 = scmp.eq.s32.totalorder %s26, 1
      %p133 = por %p131, %p132
      %p135 = scmp.ne.s32.totalorder %s120, %s134
      %p136 = scmp.eq.s32.totalorder %s26, 0
      %p137 = por %p135, %p136
      %s139 = sadd.s32 %s138, 1
      %p142 = scmp.eq.s32.totalorder %s20, 1
      %p143 = scmp.ne.s32.totalorder %s138, %s140
      %p144 = scmp.eq.s32.totalorder %s20, 0
      %p145 = por %p143, %p144
      %p146 = scmp.ne.s32.totalorder %s138, %s140
      %p147 = scmp.eq.s32.totalorder %s25, 1
      %p148 = por %p146, %p147
      %p149 = scmp.ne.s32.totalorder %s140, %s141
      %p150 = scmp.eq.s32.totalorder %s25, 0
      %p151 = por %p149, %p150
      %p152 = scmp.ne.s32.totalorder %s140, %s141
      %p153 = scmp.eq.s32.totalorder %s26, 1
      %p154 = por %p152, %p153
      %p156 = scmp.ne.s32.totalorder %s141, %s155
      %p157 = scmp.eq.s32.totalorder %s26, 0
      %p158 = por %p156, %p157
      %s159 = ssub.s32 %s20, %s27
      %p160 = scmp.eq.s32.totalorder %s159, 0
      %s162 = sadd.s32 %s161, 1
      %s163 = scalar_select %p160, %s161, %s162
      %p166 = pneg %p160
      %p167 = scmp.eq.s32.totalorder %s20, 1
      %p168 = por %p166, %p167
      %p169 = scmp.ne.s32.totalorder %s161, %s164
      %p170 = scmp.eq.s32.totalorder %s20, 0
      %p171 = por %p169, %p170
      %p172 = scmp.ne.s32.totalorder %s161, %s164
      %p173 = scmp.eq.s32.totalorder %s25, 1
      %p174 = por %p172, %p173
      %p175 = scmp.ne.s32.totalorder %s164, %s165
      %p176 = scmp.eq.s32.totalorder %s25, 0
      %p177 = por %p175, %p176
      %p178 = scmp.ne.s32.totalorder %s164, %s165
      %p179 = scmp.eq.s32.totalorder %s26, 1
      %p180 = por %p178, %p179
      %p182 = scmp.ne.s32.totalorder %s165, %s181
      %p183 = scmp.eq.s32.totalorder %s26, 0
      %p184 = por %p182, %p183
      %s185 = ssub.s32 %s20, %s27
      %p186 = scmp.eq.s32.totalorder %s185, 0
      %s188 = sadd.s32 %s187, 1
      %s189 = scalar_select %p186, %s187, %s188
      %p192 = pneg %p186
      %p193 = scmp.eq.s32.totalorder %s20, 1
      %p194 = por %p192, %p193
      %p195 = scmp.ne.s32.totalorder %s187, %s190
      %p196 = scmp.eq.s32.totalorder %s20, 0
      %p197 = por %p195, %p196
      %p198 = scmp.ne.s32.totalorder %s187, %s190
      %p199 = scmp.eq.s32.totalorder %s25, 1
      %p200 = por %p198, %p199
      %p201 = scmp.ne.s32.totalorder %s190, %s191
      %p202 = scmp.eq.s32.totalorder %s25, 0
      %p203 = por %p201, %p202
      %p204 = scmp.ne.s32.totalorder %s190, %s191
      %p205 = scmp.eq.s32.totalorder %s26, 1
      %p206 = por %p204, %p205
      %p208 = scmp.ne.s32.totalorder %s191, %s207
      %p209 = scmp.eq.s32.totalorder %s26, 0
      %p210 = por %p208, %p209
      %p211 = scmp.le.s32.totalorder 1, %s20
      %p212 = scmp.lt.s32.totalorder %s20, 3
      %p213 = pnand %p211, %p212
      %p214 = pneg %p213
      // Predicated region
      $region9: #{network_cuong_forward.1} parent=5 // pred_check
        _
      $region10: #{network_cuong_forward.1} parent=5 // pred_check_branch
        %216 = sbr.rel (%p213) target = $region12
      $region11: #{network_cuong_forward.1} parent=5 // pred_region
        %s217 = ssub.s32 %s20, 1
        // Predicated region
        $region13: #{network_cuong_forward.1} parent=11 // pred_check
          %p218 = pneg %p67
        $region14: #{network_cuong_forward.1} parent=11 // pred_check_branch
          %220 = sbr.rel (%p218) target = $region16
        $region15: #{network_cuong_forward.1} parent=11 // pred_region
          _
        $region16: #{network_cuong_forward.1} parent=11 // pred_fallthru
          _
        // Predicated region
        $region17: #{network_cuong_forward.1} parent=11 // pred_check
          %p221 = pneg %p88
        $region18: #{network_cuong_forward.1} parent=11 // pred_check_branch
          %223 = sbr.rel (%p221) target = $region20
        $region19: #{network_cuong_forward.1} parent=11 // pred_region
          _
        $region20: #{network_cuong_forward.1} parent=11 // pred_fallthru
          _
        // Predicated region
        $region21: #{network_cuong_forward.1} parent=11 // pred_check
          %p224 = pneg %p109
        $region22: #{network_cuong_forward.1} parent=11 // pred_check_branch
          %226 = sbr.rel (%p224) target = $region24
        $region23: #{network_cuong_forward.1} parent=11 // pred_region
          _
        $region24: #{network_cuong_forward.1} parent=11 // pred_fallthru
          _
        // Predicated region
        $region25: #{network_cuong_forward.1} parent=11 // pred_check
          %p227 = pneg %p130
        $region26: #{network_cuong_forward.1} parent=11 // pred_check_branch
          %229 = sbr.rel (%p227) target = $region28
        $region27: #{network_cuong_forward.1} parent=11 // pred_region
          _
        $region28: #{network_cuong_forward.1} parent=11 // pred_fallthru
          _
        // Predicated region
        $region29: #{network_cuong_forward.1} parent=11 // pred_check
          %p230 = pneg %p151
        $region30: #{network_cuong_forward.1} parent=11 // pred_check_branch
          %232 = sbr.rel (%p230) target = $region32
        $region31: #{network_cuong_forward.1} parent=11 // pred_region
          _
        $region32: #{network_cuong_forward.1} parent=11 // pred_fallthru
          _
      $region12: #{network_cuong_forward.1} parent=5 // pred_fallthru
        _
      %p233 = scmp.lt.s32.totalorder %s20, 2
      // Predicated region
      $region33: #{network_cuong_forward.1} parent=5 // pred_check
        %p234 = pneg %p233
      $region34: #{network_cuong_forward.1} parent=5 // pred_check_branch
        %236 = sbr.rel (%p234) target = $region36
      $region35: #{network_cuong_forward.1} parent=5 // pred_region
        // Predicated region
        $region37: #{network_cuong_forward.1} parent=35 // pred_check
          %p237 = pneg %p40
        $region38: #{network_cuong_forward.1} parent=35 // pred_check_branch
          %239 = sbr.rel (%p237) target = $region40
        $region39: #{network_cuong_forward.1} parent=35 // pred_region
          %s240 = sand.u32 %s30, 1
          %s241 = sand.u32 %s30, 1
          %s242 = smul.addr %s241, 2048
          %s243 = scalar_lea.vmem [#allocation2], %s242
          %s244 = smul.u32 8, %s20
          %s245 = smul.addr %s244, 16
          %s246 = smul.addr %s245, 4
          %s247 = scalar_lea.vmem %s0, %s246
          // Predicated region
          $region41: #{network_cuong_forward.1} parent=39 // pred_check
            _
          $region42: #{network_cuong_forward.1} parent=39 // pred_check_branch
            %249 = sbr.rel (0) target = $region44
          $region43: #{network_cuong_forward.1} parent=39 // pred_region
            // Predicated region
            $region45: #{network_cuong_forward.1} parent=43 // pred_check
              _
            $region46: #{network_cuong_forward.1} parent=43 // pred_check_branch
              %251 = sbr.rel (0) target = $region48
            $region47: #{network_cuong_forward.1} parent=43 // pred_region
              // Predicated region
              $region60: #{network_cuong_forward.1} parent=47 // pred_check
                _
              $region61: #{network_cuong_forward.1} parent=47 // pred_check_branch
                %776 = sbr.rel (0) target = $region63
              $region62: #{network_cuong_forward.1} parent=47 // pred_region
                loop: start=0, step=1, limit=1
                $region64: #{network_cuong_forward.1} parent=62 // loop_pre_header
                  _
                $region65: #{network_cuong_forward.1} parent=62 // loop_header
                  %s778 = sphi 0, %s782
                  %p779 = scmp.ge.s32.totalorder %s778, 1
                  %s783 = sphi %s247, %s247
                  %s784 = sphi %s243, %s243
                $region66: #{network_cuong_forward.1} parent=62 // loop_header_branch
                  %781 = sbr.rel (%p779) target = $region70
                $region67: #{network_cuong_forward.1} parent=62 // loop_body
                  %v785 = vld [vmem:[%s783] sm:$0xff]
                  %786 = vst [vmem:[%s784] sm:$0xff] %v785
                  %v787 = vld [vmem:[%s783 + $0x8] sm:$0xff]
                  %788 = vst [vmem:[%s784 + $0x8] sm:$0xff] %v787
                  %v789 = vld [vmem:[%s783 + $0x10] sm:$0xff]
                  %790 = vst [vmem:[%s784 + $0x10] sm:$0xff] %v789
                  %v791 = vld [vmem:[%s783 + $0x18] sm:$0xff]
                  %792 = vst [vmem:[%s784 + $0x18] sm:$0xff] %v791
                  %v793 = vld [vmem:[%s783 + $0x20] sm:$0xff]
                  %794 = vst [vmem:[%s784 + $0x20] sm:$0xff] %v793
                  %v795 = vld [vmem:[%s783 + $0x28] sm:$0xff]
                  %796 = vst [vmem:[%s784 + $0x28] sm:$0xff] %v795
                  %v797 = vld [vmem:[%s783 + $0x30] sm:$0xff]
                  %798 = vst [vmem:[%s784 + $0x30] sm:$0xff] %v797
                  %v799 = vld [vmem:[%s783 + $0x38] sm:$0xff]
                  %800 = vst [vmem:[%s784 + $0x38] sm:$0xff] %v799
                  %v801 = vld [vmem:[%s783 + $0x40] sm:$0xff]
                  %802 = vst [vmem:[%s784 + $0x40] sm:$0xff] %v801
                  %v803 = vld [vmem:[%s783 + $0x48] sm:$0xff]
                  %804 = vst [vmem:[%s784 + $0x48] sm:$0xff] %v803
                  %v805 = vld [vmem:[%s783 + $0x50] sm:$0xff]
                  %806 = vst [vmem:[%s784 + $0x50] sm:$0xff] %v805
                  %v807 = vld [vmem:[%s783 + $0x58] sm:$0xff]
                  %808 = vst [vmem:[%s784 + $0x58] sm:$0xff] %v807
                  %v809 = vld [vmem:[%s783 + $0x60] sm:$0xff]
                  %810 = vst [vmem:[%s784 + $0x60] sm:$0xff] %v809
                  %v811 = vld [vmem:[%s783 + $0x68] sm:$0xff]
                  %812 = vst [vmem:[%s784 + $0x68] sm:$0xff] %v811
                  %v813 = vld [vmem:[%s783 + $0x70] sm:$0xff]
                  %814 = vst [vmem:[%s784 + $0x70] sm:$0xff] %v813
                  %v815 = vld [vmem:[%s783 + $0x78] sm:$0xff]
                  %816 = vst [vmem:[%s784 + $0x78] sm:$0xff] %v815
                  %v817 = vld [vmem:[%s783 + $0x80] sm:$0xff]
                  %818 = vst [vmem:[%s784 + $0x80] sm:$0xff] %v817
                  %v819 = vld [vmem:[%s783 + $0x88] sm:$0xff]
                  %820 = vst [vmem:[%s784 + $0x88] sm:$0xff] %v819
                  %v821 = vld [vmem:[%s783 + $0x90] sm:$0xff]
                  %822 = vst [vmem:[%s784 + $0x90] sm:$0xff] %v821
                  %v823 = vld [vmem:[%s783 + $0x98] sm:$0xff]
                  %824 = vst [vmem:[%s784 + $0x98] sm:$0xff] %v823
                  %v825 = vld [vmem:[%s783 + $0xa0] sm:$0xff]
                  %826 = vst [vmem:[%s784 + $0xa0] sm:$0xff] %v825
                  %v827 = vld [vmem:[%s783 + $0xa8] sm:$0xff]
                  %828 = vst [vmem:[%s784 + $0xa8] sm:$0xff] %v827
                  %v829 = vld [vmem:[%s783 + $0xb0] sm:$0xff]
                  %830 = vst [vmem:[%s784 + $0xb0] sm:$0xff] %v829
                  %v831 = vld [vmem:[%s783 + $0xb8] sm:$0xff]
                  %832 = vst [vmem:[%s784 + $0xb8] sm:$0xff] %v831
                  %v833 = vld [vmem:[%s783 + $0xc0] sm:$0xff]
                  %834 = vst [vmem:[%s784 + $0xc0] sm:$0xff] %v833
                  %v835 = vld [vmem:[%s783 + $0xc8] sm:$0xff]
                  %836 = vst [vmem:[%s784 + $0xc8] sm:$0xff] %v835
                  %v837 = vld [vmem:[%s783 + $0xd0] sm:$0xff]
                  %838 = vst [vmem:[%s784 + $0xd0] sm:$0xff] %v837
                  %v839 = vld [vmem:[%s783 + $0xd8] sm:$0xff]
                  %840 = vst [vmem:[%s784 + $0xd8] sm:$0xff] %v839
                  %v841 = vld [vmem:[%s783 + $0xe0] sm:$0xff]
                  %842 = vst [vmem:[%s784 + $0xe0] sm:$0xff] %v841
                  %v843 = vld [vmem:[%s783 + $0xe8] sm:$0xff]
                  %844 = vst [vmem:[%s784 + $0xe8] sm:$0xff] %v843
                  %v845 = vld [vmem:[%s783 + $0xf0] sm:$0xff]
                  %846 = vst [vmem:[%s784 + $0xf0] sm:$0xff] %v845
                  %v847 = vld [vmem:[%s783 + $0xf8] sm:$0xff]
                  %848 = vst [vmem:[%s784 + $0xf8] sm:$0xff] %v847
                  %v849 = vld [vmem:[%s783 + $0x100] sm:$0xff]
                  %850 = vst [vmem:[%s784 + $0x100] sm:$0xff] %v849
                  %v851 = vld [vmem:[%s783 + $0x108] sm:$0xff]
                  %852 = vst [vmem:[%s784 + $0x108] sm:$0xff] %v851
                  %v853 = vld [vmem:[%s783 + $0x110] sm:$0xff]
                  %854 = vst [vmem:[%s784 + $0x110] sm:$0xff] %v853
                  %v855 = vld [vmem:[%s783 + $0x118] sm:$0xff]
                  %856 = vst [vmem:[%s784 + $0x118] sm:$0xff] %v855
                  %v857 = vld [vmem:[%s783 + $0x120] sm:$0xff]
                  %858 = vst [vmem:[%s784 + $0x120] sm:$0xff] %v857
                  %v859 = vld [vmem:[%s783 + $0x128] sm:$0xff]
                  %860 = vst [vmem:[%s784 + $0x128] sm:$0xff] %v859
                  %v861 = vld [vmem:[%s783 + $0x130] sm:$0xff]
                  %862 = vst [vmem:[%s784 + $0x130] sm:$0xff] %v861
                  %v863 = vld [vmem:[%s783 + $0x138] sm:$0xff]
                  %864 = vst [vmem:[%s784 + $0x138] sm:$0xff] %v863
                  %v865 = vld [vmem:[%s783 + $0x140] sm:$0xff]
                  %866 = vst [vmem:[%s784 + $0x140] sm:$0xff] %v865
                  %v867 = vld [vmem:[%s783 + $0x148] sm:$0xff]
                  %868 = vst [vmem:[%s784 + $0x148] sm:$0xff] %v867
                  %v869 = vld [vmem:[%s783 + $0x150] sm:$0xff]
                  %870 = vst [vmem:[%s784 + $0x150] sm:$0xff] %v869
                  %v871 = vld [vmem:[%s783 + $0x158] sm:$0xff]
                  %872 = vst [vmem:[%s784 + $0x158] sm:$0xff] %v871
                  %v873 = vld [vmem:[%s783 + $0x160] sm:$0xff]
                  %874 = vst [vmem:[%s784 + $0x160] sm:$0xff] %v873
                  %v875 = vld [vmem:[%s783 + $0x168] sm:$0xff]
                  %876 = vst [vmem:[%s784 + $0x168] sm:$0xff] %v875
                  %v877 = vld [vmem:[%s783 + $0x170] sm:$0xff]
                  %878 = vst [vmem:[%s784 + $0x170] sm:$0xff] %v877
                  %v879 = vld [vmem:[%s783 + $0x178] sm:$0xff]
                  %880 = vst [vmem:[%s784 + $0x178] sm:$0xff] %v879
                  %v881 = vld [vmem:[%s783 + $0x180] sm:$0xff]
                  %882 = vst [vmem:[%s784 + $0x180] sm:$0xff] %v881
                  %v883 = vld [vmem:[%s783 + $0x188] sm:$0xff]
                  %884 = vst [vmem:[%s784 + $0x188] sm:$0xff] %v883
                  %v885 = vld [vmem:[%s783 + $0x190] sm:$0xff]
                  %886 = vst [vmem:[%s784 + $0x190] sm:$0xff] %v885
                  %v887 = vld [vmem:[%s783 + $0x198] sm:$0xff]
                  %888 = vst [vmem:[%s784 + $0x198] sm:$0xff] %v887
                  %v889 = vld [vmem:[%s783 + $0x1a0] sm:$0xff]
                  %890 = vst [vmem:[%s784 + $0x1a0] sm:$0xff] %v889
                  %v891 = vld [vmem:[%s783 + $0x1a8] sm:$0xff]
                  %892 = vst [vmem:[%s784 + $0x1a8] sm:$0xff] %v891
                  %v893 = vld [vmem:[%s783 + $0x1b0] sm:$0xff]
                  %894 = vst [vmem:[%s784 + $0x1b0] sm:$0xff] %v893
                  %v895 = vld [vmem:[%s783 + $0x1b8] sm:$0xff]
                  %896 = vst [vmem:[%s784 + $0x1b8] sm:$0xff] %v895
                  %v897 = vld [vmem:[%s783 + $0x1c0] sm:$0xff]
                  %898 = vst [vmem:[%s784 + $0x1c0] sm:$0xff] %v897
                  %v899 = vld [vmem:[%s783 + $0x1c8] sm:$0xff]
                  %900 = vst [vmem:[%s784 + $0x1c8] sm:$0xff] %v899
                  %v901 = vld [vmem:[%s783 + $0x1d0] sm:$0xff]
                  %902 = vst [vmem:[%s784 + $0x1d0] sm:$0xff] %v901
                  %v903 = vld [vmem:[%s783 + $0x1d8] sm:$0xff]
                  %904 = vst [vmem:[%s784 + $0x1d8] sm:$0xff] %v903
                  %v905 = vld [vmem:[%s783 + $0x1e0] sm:$0xff]
                  %906 = vst [vmem:[%s784 + $0x1e0] sm:$0xff] %v905
                  %v907 = vld [vmem:[%s783 + $0x1e8] sm:$0xff]
                  %908 = vst [vmem:[%s784 + $0x1e8] sm:$0xff] %v907
                  %v909 = vld [vmem:[%s783 + $0x1f0] sm:$0xff]
                  %910 = vst [vmem:[%s784 + $0x1f0] sm:$0xff] %v909
                  %v911 = vld [vmem:[%s783 + $0x1f8] sm:$0xff]
                  %912 = vst [vmem:[%s784 + $0x1f8] sm:$0xff] %v911
                  %v913 = vld [vmem:[%s783 + $0x400] sm:$0xff]
                  %914 = vst [vmem:[%s784 + $0x200] sm:$0xff] %v913
                  %v915 = vld [vmem:[%s783 + $0x408] sm:$0xff]
                  %916 = vst [vmem:[%s784 + $0x208] sm:$0xff] %v915
                  %v917 = vld [vmem:[%s783 + $0x410] sm:$0xff]
                  %918 = vst [vmem:[%s784 + $0x210] sm:$0xff] %v917
                  %v919 = vld [vmem:[%s783 + $0x418] sm:$0xff]
                  %920 = vst [vmem:[%s784 + $0x218] sm:$0xff] %v919
                  %v921 = vld [vmem:[%s783 + $0x420] sm:$0xff]
                  %922 = vst [vmem:[%s784 + $0x220] sm:$0xff] %v921
                  %v923 = vld [vmem:[%s783 + $0x428] sm:$0xff]
                  %924 = vst [vmem:[%s784 + $0x228] sm:$0xff] %v923
                  %v925 = vld [vmem:[%s783 + $0x430] sm:$0xff]
                  %926 = vst [vmem:[%s784 + $0x230] sm:$0xff] %v925
                  %v927 = vld [vmem:[%s783 + $0x438] sm:$0xff]
                  %928 = vst [vmem:[%s784 + $0x238] sm:$0xff] %v927
                  %v929 = vld [vmem:[%s783 + $0x440] sm:$0xff]
                  %930 = vst [vmem:[%s784 + $0x240] sm:$0xff] %v929
                  %v931 = vld [vmem:[%s783 + $0x448] sm:$0xff]
                  %932 = vst [vmem:[%s784 + $0x248] sm:$0xff] %v931
                  %v933 = vld [vmem:[%s783 + $0x450] sm:$0xff]
                  %934 = vst [vmem:[%s784 + $0x250] sm:$0xff] %v933
                  %v935 = vld [vmem:[%s783 + $0x458] sm:$0xff]
                  %936 = vst [vmem:[%s784 + $0x258] sm:$0xff] %v935
                  %v937 = vld [vmem:[%s783 + $0x460] sm:$0xff]
                  %938 = vst [vmem:[%s784 + $0x260] sm:$0xff] %v937
                  %v939 = vld [vmem:[%s783 + $0x468] sm:$0xff]
                  %940 = vst [vmem:[%s784 + $0x268] sm:$0xff] %v939
                  %v941 = vld [vmem:[%s783 + $0x470] sm:$0xff]
                  %942 = vst [vmem:[%s784 + $0x270] sm:$0xff] %v941
                  %v943 = vld [vmem:[%s783 + $0x478] sm:$0xff]
                  %944 = vst [vmem:[%s784 + $0x278] sm:$0xff] %v943
                  %v945 = vld [vmem:[%s783 + $0x480] sm:$0xff]
                  %946 = vst [vmem:[%s784 + $0x280] sm:$0xff] %v945
                  %v947 = vld [vmem:[%s783 + $0x488] sm:$0xff]
                  %948 = vst [vmem:[%s784 + $0x288] sm:$0xff] %v947
                  %v949 = vld [vmem:[%s783 + $0x490] sm:$0xff]
                  %950 = vst [vmem:[%s784 + $0x290] sm:$0xff] %v949
                  %v951 = vld [vmem:[%s783 + $0x498] sm:$0xff]
                  %952 = vst [vmem:[%s784 + $0x298] sm:$0xff] %v951
                  %v953 = vld [vmem:[%s783 + $0x4a0] sm:$0xff]
                  %954 = vst [vmem:[%s784 + $0x2a0] sm:$0xff] %v953
                  %v955 = vld [vmem:[%s783 + $0x4a8] sm:$0xff]
                  %956 = vst [vmem:[%s784 + $0x2a8] sm:$0xff] %v955
                  %v957 = vld [vmem:[%s783 + $0x4b0] sm:$0xff]
                  %958 = vst [vmem:[%s784 + $0x2b0] sm:$0xff] %v957
                  %v959 = vld [vmem:[%s783 + $0x4b8] sm:$0xff]
                  %960 = vst [vmem:[%s784 + $0x2b8] sm:$0xff] %v959
                  %v961 = vld [vmem:[%s783 + $0x4c0] sm:$0xff]
                  %962 = vst [vmem:[%s784 + $0x2c0] sm:$0xff] %v961
                  %v963 = vld [vmem:[%s783 + $0x4c8] sm:$0xff]
                  %964 = vst [vmem:[%s784 + $0x2c8] sm:$0xff] %v963
                  %v965 = vld [vmem:[%s783 + $0x4d0] sm:$0xff]
                  %966 = vst [vmem:[%s784 + $0x2d0] sm:$0xff] %v965
                  %v967 = vld [vmem:[%s783 + $0x4d8] sm:$0xff]
                  %968 = vst [vmem:[%s784 + $0x2d8] sm:$0xff] %v967
                  %v969 = vld [vmem:[%s783 + $0x4e0] sm:$0xff]
                  %970 = vst [vmem:[%s784 + $0x2e0] sm:$0xff] %v969
                  %v971 = vld [vmem:[%s783 + $0x4e8] sm:$0xff]
                  %972 = vst [vmem:[%s784 + $0x2e8] sm:$0xff] %v971
                  %v973 = vld [vmem:[%s783 + $0x4f0] sm:$0xff]
                  %974 = vst [vmem:[%s784 + $0x2f0] sm:$0xff] %v973
                  %v975 = vld [vmem:[%s783 + $0x4f8] sm:$0xff]
                  %976 = vst [vmem:[%s784 + $0x2f8] sm:$0xff] %v975
                  %v977 = vld [vmem:[%s783 + $0x500] sm:$0xff]
                  %978 = vst [vmem:[%s784 + $0x300] sm:$0xff] %v977
                  %v979 = vld [vmem:[%s783 + $0x508] sm:$0xff]
                  %980 = vst [vmem:[%s784 + $0x308] sm:$0xff] %v979
                  %v981 = vld [vmem:[%s783 + $0x510] sm:$0xff]
                  %982 = vst [vmem:[%s784 + $0x310] sm:$0xff] %v981
                  %v983 = vld [vmem:[%s783 + $0x518] sm:$0xff]
                  %984 = vst [vmem:[%s784 + $0x318] sm:$0xff] %v983
                  %v985 = vld [vmem:[%s783 + $0x520] sm:$0xff]
                  %986 = vst [vmem:[%s784 + $0x320] sm:$0xff] %v985
                  %v987 = vld [vmem:[%s783 + $0x528] sm:$0xff]
                  %988 = vst [vmem:[%s784 + $0x328] sm:$0xff] %v987
                  %v989 = vld [vmem:[%s783 + $0x530] sm:$0xff]
                  %990 = vst [vmem:[%s784 + $0x330] sm:$0xff] %v989
                  %v991 = vld [vmem:[%s783 + $0x538] sm:$0xff]
                  %992 = vst [vmem:[%s784 + $0x338] sm:$0xff] %v991
                  %v993 = vld [vmem:[%s783 + $0x540] sm:$0xff]
                  %994 = vst [vmem:[%s784 + $0x340] sm:$0xff] %v993
                  %v995 = vld [vmem:[%s783 + $0x548] sm:$0xff]
                  %996 = vst [vmem:[%s784 + $0x348] sm:$0xff] %v995
                  %v997 = vld [vmem:[%s783 + $0x550] sm:$0xff]
                  %998 = vst [vmem:[%s784 + $0x350] sm:$0xff] %v997
                  %v999 = vld [vmem:[%s783 + $0x558] sm:$0xff]
                  %1000 = vst [vmem:[%s784 + $0x358] sm:$0xff] %v999
                  %v1001 = vld [vmem:[%s783 + $0x560] sm:$0xff]
                  %1002 = vst [vmem:[%s784 + $0x360] sm:$0xff] %v1001
                  %v1003 = vld [vmem:[%s783 + $0x568] sm:$0xff]
                  %1004 = vst [vmem:[%s784 + $0x368] sm:$0xff] %v1003
                  %v1005 = vld [vmem:[%s783 + $0x570] sm:$0xff]
                  %1006 = vst [vmem:[%s784 + $0x370] sm:$0xff] %v1005
                  %v1007 = vld [vmem:[%s783 + $0x578] sm:$0xff]
                  %1008 = vst [vmem:[%s784 + $0x378] sm:$0xff] %v1007
                  %v1009 = vld [vmem:[%s783 + $0x580] sm:$0xff]
                  %1010 = vst [vmem:[%s784 + $0x380] sm:$0xff] %v1009
                  %v1011 = vld [vmem:[%s783 + $0x588] sm:$0xff]
                  %1012 = vst [vmem:[%s784 + $0x388] sm:$0xff] %v1011
                  %v1013 = vld [vmem:[%s783 + $0x590] sm:$0xff]
                  %1014 = vst [vmem:[%s784 + $0x390] sm:$0xff] %v1013
                  %v1015 = vld [vmem:[%s783 + $0x598] sm:$0xff]
                  %1016 = vst [vmem:[%s784 + $0x398] sm:$0xff] %v1015
                  %v1017 = vld [vmem:[%s783 + $0x5a0] sm:$0xff]
                  %1018 = vst [vmem:[%s784 + $0x3a0] sm:$0xff] %v1017
                  %v1019 = vld [vmem:[%s783 + $0x5a8] sm:$0xff]
                  %1020 = vst [vmem:[%s784 + $0x3a8] sm:$0xff] %v1019
                  %v1021 = vld [vmem:[%s783 + $0x5b0] sm:$0xff]
                  %1022 = vst [vmem:[%s784 + $0x3b0] sm:$0xff] %v1021
                  %v1023 = vld [vmem:[%s783 + $0x5b8] sm:$0xff]
                  %1024 = vst [vmem:[%s784 + $0x3b8] sm:$0xff] %v1023
                  %v1025 = vld [vmem:[%s783 + $0x5c0] sm:$0xff]
                  %1026 = vst [vmem:[%s784 + $0x3c0] sm:$0xff] %v1025
                  %v1027 = vld [vmem:[%s783 + $0x5c8] sm:$0xff]
                  %1028 = vst [vmem:[%s784 + $0x3c8] sm:$0xff] %v1027
                  %v1029 = vld [vmem:[%s783 + $0x5d0] sm:$0xff]
                  %1030 = vst [vmem:[%s784 + $0x3d0] sm:$0xff] %v1029
                  %v1031 = vld [vmem:[%s783 + $0x5d8] sm:$0xff]
                  %1032 = vst [vmem:[%s784 + $0x3d8] sm:$0xff] %v1031
                  %v1033 = vld [vmem:[%s783 + $0x5e0] sm:$0xff]
                  %1034 = vst [vmem:[%s784 + $0x3e0] sm:$0xff] %v1033
                  %v1035 = vld [vmem:[%s783 + $0x5e8] sm:$0xff]
                  %1036 = vst [vmem:[%s784 + $0x3e8] sm:$0xff] %v1035
                  %v1037 = vld [vmem:[%s783 + $0x5f0] sm:$0xff]
                  %1038 = vst [vmem:[%s784 + $0x3f0] sm:$0xff] %v1037
                  %v1039 = vld [vmem:[%s783 + $0x5f8] sm:$0xff]
                  %1040 = vst [vmem:[%s784 + $0x3f8] sm:$0xff] %v1039
                  %v1041 = vld [vmem:[%s783 + $0x800] sm:$0xff]
                  %1042 = vst [vmem:[%s784 + $0x400] sm:$0xff] %v1041
                  %v1043 = vld [vmem:[%s783 + $0x808] sm:$0xff]
                  %1044 = vst [vmem:[%s784 + $0x408] sm:$0xff] %v1043
                  %v1045 = vld [vmem:[%s783 + $0x810] sm:$0xff]
                  %1046 = vst [vmem:[%s784 + $0x410] sm:$0xff] %v1045
                  %v1047 = vld [vmem:[%s783 + $0x818] sm:$0xff]
                  %1048 = vst [vmem:[%s784 + $0x418] sm:$0xff] %v1047
                  %v1049 = vld [vmem:[%s783 + $0x820] sm:$0xff]
                  %1050 = vst [vmem:[%s784 + $0x420] sm:$0xff] %v1049
                  %v1051 = vld [vmem:[%s783 + $0x828] sm:$0xff]
                  %1052 = vst [vmem:[%s784 + $0x428] sm:$0xff] %v1051
                  %v1053 = vld [vmem:[%s783 + $0x830] sm:$0xff]
                  %1054 = vst [vmem:[%s784 + $0x430] sm:$0xff] %v1053
                  %v1055 = vld [vmem:[%s783 + $0x838] sm:$0xff]
                  %1056 = vst [vmem:[%s784 + $0x438] sm:$0xff] %v1055
                  %v1057 = vld [vmem:[%s783 + $0x840] sm:$0xff]
                  %1058 = vst [vmem:[%s784 + $0x440] sm:$0xff] %v1057
                  %v1059 = vld [vmem:[%s783 + $0x848] sm:$0xff]
                  %1060 = vst [vmem:[%s784 + $0x448] sm:$0xff] %v1059
                  %v1061 = vld [vmem:[%s783 + $0x850] sm:$0xff]
                  %1062 = vst [vmem:[%s784 + $0x450] sm:$0xff] %v1061
                  %v1063 = vld [vmem:[%s783 + $0x858] sm:$0xff]
                  %1064 = vst [vmem:[%s784 + $0x458] sm:$0xff] %v1063
                  %v1065 = vld [vmem:[%s783 + $0x860] sm:$0xff]
                  %1066 = vst [vmem:[%s784 + $0x460] sm:$0xff] %v1065
                  %v1067 = vld [vmem:[%s783 + $0x868] sm:$0xff]
                  %1068 = vst [vmem:[%s784 + $0x468] sm:$0xff] %v1067
                  %v1069 = vld [vmem:[%s783 + $0x870] sm:$0xff]
                  %1070 = vst [vmem:[%s784 + $0x470] sm:$0xff] %v1069
                  %v1071 = vld [vmem:[%s783 + $0x878] sm:$0xff]
                  %1072 = vst [vmem:[%s784 + $0x478] sm:$0xff] %v1071
                  %v1073 = vld [vmem:[%s783 + $0x880] sm:$0xff]
                  %1074 = vst [vmem:[%s784 + $0x480] sm:$0xff] %v1073
                  %v1075 = vld [vmem:[%s783 + $0x888] sm:$0xff]
                  %1076 = vst [vmem:[%s784 + $0x488] sm:$0xff] %v1075
                  %v1077 = vld [vmem:[%s783 + $0x890] sm:$0xff]
                  %1078 = vst [vmem:[%s784 + $0x490] sm:$0xff] %v1077
                  %v1079 = vld [vmem:[%s783 + $0x898] sm:$0xff]
                  %1080 = vst [vmem:[%s784 + $0x498] sm:$0xff] %v1079
                  %v1081 = vld [vmem:[%s783 + $0x8a0] sm:$0xff]
                  %1082 = vst [vmem:[%s784 + $0x4a0] sm:$0xff] %v1081
                  %v1083 = vld [vmem:[%s783 + $0x8a8] sm:$0xff]
                  %1084 = vst [vmem:[%s784 + $0x4a8] sm:$0xff] %v1083
                  %v1085 = vld [vmem:[%s783 + $0x8b0] sm:$0xff]
                  %1086 = vst [vmem:[%s784 + $0x4b0] sm:$0xff] %v1085
                  %v1087 = vld [vmem:[%s783 + $0x8b8] sm:$0xff]
                  %1088 = vst [vmem:[%s784 + $0x4b8] sm:$0xff] %v1087
                  %v1089 = vld [vmem:[%s783 + $0x8c0] sm:$0xff]
                  %1090 = vst [vmem:[%s784 + $0x4c0] sm:$0xff] %v1089
                  %v1091 = vld [vmem:[%s783 + $0x8c8] sm:$0xff]
                  %1092 = vst [vmem:[%s784 + $0x4c8] sm:$0xff] %v1091
                  %v1093 = vld [vmem:[%s783 + $0x8d0] sm:$0xff]
                  %1094 = vst [vmem:[%s784 + $0x4d0] sm:$0xff] %v1093
                  %v1095 = vld [vmem:[%s783 + $0x8d8] sm:$0xff]
                  %1096 = vst [vmem:[%s784 + $0x4d8] sm:$0xff] %v1095
                  %v1097 = vld [vmem:[%s783 + $0x8e0] sm:$0xff]
                  %1098 = vst [vmem:[%s784 + $0x4e0] sm:$0xff] %v1097
                  %v1099 = vld [vmem:[%s783 + $0x8e8] sm:$0xff]
                  %1100 = vst [vmem:[%s784 + $0x4e8] sm:$0xff] %v1099
                  %v1101 = vld [vmem:[%s783 + $0x8f0] sm:$0xff]
                  %1102 = vst [vmem:[%s784 + $0x4f0] sm:$0xff] %v1101
                  %v1103 = vld [vmem:[%s783 + $0x8f8] sm:$0xff]
                  %1104 = vst [vmem:[%s784 + $0x4f8] sm:$0xff] %v1103
                  %v1105 = vld [vmem:[%s783 + $0x900] sm:$0xff]
                  %1106 = vst [vmem:[%s784 + $0x500] sm:$0xff] %v1105
                  %v1107 = vld [vmem:[%s783 + $0x908] sm:$0xff]
                  %1108 = vst [vmem:[%s784 + $0x508] sm:$0xff] %v1107
                  %v1109 = vld [vmem:[%s783 + $0x910] sm:$0xff]
                  %1110 = vst [vmem:[%s784 + $0x510] sm:$0xff] %v1109
                  %v1111 = vld [vmem:[%s783 + $0x918] sm:$0xff]
                  %1112 = vst [vmem:[%s784 + $0x518] sm:$0xff] %v1111
                  %v1113 = vld [vmem:[%s783 + $0x920] sm:$0xff]
                  %1114 = vst [vmem:[%s784 + $0x520] sm:$0xff] %v1113
                  %v1115 = vld [vmem:[%s783 + $0x928] sm:$0xff]
                  %1116 = vst [vmem:[%s784 + $0x528] sm:$0xff] %v1115
                  %v1117 = vld [vmem:[%s783 + $0x930] sm:$0xff]
                  %1118 = vst [vmem:[%s784 + $0x530] sm:$0xff] %v1117
                  %v1119 = vld [vmem:[%s783 + $0x938] sm:$0xff]
                  %1120 = vst [vmem:[%s784 + $0x538] sm:$0xff] %v1119
                  %v1121 = vld [vmem:[%s783 + $0x940] sm:$0xff]
                  %1122 = vst [vmem:[%s784 + $0x540] sm:$0xff] %v1121
                  %v1123 = vld [vmem:[%s783 + $0x948] sm:$0xff]
                  %1124 = vst [vmem:[%s784 + $0x548] sm:$0xff] %v1123
                  %v1125 = vld [vmem:[%s783 + $0x950] sm:$0xff]
                  %1126 = vst [vmem:[%s784 + $0x550] sm:$0xff] %v1125
                  %v1127 = vld [vmem:[%s783 + $0x958] sm:$0xff]
                  %1128 = vst [vmem:[%s784 + $0x558] sm:$0xff] %v1127
                  %v1129 = vld [vmem:[%s783 + $0x960] sm:$0xff]
                  %1130 = vst [vmem:[%s784 + $0x560] sm:$0xff] %v1129
                  %v1131 = vld [vmem:[%s783 + $0x968] sm:$0xff]
                  %1132 = vst [vmem:[%s784 + $0x568] sm:$0xff] %v1131
                  %v1133 = vld [vmem:[%s783 + $0x970] sm:$0xff]
                  %1134 = vst [vmem:[%s784 + $0x570] sm:$0xff] %v1133
                  %v1135 = vld [vmem:[%s783 + $0x978] sm:$0xff]
                  %1136 = vst [vmem:[%s784 + $0x578] sm:$0xff] %v1135
                  %v1137 = vld [vmem:[%s783 + $0x980] sm:$0xff]
                  %1138 = vst [vmem:[%s784 + $0x580] sm:$0xff] %v1137
                  %v1139 = vld [vmem:[%s783 + $0x988] sm:$0xff]
                  %1140 = vst [vmem:[%s784 + $0x588] sm:$0xff] %v1139
                  %v1141 = vld [vmem:[%s783 + $0x990] sm:$0xff]
                  %1142 = vst [vmem:[%s784 + $0x590] sm:$0xff] %v1141
                  %v1143 = vld [vmem:[%s783 + $0x998] sm:$0xff]
                  %1144 = vst [vmem:[%s784 + $0x598] sm:$0xff] %v1143
                  %v1145 = vld [vmem:[%s783 + $0x9a0] sm:$0xff]
                  %1146 = vst [vmem:[%s784 + $0x5a0] sm:$0xff] %v1145
                  %v1147 = vld [vmem:[%s783 + $0x9a8] sm:$0xff]
                  %1148 = vst [vmem:[%s784 + $0x5a8] sm:$0xff] %v1147
                  %v1149 = vld [vmem:[%s783 + $0x9b0] sm:$0xff]
                  %1150 = vst [vmem:[%s784 + $0x5b0] sm:$0xff] %v1149
                  %v1151 = vld [vmem:[%s783 + $0x9b8] sm:$0xff]
                  %1152 = vst [vmem:[%s784 + $0x5b8] sm:$0xff] %v1151
                  %v1153 = vld [vmem:[%s783 + $0x9c0] sm:$0xff]
                  %1154 = vst [vmem:[%s784 + $0x5c0] sm:$0xff] %v1153
                  %v1155 = vld [vmem:[%s783 + $0x9c8] sm:$0xff]
                  %1156 = vst [vmem:[%s784 + $0x5c8] sm:$0xff] %v1155
                  %v1157 = vld [vmem:[%s783 + $0x9d0] sm:$0xff]
                  %1158 = vst [vmem:[%s784 + $0x5d0] sm:$0xff] %v1157
                  %v1159 = vld [vmem:[%s783 + $0x9d8] sm:$0xff]
                  %1160 = vst [vmem:[%s784 + $0x5d8] sm:$0xff] %v1159
                  %v1161 = vld [vmem:[%s783 + $0x9e0] sm:$0xff]
                  %1162 = vst [vmem:[%s784 + $0x5e0] sm:$0xff] %v1161
                  %v1163 = vld [vmem:[%s783 + $0x9e8] sm:$0xff]
                  %1164 = vst [vmem:[%s784 + $0x5e8] sm:$0xff] %v1163
                  %v1165 = vld [vmem:[%s783 + $0x9f0] sm:$0xff]
                  %1166 = vst [vmem:[%s784 + $0x5f0] sm:$0xff] %v1165
                  %v1167 = vld [vmem:[%s783 + $0x9f8] sm:$0xff]
                  %1168 = vst [vmem:[%s784 + $0x5f8] sm:$0xff] %v1167
                  %v1169 = vld [vmem:[%s783 + $0xc00] sm:$0xff]
                  %1170 = vst [vmem:[%s784 + $0x600] sm:$0xff] %v1169
                  %v1171 = vld [vmem:[%s783 + $0xc08] sm:$0xff]
                  %1172 = vst [vmem:[%s784 + $0x608] sm:$0xff] %v1171
                  %v1173 = vld [vmem:[%s783 + $0xc10] sm:$0xff]
                  %1174 = vst [vmem:[%s784 + $0x610] sm:$0xff] %v1173
                  %v1175 = vld [vmem:[%s783 + $0xc18] sm:$0xff]
                  %1176 = vst [vmem:[%s784 + $0x618] sm:$0xff] %v1175
                  %v1177 = vld [vmem:[%s783 + $0xc20] sm:$0xff]
                  %1178 = vst [vmem:[%s784 + $0x620] sm:$0xff] %v1177
                  %v1179 = vld [vmem:[%s783 + $0xc28] sm:$0xff]
                  %1180 = vst [vmem:[%s784 + $0x628] sm:$0xff] %v1179
                  %v1181 = vld [vmem:[%s783 + $0xc30] sm:$0xff]
                  %1182 = vst [vmem:[%s784 + $0x630] sm:$0xff] %v1181
                  %v1183 = vld [vmem:[%s783 + $0xc38] sm:$0xff]
                  %1184 = vst [vmem:[%s784 + $0x638] sm:$0xff] %v1183
                  %v1185 = vld [vmem:[%s783 + $0xc40] sm:$0xff]
                  %1186 = vst [vmem:[%s784 + $0x640] sm:$0xff] %v1185
                  %v1187 = vld [vmem:[%s783 + $0xc48] sm:$0xff]
                  %1188 = vst [vmem:[%s784 + $0x648] sm:$0xff] %v1187
                  %v1189 = vld [vmem:[%s783 + $0xc50] sm:$0xff]
                  %1190 = vst [vmem:[%s784 + $0x650] sm:$0xff] %v1189
                  %v1191 = vld [vmem:[%s783 + $0xc58] sm:$0xff]
                  %1192 = vst [vmem:[%s784 + $0x658] sm:$0xff] %v1191
                  %v1193 = vld [vmem:[%s783 + $0xc60] sm:$0xff]
                  %1194 = vst [vmem:[%s784 + $0x660] sm:$0xff] %v1193
                  %v1195 = vld [vmem:[%s783 + $0xc68] sm:$0xff]
                  %1196 = vst [vmem:[%s784 + $0x668] sm:$0xff] %v1195
                  %v1197 = vld [vmem:[%s783 + $0xc70] sm:$0xff]
                  %1198 = vst [vmem:[%s784 + $0x670] sm:$0xff] %v1197
                  %v1199 = vld [vmem:[%s783 + $0xc78] sm:$0xff]
                  %1200 = vst [vmem:[%s784 + $0x678] sm:$0xff] %v1199
                  %v1201 = vld [vmem:[%s783 + $0xc80] sm:$0xff]
                  %1202 = vst [vmem:[%s784 + $0x680] sm:$0xff] %v1201
                  %v1203 = vld [vmem:[%s783 + $0xc88] sm:$0xff]
                  %1204 = vst [vmem:[%s784 + $0x688] sm:$0xff] %v1203
                  %v1205 = vld [vmem:[%s783 + $0xc90] sm:$0xff]
                  %1206 = vst [vmem:[%s784 + $0x690] sm:$0xff] %v1205
                  %v1207 = vld [vmem:[%s783 + $0xc98] sm:$0xff]
                  %1208 = vst [vmem:[%s784 + $0x698] sm:$0xff] %v1207
                  %v1209 = vld [vmem:[%s783 + $0xca0] sm:$0xff]
                  %1210 = vst [vmem:[%s784 + $0x6a0] sm:$0xff] %v1209
                  %v1211 = vld [vmem:[%s783 + $0xca8] sm:$0xff]
                  %1212 = vst [vmem:[%s784 + $0x6a8] sm:$0xff] %v1211
                  %v1213 = vld [vmem:[%s783 + $0xcb0] sm:$0xff]
                  %1214 = vst [vmem:[%s784 + $0x6b0] sm:$0xff] %v1213
                  %v1215 = vld [vmem:[%s783 + $0xcb8] sm:$0xff]
                  %1216 = vst [vmem:[%s784 + $0x6b8] sm:$0xff] %v1215
                  %v1217 = vld [vmem:[%s783 + $0xcc0] sm:$0xff]
                  %1218 = vst [vmem:[%s784 + $0x6c0] sm:$0xff] %v1217
                  %v1219 = vld [vmem:[%s783 + $0xcc8] sm:$0xff]
                  %1220 = vst [vmem:[%s784 + $0x6c8] sm:$0xff] %v1219
                  %v1221 = vld [vmem:[%s783 + $0xcd0] sm:$0xff]
                  %1222 = vst [vmem:[%s784 + $0x6d0] sm:$0xff] %v1221
                  %v1223 = vld [vmem:[%s783 + $0xcd8] sm:$0xff]
                  %1224 = vst [vmem:[%s784 + $0x6d8] sm:$0xff] %v1223
                  %v1225 = vld [vmem:[%s783 + $0xce0] sm:$0xff]
                  %1226 = vst [vmem:[%s784 + $0x6e0] sm:$0xff] %v1225
                  %v1227 = vld [vmem:[%s783 + $0xce8] sm:$0xff]
                  %1228 = vst [vmem:[%s784 + $0x6e8] sm:$0xff] %v1227
                  %v1229 = vld [vmem:[%s783 + $0xcf0] sm:$0xff]
                  %1230 = vst [vmem:[%s784 + $0x6f0] sm:$0xff] %v1229
                  %v1231 = vld [vmem:[%s783 + $0xcf8] sm:$0xff]
                  %1232 = vst [vmem:[%s784 + $0x6f8] sm:$0xff] %v1231
                  %v1233 = vld [vmem:[%s783 + $0xd00] sm:$0xff]
                  %1234 = vst [vmem:[%s784 + $0x700] sm:$0xff] %v1233
                  %v1235 = vld [vmem:[%s783 + $0xd08] sm:$0xff]
                  %1236 = vst [vmem:[%s784 + $0x708] sm:$0xff] %v1235
                  %v1237 = vld [vmem:[%s783 + $0xd10] sm:$0xff]
                  %1238 = vst [vmem:[%s784 + $0x710] sm:$0xff] %v1237
                  %v1239 = vld [vmem:[%s783 + $0xd18] sm:$0xff]
                  %1240 = vst [vmem:[%s784 + $0x718] sm:$0xff] %v1239
                  %v1241 = vld [vmem:[%s783 + $0xd20] sm:$0xff]
                  %1242 = vst [vmem:[%s784 + $0x720] sm:$0xff] %v1241
                  %v1243 = vld [vmem:[%s783 + $0xd28] sm:$0xff]
                  %1244 = vst [vmem:[%s784 + $0x728] sm:$0xff] %v1243
                  %v1245 = vld [vmem:[%s783 + $0xd30] sm:$0xff]
                  %1246 = vst [vmem:[%s784 + $0x730] sm:$0xff] %v1245
                  %v1247 = vld [vmem:[%s783 + $0xd38] sm:$0xff]
                  %1248 = vst [vmem:[%s784 + $0x738] sm:$0xff] %v1247
                  %v1249 = vld [vmem:[%s783 + $0xd40] sm:$0xff]
                  %1250 = vst [vmem:[%s784 + $0x740] sm:$0xff] %v1249
                  %v1251 = vld [vmem:[%s783 + $0xd48] sm:$0xff]
                  %1252 = vst [vmem:[%s784 + $0x748] sm:$0xff] %v1251
                  %v1253 = vld [vmem:[%s783 + $0xd50] sm:$0xff]
                  %1254 = vst [vmem:[%s784 + $0x750] sm:$0xff] %v1253
                  %v1255 = vld [vmem:[%s783 + $0xd58] sm:$0xff]
                  %1256 = vst [vmem:[%s784 + $0x758] sm:$0xff] %v1255
                  %v1257 = vld [vmem:[%s783 + $0xd60] sm:$0xff]
                  %1258 = vst [vmem:[%s784 + $0x760] sm:$0xff] %v1257
                  %v1259 = vld [vmem:[%s783 + $0xd68] sm:$0xff]
                  %1260 = vst [vmem:[%s784 + $0x768] sm:$0xff] %v1259
                  %v1261 = vld [vmem:[%s783 + $0xd70] sm:$0xff]
                  %1262 = vst [vmem:[%s784 + $0x770] sm:$0xff] %v1261
                  %v1263 = vld [vmem:[%s783 + $0xd78] sm:$0xff]
                  %1264 = vst [vmem:[%s784 + $0x778] sm:$0xff] %v1263
                  %v1265 = vld [vmem:[%s783 + $0xd80] sm:$0xff]
                  %1266 = vst [vmem:[%s784 + $0x780] sm:$0xff] %v1265
                  %v1267 = vld [vmem:[%s783 + $0xd88] sm:$0xff]
                  %1268 = vst [vmem:[%s784 + $0x788] sm:$0xff] %v1267
                  %v1269 = vld [vmem:[%s783 + $0xd90] sm:$0xff]
                  %1270 = vst [vmem:[%s784 + $0x790] sm:$0xff] %v1269
                  %v1271 = vld [vmem:[%s783 + $0xd98] sm:$0xff]
                  %1272 = vst [vmem:[%s784 + $0x798] sm:$0xff] %v1271
                  %v1273 = vld [vmem:[%s783 + $0xda0] sm:$0xff]
                  %1274 = vst [vmem:[%s784 + $0x7a0] sm:$0xff] %v1273
                  %v1275 = vld [vmem:[%s783 + $0xda8] sm:$0xff]
                  %1276 = vst [vmem:[%s784 + $0x7a8] sm:$0xff] %v1275
                  %v1277 = vld [vmem:[%s783 + $0xdb0] sm:$0xff]
                  %1278 = vst [vmem:[%s784 + $0x7b0] sm:$0xff] %v1277
                  %v1279 = vld [vmem:[%s783 + $0xdb8] sm:$0xff]
                  %1280 = vst [vmem:[%s784 + $0x7b8] sm:$0xff] %v1279
                  %v1281 = vld [vmem:[%s783 + $0xdc0] sm:$0xff]
                  %1282 = vst [vmem:[%s784 + $0x7c0] sm:$0xff] %v1281
                  %v1283 = vld [vmem:[%s783 + $0xdc8] sm:$0xff]
                  %1284 = vst [vmem:[%s784 + $0x7c8] sm:$0xff] %v1283
                  %v1285 = vld [vmem:[%s783 + $0xdd0] sm:$0xff]
                  %1286 = vst [vmem:[%s784 + $0x7d0] sm:$0xff] %v1285
                  %v1287 = vld [vmem:[%s783 + $0xdd8] sm:$0xff]
                  %1288 = vst [vmem:[%s784 + $0x7d8] sm:$0xff] %v1287
                  %v1289 = vld [vmem:[%s783 + $0xde0] sm:$0xff]
                  %1290 = vst [vmem:[%s784 + $0x7e0] sm:$0xff] %v1289
                  %v1291 = vld [vmem:[%s783 + $0xde8] sm:$0xff]
                  %1292 = vst [vmem:[%s784 + $0x7e8] sm:$0xff] %v1291
                  %v1293 = vld [vmem:[%s783 + $0xdf0] sm:$0xff]
                  %1294 = vst [vmem:[%s784 + $0x7f0] sm:$0xff] %v1293
                  %v1295 = vld [vmem:[%s783 + $0xdf8] sm:$0xff]
                  %1296 = vst [vmem:[%s784 + $0x7f8] sm:$0xff] %v1295
                $region68: #{network_cuong_forward.1} parent=62 // loop_footer
                  %s782 = sadd.s32 1, %s778
                $region69: #{network_cuong_forward.1} parent=62 // loop_footer_branch
                  %777 = sbr.rel target = $region65
                $region70: #{network_cuong_forward.1} parent=62 // loop_exit
                  _
              $region63: #{network_cuong_forward.1} parent=47 // pred_fallthru
                _
              // Predicated region
              $region71: #{network_cuong_forward.1} parent=47 // pred_check
                _
              $region72: #{network_cuong_forward.1} parent=47 // pred_check_branch
                %1298 = sbr.rel target = $region74
              $region73: #{network_cuong_forward.1} parent=47 // pred_region
                _
              $region74: #{network_cuong_forward.1} parent=47 // pred_fallthru
                _
            $region48: #{network_cuong_forward.1} parent=43 // pred_fallthru
              _
            // Predicated region
            $region49: #{network_cuong_forward.1} parent=43 // pred_check
              _
            $region50: #{network_cuong_forward.1} parent=43 // pred_check_branch
              %253 = sbr.rel target = $region52
            $region51: #{network_cuong_forward.1} parent=43 // pred_region
              loop: start=0, step=1, limit=1
              $region53: #{network_cuong_forward.1} parent=51 // loop_pre_header
                _
              $region54: #{network_cuong_forward.1} parent=51 // loop_header
                %s256 = sphi 0, %s260
                %p257 = scmp.ge.s32.totalorder %s256, 1
                %s261 = sphi %s247, %s247
                %s262 = sphi %s243, %s243
              $region55: #{network_cuong_forward.1} parent=51 // loop_header_branch
                %259 = sbr.rel (%p257) target = $region59
              $region56: #{network_cuong_forward.1} parent=51 // loop_body
                %v263 = vld [vmem:[%s261] sm:$0xff]
                %264 = vst [vmem:[%s262] sm:$0xff] %v263
                %v265 = vld [vmem:[%s261 + $0x8] sm:$0xff]
                %266 = vst [vmem:[%s262 + $0x8] sm:$0xff] %v265
                %v267 = vld [vmem:[%s261 + $0x10] sm:$0xff]
                %268 = vst [vmem:[%s262 + $0x10] sm:$0xff] %v267
                %v269 = vld [vmem:[%s261 + $0x18] sm:$0xff]
                %270 = vst [vmem:[%s262 + $0x18] sm:$0xff] %v269
                %v271 = vld [vmem:[%s261 + $0x20] sm:$0xff]
                %272 = vst [vmem:[%s262 + $0x20] sm:$0xff] %v271
                %v273 = vld [vmem:[%s261 + $0x28] sm:$0xff]
                %274 = vst [vmem:[%s262 + $0x28] sm:$0xff] %v273
                %v275 = vld [vmem:[%s261 + $0x30] sm:$0xff]
                %276 = vst [vmem:[%s262 + $0x30] sm:$0xff] %v275
                %v277 = vld [vmem:[%s261 + $0x38] sm:$0xff]
                %278 = vst [vmem:[%s262 + $0x38] sm:$0xff] %v277
                %v279 = vld [vmem:[%s261 + $0x40] sm:$0xff]
                %280 = vst [vmem:[%s262 + $0x40] sm:$0xff] %v279
                %v281 = vld [vmem:[%s261 + $0x48] sm:$0xff]
                %282 = vst [vmem:[%s262 + $0x48] sm:$0xff] %v281
                %v283 = vld [vmem:[%s261 + $0x50] sm:$0xff]
                %284 = vst [vmem:[%s262 + $0x50] sm:$0xff] %v283
                %v285 = vld [vmem:[%s261 + $0x58] sm:$0xff]
                %286 = vst [vmem:[%s262 + $0x58] sm:$0xff] %v285
                %v287 = vld [vmem:[%s261 + $0x60] sm:$0xff]
                %288 = vst [vmem:[%s262 + $0x60] sm:$0xff] %v287
                %v289 = vld [vmem:[%s261 + $0x68] sm:$0xff]
                %290 = vst [vmem:[%s262 + $0x68] sm:$0xff] %v289
                %v291 = vld [vmem:[%s261 + $0x70] sm:$0xff]
                %292 = vst [vmem:[%s262 + $0x70] sm:$0xff] %v291
                %v293 = vld [vmem:[%s261 + $0x78] sm:$0xff]
                %294 = vst [vmem:[%s262 + $0x78] sm:$0xff] %v293
                %v295 = vld [vmem:[%s261 + $0x80] sm:$0xff]
                %296 = vst [vmem:[%s262 + $0x80] sm:$0xff] %v295
                %v297 = vld [vmem:[%s261 + $0x88] sm:$0xff]
                %298 = vst [vmem:[%s262 + $0x88] sm:$0xff] %v297
                %v299 = vld [vmem:[%s261 + $0x90] sm:$0xff]
                %300 = vst [vmem:[%s262 + $0x90] sm:$0xff] %v299
                %v301 = vld [vmem:[%s261 + $0x98] sm:$0xff]
                %302 = vst [vmem:[%s262 + $0x98] sm:$0xff] %v301
                %v303 = vld [vmem:[%s261 + $0xa0] sm:$0xff]
                %304 = vst [vmem:[%s262 + $0xa0] sm:$0xff] %v303
                %v305 = vld [vmem:[%s261 + $0xa8] sm:$0xff]
                %306 = vst [vmem:[%s262 + $0xa8] sm:$0xff] %v305
                %v307 = vld [vmem:[%s261 + $0xb0] sm:$0xff]
                %308 = vst [vmem:[%s262 + $0xb0] sm:$0xff] %v307
                %v309 = vld [vmem:[%s261 + $0xb8] sm:$0xff]
                %310 = vst [vmem:[%s262 + $0xb8] sm:$0xff] %v309
                %v311 = vld [vmem:[%s261 + $0xc0] sm:$0xff]
                %312 = vst [vmem:[%s262 + $0xc0] sm:$0xff] %v311
                %v313 = vld [vmem:[%s261 + $0xc8] sm:$0xff]
                %314 = vst [vmem:[%s262 + $0xc8] sm:$0xff] %v313
                %v315 = vld [vmem:[%s261 + $0xd0] sm:$0xff]
                %316 = vst [vmem:[%s262 + $0xd0] sm:$0xff] %v315
                %v317 = vld [vmem:[%s261 + $0xd8] sm:$0xff]
                %318 = vst [vmem:[%s262 + $0xd8] sm:$0xff] %v317
                %v319 = vld [vmem:[%s261 + $0xe0] sm:$0xff]
                %320 = vst [vmem:[%s262 + $0xe0] sm:$0xff] %v319
                %v321 = vld [vmem:[%s261 + $0xe8] sm:$0xff]
                %322 = vst [vmem:[%s262 + $0xe8] sm:$0xff] %v321
                %v323 = vld [vmem:[%s261 + $0xf0] sm:$0xff]
                %324 = vst [vmem:[%s262 + $0xf0] sm:$0xff] %v323
                %v325 = vld [vmem:[%s261 + $0xf8] sm:$0xff]
                %326 = vst [vmem:[%s262 + $0xf8] sm:$0xff] %v325
                %v327 = vld [vmem:[%s261 + $0x100] sm:$0xff]
                %328 = vst [vmem:[%s262 + $0x100] sm:$0xff] %v327
                %v329 = vld [vmem:[%s261 + $0x108] sm:$0xff]
                %330 = vst [vmem:[%s262 + $0x108] sm:$0xff] %v329
                %v331 = vld [vmem:[%s261 + $0x110] sm:$0xff]
                %332 = vst [vmem:[%s262 + $0x110] sm:$0xff] %v331
                %v333 = vld [vmem:[%s261 + $0x118] sm:$0xff]
                %334 = vst [vmem:[%s262 + $0x118] sm:$0xff] %v333
                %v335 = vld [vmem:[%s261 + $0x120] sm:$0xff]
                %336 = vst [vmem:[%s262 + $0x120] sm:$0xff] %v335
                %v337 = vld [vmem:[%s261 + $0x128] sm:$0xff]
                %338 = vst [vmem:[%s262 + $0x128] sm:$0xff] %v337
                %v339 = vld [vmem:[%s261 + $0x130] sm:$0xff]
                %340 = vst [vmem:[%s262 + $0x130] sm:$0xff] %v339
                %v341 = vld [vmem:[%s261 + $0x138] sm:$0xff]
                %342 = vst [vmem:[%s262 + $0x138] sm:$0xff] %v341
                %v343 = vld [vmem:[%s261 + $0x140] sm:$0xff]
                %344 = vst [vmem:[%s262 + $0x140] sm:$0xff] %v343
                %v345 = vld [vmem:[%s261 + $0x148] sm:$0xff]
                %346 = vst [vmem:[%s262 + $0x148] sm:$0xff] %v345
                %v347 = vld [vmem:[%s261 + $0x150] sm:$0xff]
                %348 = vst [vmem:[%s262 + $0x150] sm:$0xff] %v347
                %v349 = vld [vmem:[%s261 + $0x158] sm:$0xff]
                %350 = vst [vmem:[%s262 + $0x158] sm:$0xff] %v349
                %v351 = vld [vmem:[%s261 + $0x160] sm:$0xff]
                %352 = vst [vmem:[%s262 + $0x160] sm:$0xff] %v351
                %v353 = vld [vmem:[%s261 + $0x168] sm:$0xff]
                %354 = vst [vmem:[%s262 + $0x168] sm:$0xff] %v353
                %v355 = vld [vmem:[%s261 + $0x170] sm:$0xff]
                %356 = vst [vmem:[%s262 + $0x170] sm:$0xff] %v355
                %v357 = vld [vmem:[%s261 + $0x178] sm:$0xff]
                %358 = vst [vmem:[%s262 + $0x178] sm:$0xff] %v357
                %v359 = vld [vmem:[%s261 + $0x180] sm:$0xff]
                %360 = vst [vmem:[%s262 + $0x180] sm:$0xff] %v359
                %v361 = vld [vmem:[%s261 + $0x188] sm:$0xff]
                %362 = vst [vmem:[%s262 + $0x188] sm:$0xff] %v361
                %v363 = vld [vmem:[%s261 + $0x190] sm:$0xff]
                %364 = vst [vmem:[%s262 + $0x190] sm:$0xff] %v363
                %v365 = vld [vmem:[%s261 + $0x198] sm:$0xff]
                %366 = vst [vmem:[%s262 + $0x198] sm:$0xff] %v365
                %v367 = vld [vmem:[%s261 + $0x1a0] sm:$0xff]
                %368 = vst [vmem:[%s262 + $0x1a0] sm:$0xff] %v367
                %v369 = vld [vmem:[%s261 + $0x1a8] sm:$0xff]
                %370 = vst [vmem:[%s262 + $0x1a8] sm:$0xff] %v369
                %v371 = vld [vmem:[%s261 + $0x1b0] sm:$0xff]
                %372 = vst [vmem:[%s262 + $0x1b0] sm:$0xff] %v371
                %v373 = vld [vmem:[%s261 + $0x1b8] sm:$0xff]
                %374 = vst [vmem:[%s262 + $0x1b8] sm:$0xff] %v373
                %v375 = vld [vmem:[%s261 + $0x1c0] sm:$0xff]
                %376 = vst [vmem:[%s262 + $0x1c0] sm:$0xff] %v375
                %v377 = vld [vmem:[%s261 + $0x1c8] sm:$0xff]
                %378 = vst [vmem:[%s262 + $0x1c8] sm:$0xff] %v377
                %v379 = vld [vmem:[%s261 + $0x1d0] sm:$0xff]
                %380 = vst [vmem:[%s262 + $0x1d0] sm:$0xff] %v379
                %v381 = vld [vmem:[%s261 + $0x1d8] sm:$0xff]
                %382 = vst [vmem:[%s262 + $0x1d8] sm:$0xff] %v381
                %v383 = vld [vmem:[%s261 + $0x1e0] sm:$0xff]
                %384 = vst [vmem:[%s262 + $0x1e0] sm:$0xff] %v383
                %v385 = vld [vmem:[%s261 + $0x1e8] sm:$0xff]
                %386 = vst [vmem:[%s262 + $0x1e8] sm:$0xff] %v385
                %v387 = vld [vmem:[%s261 + $0x1f0] sm:$0xff]
                %388 = vst [vmem:[%s262 + $0x1f0] sm:$0xff] %v387
                %v389 = vld [vmem:[%s261 + $0x1f8] sm:$0xff]
                %390 = vst [vmem:[%s262 + $0x1f8] sm:$0xff] %v389
                %v391 = vld [vmem:[%s261 + $0x400] sm:$0xff]
                %392 = vst [vmem:[%s262 + $0x200] sm:$0xff] %v391
                %v393 = vld [vmem:[%s261 + $0x408] sm:$0xff]
                %394 = vst [vmem:[%s262 + $0x208] sm:$0xff] %v393
                %v395 = vld [vmem:[%s261 + $0x410] sm:$0xff]
                %396 = vst [vmem:[%s262 + $0x210] sm:$0xff] %v395
                %v397 = vld [vmem:[%s261 + $0x418] sm:$0xff]
                %398 = vst [vmem:[%s262 + $0x218] sm:$0xff] %v397
                %v399 = vld [vmem:[%s261 + $0x420] sm:$0xff]
                %400 = vst [vmem:[%s262 + $0x220] sm:$0xff] %v399
                %v401 = vld [vmem:[%s261 + $0x428] sm:$0xff]
                %402 = vst [vmem:[%s262 + $0x228] sm:$0xff] %v401
                %v403 = vld [vmem:[%s261 + $0x430] sm:$0xff]
                %404 = vst [vmem:[%s262 + $0x230] sm:$0xff] %v403
                %v405 = vld [vmem:[%s261 + $0x438] sm:$0xff]
                %406 = vst [vmem:[%s262 + $0x238] sm:$0xff] %v405
                %v407 = vld [vmem:[%s261 + $0x440] sm:$0xff]
                %408 = vst [vmem:[%s262 + $0x240] sm:$0xff] %v407
                %v409 = vld [vmem:[%s261 + $0x448] sm:$0xff]
                %410 = vst [vmem:[%s262 + $0x248] sm:$0xff] %v409
                %v411 = vld [vmem:[%s261 + $0x450] sm:$0xff]
                %412 = vst [vmem:[%s262 + $0x250] sm:$0xff] %v411
                %v413 = vld [vmem:[%s261 + $0x458] sm:$0xff]
                %414 = vst [vmem:[%s262 + $0x258] sm:$0xff] %v413
                %v415 = vld [vmem:[%s261 + $0x460] sm:$0xff]
                %416 = vst [vmem:[%s262 + $0x260] sm:$0xff] %v415
                %v417 = vld [vmem:[%s261 + $0x468] sm:$0xff]
                %418 = vst [vmem:[%s262 + $0x268] sm:$0xff] %v417
                %v419 = vld [vmem:[%s261 + $0x470] sm:$0xff]
                %420 = vst [vmem:[%s262 + $0x270] sm:$0xff] %v419
                %v421 = vld [vmem:[%s261 + $0x478] sm:$0xff]
                %422 = vst [vmem:[%s262 + $0x278] sm:$0xff] %v421
                %v423 = vld [vmem:[%s261 + $0x480] sm:$0xff]
                %424 = vst [vmem:[%s262 + $0x280] sm:$0xff] %v423
                %v425 = vld [vmem:[%s261 + $0x488] sm:$0xff]
                %426 = vst [vmem:[%s262 + $0x288] sm:$0xff] %v425
                %v427 = vld [vmem:[%s261 + $0x490] sm:$0xff]
                %428 = vst [vmem:[%s262 + $0x290] sm:$0xff] %v427
                %v429 = vld [vmem:[%s261 + $0x498] sm:$0xff]
                %430 = vst [vmem:[%s262 + $0x298] sm:$0xff] %v429
                %v431 = vld [vmem:[%s261 + $0x4a0] sm:$0xff]
                %432 = vst [vmem:[%s262 + $0x2a0] sm:$0xff] %v431
                %v433 = vld [vmem:[%s261 + $0x4a8] sm:$0xff]
                %434 = vst [vmem:[%s262 + $0x2a8] sm:$0xff] %v433
                %v435 = vld [vmem:[%s261 + $0x4b0] sm:$0xff]
                %436 = vst [vmem:[%s262 + $0x2b0] sm:$0xff] %v435
                %v437 = vld [vmem:[%s261 + $0x4b8] sm:$0xff]
                %438 = vst [vmem:[%s262 + $0x2b8] sm:$0xff] %v437
                %v439 = vld [vmem:[%s261 + $0x4c0] sm:$0xff]
                %440 = vst [vmem:[%s262 + $0x2c0] sm:$0xff] %v439
                %v441 = vld [vmem:[%s261 + $0x4c8] sm:$0xff]
                %442 = vst [vmem:[%s262 + $0x2c8] sm:$0xff] %v441
                %v443 = vld [vmem:[%s261 + $0x4d0] sm:$0xff]
                %444 = vst [vmem:[%s262 + $0x2d0] sm:$0xff] %v443
                %v445 = vld [vmem:[%s261 + $0x4d8] sm:$0xff]
                %446 = vst [vmem:[%s262 + $0x2d8] sm:$0xff] %v445
                %v447 = vld [vmem:[%s261 + $0x4e0] sm:$0xff]
                %448 = vst [vmem:[%s262 + $0x2e0] sm:$0xff] %v447
                %v449 = vld [vmem:[%s261 + $0x4e8] sm:$0xff]
                %450 = vst [vmem:[%s262 + $0x2e8] sm:$0xff] %v449
                %v451 = vld [vmem:[%s261 + $0x4f0] sm:$0xff]
                %452 = vst [vmem:[%s262 + $0x2f0] sm:$0xff] %v451
                %v453 = vld [vmem:[%s261 + $0x4f8] sm:$0xff]
                %454 = vst [vmem:[%s262 + $0x2f8] sm:$0xff] %v453
                %v455 = vld [vmem:[%s261 + $0x500] sm:$0xff]
                %456 = vst [vmem:[%s262 + $0x300] sm:$0xff] %v455
                %v457 = vld [vmem:[%s261 + $0x508] sm:$0xff]
                %458 = vst [vmem:[%s262 + $0x308] sm:$0xff] %v457
                %v459 = vld [vmem:[%s261 + $0x510] sm:$0xff]
                %460 = vst [vmem:[%s262 + $0x310] sm:$0xff] %v459
                %v461 = vld [vmem:[%s261 + $0x518] sm:$0xff]
                %462 = vst [vmem:[%s262 + $0x318] sm:$0xff] %v461
                %v463 = vld [vmem:[%s261 + $0x520] sm:$0xff]
                %464 = vst [vmem:[%s262 + $0x320] sm:$0xff] %v463
                %v465 = vld [vmem:[%s261 + $0x528] sm:$0xff]
                %466 = vst [vmem:[%s262 + $0x328] sm:$0xff] %v465
                %v467 = vld [vmem:[%s261 + $0x530] sm:$0xff]
                %468 = vst [vmem:[%s262 + $0x330] sm:$0xff] %v467
                %v469 = vld [vmem:[%s261 + $0x538] sm:$0xff]
                %470 = vst [vmem:[%s262 + $0x338] sm:$0xff] %v469
                %v471 = vld [vmem:[%s261 + $0x540] sm:$0xff]
                %472 = vst [vmem:[%s262 + $0x340] sm:$0xff] %v471
                %v473 = vld [vmem:[%s261 + $0x548] sm:$0xff]
                %474 = vst [vmem:[%s262 + $0x348] sm:$0xff] %v473
                %v475 = vld [vmem:[%s261 + $0x550] sm:$0xff]
                %476 = vst [vmem:[%s262 + $0x350] sm:$0xff] %v475
                %v477 = vld [vmem:[%s261 + $0x558] sm:$0xff]
                %478 = vst [vmem:[%s262 + $0x358] sm:$0xff] %v477
                %v479 = vld [vmem:[%s261 + $0x560] sm:$0xff]
                %480 = vst [vmem:[%s262 + $0x360] sm:$0xff] %v479
                %v481 = vld [vmem:[%s261 + $0x568] sm:$0xff]
                %482 = vst [vmem:[%s262 + $0x368] sm:$0xff] %v481
                %v483 = vld [vmem:[%s261 + $0x570] sm:$0xff]
                %484 = vst [vmem:[%s262 + $0x370] sm:$0xff] %v483
                %v485 = vld [vmem:[%s261 + $0x578] sm:$0xff]
                %486 = vst [vmem:[%s262 + $0x378] sm:$0xff] %v485
                %v487 = vld [vmem:[%s261 + $0x580] sm:$0xff]
                %488 = vst [vmem:[%s262 + $0x380] sm:$0xff] %v487
                %v489 = vld [vmem:[%s261 + $0x588] sm:$0xff]
                %490 = vst [vmem:[%s262 + $0x388] sm:$0xff] %v489
                %v491 = vld [vmem:[%s261 + $0x590] sm:$0xff]
                %492 = vst [vmem:[%s262 + $0x390] sm:$0xff] %v491
                %v493 = vld [vmem:[%s261 + $0x598] sm:$0xff]
                %494 = vst [vmem:[%s262 + $0x398] sm:$0xff] %v493
                %v495 = vld [vmem:[%s261 + $0x5a0] sm:$0xff]
                %496 = vst [vmem:[%s262 + $0x3a0] sm:$0xff] %v495
                %v497 = vld [vmem:[%s261 + $0x5a8] sm:$0xff]
                %498 = vst [vmem:[%s262 + $0x3a8] sm:$0xff] %v497
                %v499 = vld [vmem:[%s261 + $0x5b0] sm:$0xff]
                %500 = vst [vmem:[%s262 + $0x3b0] sm:$0xff] %v499
                %v501 = vld [vmem:[%s261 + $0x5b8] sm:$0xff]
                %502 = vst [vmem:[%s262 + $0x3b8] sm:$0xff] %v501
                %v503 = vld [vmem:[%s261 + $0x5c0] sm:$0xff]
                %504 = vst [vmem:[%s262 + $0x3c0] sm:$0xff] %v503
                %v505 = vld [vmem:[%s261 + $0x5c8] sm:$0xff]
                %506 = vst [vmem:[%s262 + $0x3c8] sm:$0xff] %v505
                %v507 = vld [vmem:[%s261 + $0x5d0] sm:$0xff]
                %508 = vst [vmem:[%s262 + $0x3d0] sm:$0xff] %v507
                %v509 = vld [vmem:[%s261 + $0x5d8] sm:$0xff]
                %510 = vst [vmem:[%s262 + $0x3d8] sm:$0xff] %v509
                %v511 = vld [vmem:[%s261 + $0x5e0] sm:$0xff]
                %512 = vst [vmem:[%s262 + $0x3e0] sm:$0xff] %v511
                %v513 = vld [vmem:[%s261 + $0x5e8] sm:$0xff]
                %514 = vst [vmem:[%s262 + $0x3e8] sm:$0xff] %v513
                %v515 = vld [vmem:[%s261 + $0x5f0] sm:$0xff]
                %516 = vst [vmem:[%s262 + $0x3f0] sm:$0xff] %v515
                %v517 = vld [vmem:[%s261 + $0x5f8] sm:$0xff]
                %518 = vst [vmem:[%s262 + $0x3f8] sm:$0xff] %v517
                %v519 = vld [vmem:[%s261 + $0x800] sm:$0xff]
                %520 = vst [vmem:[%s262 + $0x400] sm:$0xff] %v519
                %v521 = vld [vmem:[%s261 + $0x808] sm:$0xff]
                %522 = vst [vmem:[%s262 + $0x408] sm:$0xff] %v521
                %v523 = vld [vmem:[%s261 + $0x810] sm:$0xff]
                %524 = vst [vmem:[%s262 + $0x410] sm:$0xff] %v523
                %v525 = vld [vmem:[%s261 + $0x818] sm:$0xff]
                %526 = vst [vmem:[%s262 + $0x418] sm:$0xff] %v525
                %v527 = vld [vmem:[%s261 + $0x820] sm:$0xff]
                %528 = vst [vmem:[%s262 + $0x420] sm:$0xff] %v527
                %v529 = vld [vmem:[%s261 + $0x828] sm:$0xff]
                %530 = vst [vmem:[%s262 + $0x428] sm:$0xff] %v529
                %v531 = vld [vmem:[%s261 + $0x830] sm:$0xff]
                %532 = vst [vmem:[%s262 + $0x430] sm:$0xff] %v531
                %v533 = vld [vmem:[%s261 + $0x838] sm:$0xff]
                %534 = vst [vmem:[%s262 + $0x438] sm:$0xff] %v533
                %v535 = vld [vmem:[%s261 + $0x840] sm:$0xff]
                %536 = vst [vmem:[%s262 + $0x440] sm:$0xff] %v535
                %v537 = vld [vmem:[%s261 + $0x848] sm:$0xff]
                %538 = vst [vmem:[%s262 + $0x448] sm:$0xff] %v537
                %v539 = vld [vmem:[%s261 + $0x850] sm:$0xff]
                %540 = vst [vmem:[%s262 + $0x450] sm:$0xff] %v539
                %v541 = vld [vmem:[%s261 + $0x858] sm:$0xff]
                %542 = vst [vmem:[%s262 + $0x458] sm:$0xff] %v541
                %v543 = vld [vmem:[%s261 + $0x860] sm:$0xff]
                %544 = vst [vmem:[%s262 + $0x460] sm:$0xff] %v543
                %v545 = vld [vmem:[%s261 + $0x868] sm:$0xff]
                %546 = vst [vmem:[%s262 + $0x468] sm:$0xff] %v545
                %v547 = vld [vmem:[%s261 + $0x870] sm:$0xff]
                %548 = vst [vmem:[%s262 + $0x470] sm:$0xff] %v547
                %v549 = vld [vmem:[%s261 + $0x878] sm:$0xff]
                %550 = vst [vmem:[%s262 + $0x478] sm:$0xff] %v549
                %v551 = vld [vmem:[%s261 + $0x880] sm:$0xff]
                %552 = vst [vmem:[%s262 + $0x480] sm:$0xff] %v551
                %v553 = vld [vmem:[%s261 + $0x888] sm:$0xff]
                %554 = vst [vmem:[%s262 + $0x488] sm:$0xff] %v553
                %v555 = vld [vmem:[%s261 + $0x890] sm:$0xff]
                %556 = vst [vmem:[%s262 + $0x490] sm:$0xff] %v555
                %v557 = vld [vmem:[%s261 + $0x898] sm:$0xff]
                %558 = vst [vmem:[%s262 + $0x498] sm:$0xff] %v557
                %v559 = vld [vmem:[%s261 + $0x8a0] sm:$0xff]
                %560 = vst [vmem:[%s262 + $0x4a0] sm:$0xff] %v559
                %v561 = vld [vmem:[%s261 + $0x8a8] sm:$0xff]
                %562 = vst [vmem:[%s262 + $0x4a8] sm:$0xff] %v561
                %v563 = vld [vmem:[%s261 + $0x8b0] sm:$0xff]
                %564 = vst [vmem:[%s262 + $0x4b0] sm:$0xff] %v563
                %v565 = vld [vmem:[%s261 + $0x8b8] sm:$0xff]
                %566 = vst [vmem:[%s262 + $0x4b8] sm:$0xff] %v565
                %v567 = vld [vmem:[%s261 + $0x8c0] sm:$0xff]
                %568 = vst [vmem:[%s262 + $0x4c0] sm:$0xff] %v567
                %v569 = vld [vmem:[%s261 + $0x8c8] sm:$0xff]
                %570 = vst [vmem:[%s262 + $0x4c8] sm:$0xff] %v569
                %v571 = vld [vmem:[%s261 + $0x8d0] sm:$0xff]
                %572 = vst [vmem:[%s262 + $0x4d0] sm:$0xff] %v571
                %v573 = vld [vmem:[%s261 + $0x8d8] sm:$0xff]
                %574 = vst [vmem:[%s262 + $0x4d8] sm:$0xff] %v573
                %v575 = vld [vmem:[%s261 + $0x8e0] sm:$0xff]
                %576 = vst [vmem:[%s262 + $0x4e0] sm:$0xff] %v575
                %v577 = vld [vmem:[%s261 + $0x8e8] sm:$0xff]
                %578 = vst [vmem:[%s262 + $0x4e8] sm:$0xff] %v577
                %v579 = vld [vmem:[%s261 + $0x8f0] sm:$0xff]
                %580 = vst [vmem:[%s262 + $0x4f0] sm:$0xff] %v579
                %v581 = vld [vmem:[%s261 + $0x8f8] sm:$0xff]
                %582 = vst [vmem:[%s262 + $0x4f8] sm:$0xff] %v581
                %v583 = vld [vmem:[%s261 + $0x900] sm:$0xff]
                %584 = vst [vmem:[%s262 + $0x500] sm:$0xff] %v583
                %v585 = vld [vmem:[%s261 + $0x908] sm:$0xff]
                %586 = vst [vmem:[%s262 + $0x508] sm:$0xff] %v585
                %v587 = vld [vmem:[%s261 + $0x910] sm:$0xff]
                %588 = vst [vmem:[%s262 + $0x510] sm:$0xff] %v587
                %v589 = vld [vmem:[%s261 + $0x918] sm:$0xff]
                %590 = vst [vmem:[%s262 + $0x518] sm:$0xff] %v589
                %v591 = vld [vmem:[%s261 + $0x920] sm:$0xff]
                %592 = vst [vmem:[%s262 + $0x520] sm:$0xff] %v591
                %v593 = vld [vmem:[%s261 + $0x928] sm:$0xff]
                %594 = vst [vmem:[%s262 + $0x528] sm:$0xff] %v593
                %v595 = vld [vmem:[%s261 + $0x930] sm:$0xff]
                %596 = vst [vmem:[%s262 + $0x530] sm:$0xff] %v595
                %v597 = vld [vmem:[%s261 + $0x938] sm:$0xff]
                %598 = vst [vmem:[%s262 + $0x538] sm:$0xff] %v597
                %v599 = vld [vmem:[%s261 + $0x940] sm:$0xff]
                %600 = vst [vmem:[%s262 + $0x540] sm:$0xff] %v599
                %v601 = vld [vmem:[%s261 + $0x948] sm:$0xff]
                %602 = vst [vmem:[%s262 + $0x548] sm:$0xff] %v601
                %v603 = vld [vmem:[%s261 + $0x950] sm:$0xff]
                %604 = vst [vmem:[%s262 + $0x550] sm:$0xff] %v603
                %v605 = vld [vmem:[%s261 + $0x958] sm:$0xff]
                %606 = vst [vmem:[%s262 + $0x558] sm:$0xff] %v605
                %v607 = vld [vmem:[%s261 + $0x960] sm:$0xff]
                %608 = vst [vmem:[%s262 + $0x560] sm:$0xff] %v607
                %v609 = vld [vmem:[%s261 + $0x968] sm:$0xff]
                %610 = vst [vmem:[%s262 + $0x568] sm:$0xff] %v609
                %v611 = vld [vmem:[%s261 + $0x970] sm:$0xff]
                %612 = vst [vmem:[%s262 + $0x570] sm:$0xff] %v611
                %v613 = vld [vmem:[%s261 + $0x978] sm:$0xff]
                %614 = vst [vmem:[%s262 + $0x578] sm:$0xff] %v613
                %v615 = vld [vmem:[%s261 + $0x980] sm:$0xff]
                %616 = vst [vmem:[%s262 + $0x580] sm:$0xff] %v615
                %v617 = vld [vmem:[%s261 + $0x988] sm:$0xff]
                %618 = vst [vmem:[%s262 + $0x588] sm:$0xff] %v617
                %v619 = vld [vmem:[%s261 + $0x990] sm:$0xff]
                %620 = vst [vmem:[%s262 + $0x590] sm:$0xff] %v619
                %v621 = vld [vmem:[%s261 + $0x998] sm:$0xff]
                %622 = vst [vmem:[%s262 + $0x598] sm:$0xff] %v621
                %v623 = vld [vmem:[%s261 + $0x9a0] sm:$0xff]
                %624 = vst [vmem:[%s262 + $0x5a0] sm:$0xff] %v623
                %v625 = vld [vmem:[%s261 + $0x9a8] sm:$0xff]
                %626 = vst [vmem:[%s262 + $0x5a8] sm:$0xff] %v625
                %v627 = vld [vmem:[%s261 + $0x9b0] sm:$0xff]
                %628 = vst [vmem:[%s262 + $0x5b0] sm:$0xff] %v627
                %v629 = vld [vmem:[%s261 + $0x9b8] sm:$0xff]
                %630 = vst [vmem:[%s262 + $0x5b8] sm:$0xff] %v629
                %v631 = vld [vmem:[%s261 + $0x9c0] sm:$0xff]
                %632 = vst [vmem:[%s262 + $0x5c0] sm:$0xff] %v631
                %v633 = vld [vmem:[%s261 + $0x9c8] sm:$0xff]
                %634 = vst [vmem:[%s262 + $0x5c8] sm:$0xff] %v633
                %v635 = vld [vmem:[%s261 + $0x9d0] sm:$0xff]
                %636 = vst [vmem:[%s262 + $0x5d0] sm:$0xff] %v635
                %v637 = vld [vmem:[%s261 + $0x9d8] sm:$0xff]
                %638 = vst [vmem:[%s262 + $0x5d8] sm:$0xff] %v637
                %v639 = vld [vmem:[%s261 + $0x9e0] sm:$0xff]
                %640 = vst [vmem:[%s262 + $0x5e0] sm:$0xff] %v639
                %v641 = vld [vmem:[%s261 + $0x9e8] sm:$0xff]
                %642 = vst [vmem:[%s262 + $0x5e8] sm:$0xff] %v641
                %v643 = vld [vmem:[%s261 + $0x9f0] sm:$0xff]
                %644 = vst [vmem:[%s262 + $0x5f0] sm:$0xff] %v643
                %v645 = vld [vmem:[%s261 + $0x9f8] sm:$0xff]
                %646 = vst [vmem:[%s262 + $0x5f8] sm:$0xff] %v645
                %v647 = vld [vmem:[%s261 + $0xc00] sm:$0xff]
                %648 = vst [vmem:[%s262 + $0x600] sm:$0xff] %v647
                %v649 = vld [vmem:[%s261 + $0xc08] sm:$0xff]
                %650 = vst [vmem:[%s262 + $0x608] sm:$0xff] %v649
                %v651 = vld [vmem:[%s261 + $0xc10] sm:$0xff]
                %652 = vst [vmem:[%s262 + $0x610] sm:$0xff] %v651
                %v653 = vld [vmem:[%s261 + $0xc18] sm:$0xff]
                %654 = vst [vmem:[%s262 + $0x618] sm:$0xff] %v653
                %v655 = vld [vmem:[%s261 + $0xc20] sm:$0xff]
                %656 = vst [vmem:[%s262 + $0x620] sm:$0xff] %v655
                %v657 = vld [vmem:[%s261 + $0xc28] sm:$0xff]
                %658 = vst [vmem:[%s262 + $0x628] sm:$0xff] %v657
                %v659 = vld [vmem:[%s261 + $0xc30] sm:$0xff]
                %660 = vst [vmem:[%s262 + $0x630] sm:$0xff] %v659
                %v661 = vld [vmem:[%s261 + $0xc38] sm:$0xff]
                %662 = vst [vmem:[%s262 + $0x638] sm:$0xff] %v661
                %v663 = vld [vmem:[%s261 + $0xc40] sm:$0xff]
                %664 = vst [vmem:[%s262 + $0x640] sm:$0xff] %v663
                %v665 = vld [vmem:[%s261 + $0xc48] sm:$0xff]
                %666 = vst [vmem:[%s262 + $0x648] sm:$0xff] %v665
                %v667 = vld [vmem:[%s261 + $0xc50] sm:$0xff]
                %668 = vst [vmem:[%s262 + $0x650] sm:$0xff] %v667
                %v669 = vld [vmem:[%s261 + $0xc58] sm:$0xff]
                %670 = vst [vmem:[%s262 + $0x658] sm:$0xff] %v669
                %v671 = vld [vmem:[%s261 + $0xc60] sm:$0xff]
                %672 = vst [vmem:[%s262 + $0x660] sm:$0xff] %v671
                %v673 = vld [vmem:[%s261 + $0xc68] sm:$0xff]
                %674 = vst [vmem:[%s262 + $0x668] sm:$0xff] %v673
                %v675 = vld [vmem:[%s261 + $0xc70] sm:$0xff]
                %676 = vst [vmem:[%s262 + $0x670] sm:$0xff] %v675
                %v677 = vld [vmem:[%s261 + $0xc78] sm:$0xff]
                %678 = vst [vmem:[%s262 + $0x678] sm:$0xff] %v677
                %v679 = vld [vmem:[%s261 + $0xc80] sm:$0xff]
                %680 = vst [vmem:[%s262 + $0x680] sm:$0xff] %v679
                %v681 = vld [vmem:[%s261 + $0xc88] sm:$0xff]
                %682 = vst [vmem:[%s262 + $0x688] sm:$0xff] %v681
                %v683 = vld [vmem:[%s261 + $0xc90] sm:$0xff]
                %684 = vst [vmem:[%s262 + $0x690] sm:$0xff] %v683
                %v685 = vld [vmem:[%s261 + $0xc98] sm:$0xff]
                %686 = vst [vmem:[%s262 + $0x698] sm:$0xff] %v685
                %v687 = vld [vmem:[%s261 + $0xca0] sm:$0xff]
                %688 = vst [vmem:[%s262 + $0x6a0] sm:$0xff] %v687
                %v689 = vld [vmem:[%s261 + $0xca8] sm:$0xff]
                %690 = vst [vmem:[%s262 + $0x6a8] sm:$0xff] %v689
                %v691 = vld [vmem:[%s261 + $0xcb0] sm:$0xff]
                %692 = vst [vmem:[%s262 + $0x6b0] sm:$0xff] %v691
                %v693 = vld [vmem:[%s261 + $0xcb8] sm:$0xff]
                %694 = vst [vmem:[%s262 + $0x6b8] sm:$0xff] %v693
                %v695 = vld [vmem:[%s261 + $0xcc0] sm:$0xff]
                %696 = vst [vmem:[%s262 + $0x6c0] sm:$0xff] %v695
                %v697 = vld [vmem:[%s261 + $0xcc8] sm:$0xff]
                %698 = vst [vmem:[%s262 + $0x6c8] sm:$0xff] %v697
                %v699 = vld [vmem:[%s261 + $0xcd0] sm:$0xff]
                %700 = vst [vmem:[%s262 + $0x6d0] sm:$0xff] %v699
                %v701 = vld [vmem:[%s261 + $0xcd8] sm:$0xff]
                %702 = vst [vmem:[%s262 + $0x6d8] sm:$0xff] %v701
                %v703 = vld [vmem:[%s261 + $0xce0] sm:$0xff]
                %704 = vst [vmem:[%s262 + $0x6e0] sm:$0xff] %v703
                %v705 = vld [vmem:[%s261 + $0xce8] sm:$0xff]
                %706 = vst [vmem:[%s262 + $0x6e8] sm:$0xff] %v705
                %v707 = vld [vmem:[%s261 + $0xcf0] sm:$0xff]
                %708 = vst [vmem:[%s262 + $0x6f0] sm:$0xff] %v707
                %v709 = vld [vmem:[%s261 + $0xcf8] sm:$0xff]
                %710 = vst [vmem:[%s262 + $0x6f8] sm:$0xff] %v709
                %v711 = vld [vmem:[%s261 + $0xd00] sm:$0xff]
                %712 = vst [vmem:[%s262 + $0x700] sm:$0xff] %v711
                %v713 = vld [vmem:[%s261 + $0xd08] sm:$0xff]
                %714 = vst [vmem:[%s262 + $0x708] sm:$0xff] %v713
                %v715 = vld [vmem:[%s261 + $0xd10] sm:$0xff]
                %716 = vst [vmem:[%s262 + $0x710] sm:$0xff] %v715
                %v717 = vld [vmem:[%s261 + $0xd18] sm:$0xff]
                %718 = vst [vmem:[%s262 + $0x718] sm:$0xff] %v717
                %v719 = vld [vmem:[%s261 + $0xd20] sm:$0xff]
                %720 = vst [vmem:[%s262 + $0x720] sm:$0xff] %v719
                %v721 = vld [vmem:[%s261 + $0xd28] sm:$0xff]
                %722 = vst [vmem:[%s262 + $0x728] sm:$0xff] %v721
                %v723 = vld [vmem:[%s261 + $0xd30] sm:$0xff]
                %724 = vst [vmem:[%s262 + $0x730] sm:$0xff] %v723
                %v725 = vld [vmem:[%s261 + $0xd38] sm:$0xff]
                %726 = vst [vmem:[%s262 + $0x738] sm:$0xff] %v725
                %v727 = vld [vmem:[%s261 + $0xd40] sm:$0xff]
                %728 = vst [vmem:[%s262 + $0x740] sm:$0xff] %v727
                %v729 = vld [vmem:[%s261 + $0xd48] sm:$0xff]
                %730 = vst [vmem:[%s262 + $0x748] sm:$0xff] %v729
                %v731 = vld [vmem:[%s261 + $0xd50] sm:$0xff]
                %732 = vst [vmem:[%s262 + $0x750] sm:$0xff] %v731
                %v733 = vld [vmem:[%s261 + $0xd58] sm:$0xff]
                %734 = vst [vmem:[%s262 + $0x758] sm:$0xff] %v733
                %v735 = vld [vmem:[%s261 + $0xd60] sm:$0xff]
                %736 = vst [vmem:[%s262 + $0x760] sm:$0xff] %v735
                %v737 = vld [vmem:[%s261 + $0xd68] sm:$0xff]
                %738 = vst [vmem:[%s262 + $0x768] sm:$0xff] %v737
                %v739 = vld [vmem:[%s261 + $0xd70] sm:$0xff]
                %740 = vst [vmem:[%s262 + $0x770] sm:$0xff] %v739
                %v741 = vld [vmem:[%s261 + $0xd78] sm:$0xff]
                %742 = vst [vmem:[%s262 + $0x778] sm:$0xff] %v741
                %v743 = vld [vmem:[%s261 + $0xd80] sm:$0xff]
                %744 = vst [vmem:[%s262 + $0x780] sm:$0xff] %v743
                %v745 = vld [vmem:[%s261 + $0xd88] sm:$0xff]
                %746 = vst [vmem:[%s262 + $0x788] sm:$0xff] %v745
                %v747 = vld [vmem:[%s261 + $0xd90] sm:$0xff]
                %748 = vst [vmem:[%s262 + $0x790] sm:$0xff] %v747
                %v749 = vld [vmem:[%s261 + $0xd98] sm:$0xff]
                %750 = vst [vmem:[%s262 + $0x798] sm:$0xff] %v749
                %v751 = vld [vmem:[%s261 + $0xda0] sm:$0xff]
                %752 = vst [vmem:[%s262 + $0x7a0] sm:$0xff] %v751
                %v753 = vld [vmem:[%s261 + $0xda8] sm:$0xff]
                %754 = vst [vmem:[%s262 + $0x7a8] sm:$0xff] %v753
                %v755 = vld [vmem:[%s261 + $0xdb0] sm:$0xff]
                %756 = vst [vmem:[%s262 + $0x7b0] sm:$0xff] %v755
                %v757 = vld [vmem:[%s261 + $0xdb8] sm:$0xff]
                %758 = vst [vmem:[%s262 + $0x7b8] sm:$0xff] %v757
                %v759 = vld [vmem:[%s261 + $0xdc0] sm:$0xff]
                %760 = vst [vmem:[%s262 + $0x7c0] sm:$0xff] %v759
                %v761 = vld [vmem:[%s261 + $0xdc8] sm:$0xff]
                %762 = vst [vmem:[%s262 + $0x7c8] sm:$0xff] %v761
                %v763 = vld [vmem:[%s261 + $0xdd0] sm:$0xff]
                %764 = vst [vmem:[%s262 + $0x7d0] sm:$0xff] %v763
                %v765 = vld [vmem:[%s261 + $0xdd8] sm:$0xff]
                %766 = vst [vmem:[%s262 + $0x7d8] sm:$0xff] %v765
                %v767 = vld [vmem:[%s261 + $0xde0] sm:$0xff]
                %768 = vst [vmem:[%s262 + $0x7e0] sm:$0xff] %v767
                %v769 = vld [vmem:[%s261 + $0xde8] sm:$0xff]
                %770 = vst [vmem:[%s262 + $0x7e8] sm:$0xff] %v769
                %v771 = vld [vmem:[%s261 + $0xdf0] sm:$0xff]
                %772 = vst [vmem:[%s262 + $0x7f0] sm:$0xff] %v771
                %v773 = vld [vmem:[%s261 + $0xdf8] sm:$0xff]
                %774 = vst [vmem:[%s262 + $0x7f8] sm:$0xff] %v773
              $region57: #{network_cuong_forward.1} parent=51 // loop_footer
                %s260 = sadd.s32 1, %s256
              $region58: #{network_cuong_forward.1} parent=51 // loop_footer_branch
                %255 = sbr.rel target = $region54
              $region59: #{network_cuong_forward.1} parent=51 // loop_exit
                _
            $region52: #{network_cuong_forward.1} parent=43 // pred_fallthru
              _
          $region44: #{network_cuong_forward.1} parent=39 // pred_fallthru
            _
          %1299 = vnop
        $region40: #{network_cuong_forward.1} parent=35 // pred_fallthru
          _
      $region36: #{network_cuong_forward.1} parent=5 // pred_fallthru
        _
      %p1300 = scmp.le.s32.totalorder 1, %s20
      %p1301 = scmp.lt.s32.totalorder %s20, 3
      %p1302 = pnand %p1300, %p1301
      %p1303 = pneg %p1302
      // Predicated region
      $region75: #{network_cuong_forward.1} parent=5 // pred_check
        _
      $region76: #{network_cuong_forward.1} parent=5 // pred_check_branch
        %1305 = sbr.rel (%p1302) target = $region78
      $region77: #{network_cuong_forward.1} parent=5 // pred_region
        %s1306 = ssub.s32 %s20, 1
        %s1307 = sand.u32 %s33, 1
        %s1308 = sand.u32 %s33, 1
        %s1309 = smul.addr %s1308, 2048
        %s1310 = scalar_lea.vmem [#allocation2], %s1309
        // Predicated region
        $region79: #{network_cuong_forward.1} parent=77 // pred_check
          %p1311 = pneg %p46
        $region80: #{network_cuong_forward.1} parent=77 // pred_check_branch
          %1313 = sbr.rel (%p1311) target = $region82
        $region81: #{network_cuong_forward.1} parent=77 // pred_region
          _
        $region82: #{network_cuong_forward.1} parent=77 // pred_fallthru
          _
        %s1314 = sand.u32 %s33, 1
        %s1315 = sand.u32 %s33, 1
        %s1316 = smul.addr %s1315, 2048
        %s1317 = scalar_lea.vmem [#allocation2], %s1316
        %p1318 = pneg %p46
        %p1319 = pneg %p43
        %p1320 = pneg %p67
        %p1321 = pneg %p64
        %p1322 = pneg %p88
        %p1323 = pneg %p85
        %p1324 = pneg %p109
        %p1325 = pneg %p106
        %p1326 = pneg %p130
        %p1327 = pneg %p127
        %p1328 = pneg %p151
        %p1329 = pneg %p148
        %p1330 = pneg %p177
        %p1331 = pneg %p174
        %s1332 = sand.u32 %s164, 1
        %s1333 = scalar_lea.sflag [#allocation4], %s1332
        %s1334 = sand.u32 %s164, 1
        %s1335 = smul.addr %s1334, 32
        %s1336 = scalar_lea.vmem [#allocation3], %s1335
        %p1337 = pneg %p203
        %p1338 = pneg %p200
        %s1339 = sand.u32 %s190, 1
        %s1340 = scalar_lea.sflag [#allocation6], %s1339
        %s1341 = sand.u32 %s190, 1
        %s1342 = smul.addr %s1341, 8
        %s1343 = scalar_lea.vmem [#allocation5], %s1342
        %s1344 = smul.u32 8, %s25
        %v1346 = vld [vmem:[%s1310] sm:$0xff]
        %v1347 = vld [vmem:[%s1310 + $0x8] sm:$0xff]
        %v1348 = vld [vmem:[%s1310 + $0x10] sm:$0xff]
        %v1349 = vld [vmem:[%s1310 + $0x18] sm:$0xff]
        %v1350 = vld [vmem:[%s1310 + $0x20] sm:$0xff]
        %v1351 = vld [vmem:[%s1310 + $0x28] sm:$0xff]
        %v1352 = vld [vmem:[%s1310 + $0x30] sm:$0xff]
        %v1353 = vld [vmem:[%s1310 + $0x38] sm:$0xff]
        %v1354 = vld [vmem:[%s1310 + $0x40] sm:$0xff]
        %v1355 = vld [vmem:[%s1310 + $0x48] sm:$0xff]
        %v1356 = vld [vmem:[%s1310 + $0x50] sm:$0xff]
        %v1357 = vld [vmem:[%s1310 + $0x58] sm:$0xff]
        %v1358 = vld [vmem:[%s1310 + $0x60] sm:$0xff]
        %v1359 = vld [vmem:[%s1310 + $0x68] sm:$0xff]
        %v1360 = vld [vmem:[%s1310 + $0x70] sm:$0xff]
        %v1361 = vld [vmem:[%s1310 + $0x78] sm:$0xff]
        %v1362 = vld [vmem:[%s1310 + $0x80] sm:$0xff]
        %v1363 = vld [vmem:[%s1310 + $0x88] sm:$0xff]
        %v1364 = vld [vmem:[%s1310 + $0x90] sm:$0xff]
        %v1365 = vld [vmem:[%s1310 + $0x98] sm:$0xff]
        %v1366 = vld [vmem:[%s1310 + $0xa0] sm:$0xff]
        %v1367 = vld [vmem:[%s1310 + $0xa8] sm:$0xff]
        %v1368 = vld [vmem:[%s1310 + $0xb0] sm:$0xff]
        %v1369 = vld [vmem:[%s1310 + $0xb8] sm:$0xff]
        %v1370 = vld [vmem:[%s1310 + $0xc0] sm:$0xff]
        %v1371 = vld [vmem:[%s1310 + $0xc8] sm:$0xff]
        %v1372 = vld [vmem:[%s1310 + $0xd0] sm:$0xff]
        %v1373 = vld [vmem:[%s1310 + $0xd8] sm:$0xff]
        %v1374 = vld [vmem:[%s1310 + $0xe0] sm:$0xff]
        %v1375 = vld [vmem:[%s1310 + $0xe8] sm:$0xff]
        %v1376 = vld [vmem:[%s1310 + $0xf0] sm:$0xff]
        %v1377 = vld [vmem:[%s1310 + $0xf8] sm:$0xff]
        %v1378 = vld [vmem:[%s1310 + $0x100] sm:$0xff]
        %v1379 = vld [vmem:[%s1310 + $0x108] sm:$0xff]
        %v1380 = vld [vmem:[%s1310 + $0x110] sm:$0xff]
        %v1381 = vld [vmem:[%s1310 + $0x118] sm:$0xff]
        %v1382 = vld [vmem:[%s1310 + $0x120] sm:$0xff]
        %v1383 = vld [vmem:[%s1310 + $0x128] sm:$0xff]
        %v1384 = vld [vmem:[%s1310 + $0x130] sm:$0xff]
        %v1385 = vld [vmem:[%s1310 + $0x138] sm:$0xff]
        %v1386 = vld [vmem:[%s1310 + $0x140] sm:$0xff]
        %v1387 = vld [vmem:[%s1310 + $0x148] sm:$0xff]
        %v1388 = vld [vmem:[%s1310 + $0x150] sm:$0xff]
        %v1389 = vld [vmem:[%s1310 + $0x158] sm:$0xff]
        %v1390 = vld [vmem:[%s1310 + $0x160] sm:$0xff]
        %v1391 = vld [vmem:[%s1310 + $0x168] sm:$0xff]
        %v1392 = vld [vmem:[%s1310 + $0x170] sm:$0xff]
        %v1393 = vld [vmem:[%s1310 + $0x178] sm:$0xff]
        %v1394 = vld [vmem:[%s1310 + $0x180] sm:$0xff]
        %v1395 = vld [vmem:[%s1310 + $0x188] sm:$0xff]
        %v1396 = vld [vmem:[%s1310 + $0x190] sm:$0xff]
        %v1397 = vld [vmem:[%s1310 + $0x198] sm:$0xff]
        %v1398 = vld [vmem:[%s1310 + $0x1a0] sm:$0xff]
        %v1399 = vld [vmem:[%s1310 + $0x1a8] sm:$0xff]
        %v1400 = vld [vmem:[%s1310 + $0x1b0] sm:$0xff]
        %v1401 = vld [vmem:[%s1310 + $0x1b8] sm:$0xff]
        %v1402 = vld [vmem:[%s1310 + $0x1c0] sm:$0xff]
        %v1403 = vld [vmem:[%s1310 + $0x1c8] sm:$0xff]
        %v1404 = vld [vmem:[%s1310 + $0x1d0] sm:$0xff]
        %v1405 = vld [vmem:[%s1310 + $0x1d8] sm:$0xff]
        %v1406 = vld [vmem:[%s1310 + $0x1e0] sm:$0xff]
        %v1407 = vld [vmem:[%s1310 + $0x1e8] sm:$0xff]
        %v1408 = vld [vmem:[%s1310 + $0x1f0] sm:$0xff]
        %v1409 = vld [vmem:[%s1310 + $0x1f8] sm:$0xff]
        %v1410 = vld [vmem:[%s1310 + $0x200] sm:$0xff]
        %v1411 = vld [vmem:[%s1310 + $0x208] sm:$0xff]
        %v1412 = vld [vmem:[%s1310 + $0x210] sm:$0xff]
        %v1413 = vld [vmem:[%s1310 + $0x218] sm:$0xff]
        %v1414 = vld [vmem:[%s1310 + $0x220] sm:$0xff]
        %v1415 = vld [vmem:[%s1310 + $0x228] sm:$0xff]
        %v1416 = vld [vmem:[%s1310 + $0x230] sm:$0xff]
        %v1417 = vld [vmem:[%s1310 + $0x238] sm:$0xff]
        %v1418 = vld [vmem:[%s1310 + $0x240] sm:$0xff]
        %v1419 = vld [vmem:[%s1310 + $0x248] sm:$0xff]
        %v1420 = vld [vmem:[%s1310 + $0x250] sm:$0xff]
        %v1421 = vld [vmem:[%s1310 + $0x258] sm:$0xff]
        %v1422 = vld [vmem:[%s1310 + $0x260] sm:$0xff]
        %v1423 = vld [vmem:[%s1310 + $0x268] sm:$0xff]
        %v1424 = vld [vmem:[%s1310 + $0x270] sm:$0xff]
        %v1425 = vld [vmem:[%s1310 + $0x278] sm:$0xff]
        %v1426 = vld [vmem:[%s1310 + $0x280] sm:$0xff]
        %v1427 = vld [vmem:[%s1310 + $0x288] sm:$0xff]
        %v1428 = vld [vmem:[%s1310 + $0x290] sm:$0xff]
        %v1429 = vld [vmem:[%s1310 + $0x298] sm:$0xff]
        %v1430 = vld [vmem:[%s1310 + $0x2a0] sm:$0xff]
        %v1431 = vld [vmem:[%s1310 + $0x2a8] sm:$0xff]
        %v1432 = vld [vmem:[%s1310 + $0x2b0] sm:$0xff]
        %v1433 = vld [vmem:[%s1310 + $0x2b8] sm:$0xff]
        %v1434 = vld [vmem:[%s1310 + $0x2c0] sm:$0xff]
        %v1435 = vld [vmem:[%s1310 + $0x2c8] sm:$0xff]
        %v1436 = vld [vmem:[%s1310 + $0x2d0] sm:$0xff]
        %v1437 = vld [vmem:[%s1310 + $0x2d8] sm:$0xff]
        %v1438 = vld [vmem:[%s1310 + $0x2e0] sm:$0xff]
        %v1439 = vld [vmem:[%s1310 + $0x2e8] sm:$0xff]
        %v1440 = vld [vmem:[%s1310 + $0x2f0] sm:$0xff]
        %v1441 = vld [vmem:[%s1310 + $0x2f8] sm:$0xff]
        %v1442 = vld [vmem:[%s1310 + $0x300] sm:$0xff]
        %v1443 = vld [vmem:[%s1310 + $0x308] sm:$0xff]
        %v1444 = vld [vmem:[%s1310 + $0x310] sm:$0xff]
        %v1445 = vld [vmem:[%s1310 + $0x318] sm:$0xff]
        %v1446 = vld [vmem:[%s1310 + $0x320] sm:$0xff]
        %v1447 = vld [vmem:[%s1310 + $0x328] sm:$0xff]
        %v1448 = vld [vmem:[%s1310 + $0x330] sm:$0xff]
        %v1449 = vld [vmem:[%s1310 + $0x338] sm:$0xff]
        %v1450 = vld [vmem:[%s1310 + $0x340] sm:$0xff]
        %v1451 = vld [vmem:[%s1310 + $0x348] sm:$0xff]
        %v1452 = vld [vmem:[%s1310 + $0x350] sm:$0xff]
        %v1453 = vld [vmem:[%s1310 + $0x358] sm:$0xff]
        %v1454 = vld [vmem:[%s1310 + $0x360] sm:$0xff]
        %v1455 = vld [vmem:[%s1310 + $0x368] sm:$0xff]
        %v1456 = vld [vmem:[%s1310 + $0x370] sm:$0xff]
        %v1457 = vld [vmem:[%s1310 + $0x378] sm:$0xff]
        %v1458 = vld [vmem:[%s1310 + $0x380] sm:$0xff]
        %v1459 = vld [vmem:[%s1310 + $0x388] sm:$0xff]
        %v1460 = vld [vmem:[%s1310 + $0x390] sm:$0xff]
        %v1461 = vld [vmem:[%s1310 + $0x398] sm:$0xff]
        %v1462 = vld [vmem:[%s1310 + $0x3a0] sm:$0xff]
        %v1463 = vld [vmem:[%s1310 + $0x3a8] sm:$0xff]
        %v1464 = vld [vmem:[%s1310 + $0x3b0] sm:$0xff]
        %v1465 = vld [vmem:[%s1310 + $0x3b8] sm:$0xff]
        %v1466 = vld [vmem:[%s1310 + $0x3c0] sm:$0xff]
        %v1467 = vld [vmem:[%s1310 + $0x3c8] sm:$0xff]
        %v1468 = vld [vmem:[%s1310 + $0x3d0] sm:$0xff]
        %v1469 = vld [vmem:[%s1310 + $0x3d8] sm:$0xff]
        %v1470 = vld [vmem:[%s1310 + $0x3e0] sm:$0xff]
        %v1471 = vld [vmem:[%s1310 + $0x3e8] sm:$0xff]
        %v1472 = vld [vmem:[%s1310 + $0x3f0] sm:$0xff]
        %v1473 = vld [vmem:[%s1310 + $0x3f8] sm:$0xff]
        %v1474 = vld [vmem:[%s1310 + $0x400] sm:$0xff]
        %v1475 = vld [vmem:[%s1310 + $0x408] sm:$0xff]
        %v1476 = vld [vmem:[%s1310 + $0x410] sm:$0xff]
        %v1477 = vld [vmem:[%s1310 + $0x418] sm:$0xff]
        %v1478 = vld [vmem:[%s1310 + $0x420] sm:$0xff]
        %v1479 = vld [vmem:[%s1310 + $0x428] sm:$0xff]
        %v1480 = vld [vmem:[%s1310 + $0x430] sm:$0xff]
        %v1481 = vld [vmem:[%s1310 + $0x438] sm:$0xff]
        %v1482 = vld [vmem:[%s1310 + $0x440] sm:$0xff]
        %v1483 = vld [vmem:[%s1310 + $0x448] sm:$0xff]
        %v1484 = vld [vmem:[%s1310 + $0x450] sm:$0xff]
        %v1485 = vld [vmem:[%s1310 + $0x458] sm:$0xff]
        %v1486 = vld [vmem:[%s1310 + $0x460] sm:$0xff]
        %v1487 = vld [vmem:[%s1310 + $0x468] sm:$0xff]
        %v1488 = vld [vmem:[%s1310 + $0x470] sm:$0xff]
        %v1489 = vld [vmem:[%s1310 + $0x478] sm:$0xff]
        %v1490 = vld [vmem:[%s1310 + $0x480] sm:$0xff]
        %v1491 = vld [vmem:[%s1310 + $0x488] sm:$0xff]
        %v1492 = vld [vmem:[%s1310 + $0x490] sm:$0xff]
        %v1493 = vld [vmem:[%s1310 + $0x498] sm:$0xff]
        %v1494 = vld [vmem:[%s1310 + $0x4a0] sm:$0xff]
        %v1495 = vld [vmem:[%s1310 + $0x4a8] sm:$0xff]
        %v1496 = vld [vmem:[%s1310 + $0x4b0] sm:$0xff]
        %v1497 = vld [vmem:[%s1310 + $0x4b8] sm:$0xff]
        %v1498 = vld [vmem:[%s1310 + $0x4c0] sm:$0xff]
        %v1499 = vld [vmem:[%s1310 + $0x4c8] sm:$0xff]
        %v1500 = vld [vmem:[%s1310 + $0x4d0] sm:$0xff]
        %v1501 = vld [vmem:[%s1310 + $0x4d8] sm:$0xff]
        %v1502 = vld [vmem:[%s1310 + $0x4e0] sm:$0xff]
        %v1503 = vld [vmem:[%s1310 + $0x4e8] sm:$0xff]
        %v1504 = vld [vmem:[%s1310 + $0x4f0] sm:$0xff]
        %v1505 = vld [vmem:[%s1310 + $0x4f8] sm:$0xff]
        %v1506 = vld [vmem:[%s1310 + $0x500] sm:$0xff]
        %v1507 = vld [vmem:[%s1310 + $0x508] sm:$0xff]
        %v1508 = vld [vmem:[%s1310 + $0x510] sm:$0xff]
        %v1509 = vld [vmem:[%s1310 + $0x518] sm:$0xff]
        %v1510 = vld [vmem:[%s1310 + $0x520] sm:$0xff]
        %v1511 = vld [vmem:[%s1310 + $0x528] sm:$0xff]
        %v1512 = vld [vmem:[%s1310 + $0x530] sm:$0xff]
        %v1513 = vld [vmem:[%s1310 + $0x538] sm:$0xff]
        %v1514 = vld [vmem:[%s1310 + $0x540] sm:$0xff]
        %v1515 = vld [vmem:[%s1310 + $0x548] sm:$0xff]
        %v1516 = vld [vmem:[%s1310 + $0x550] sm:$0xff]
        %v1517 = vld [vmem:[%s1310 + $0x558] sm:$0xff]
        %v1518 = vld [vmem:[%s1310 + $0x560] sm:$0xff]
        %v1519 = vld [vmem:[%s1310 + $0x568] sm:$0xff]
        %v1520 = vld [vmem:[%s1310 + $0x570] sm:$0xff]
        %v1521 = vld [vmem:[%s1310 + $0x578] sm:$0xff]
        %v1522 = vld [vmem:[%s1310 + $0x580] sm:$0xff]
        %v1523 = vld [vmem:[%s1310 + $0x588] sm:$0xff]
        %v1524 = vld [vmem:[%s1310 + $0x590] sm:$0xff]
        %v1525 = vld [vmem:[%s1310 + $0x598] sm:$0xff]
        %v1526 = vld [vmem:[%s1310 + $0x5a0] sm:$0xff]
        %v1527 = vld [vmem:[%s1310 + $0x5a8] sm:$0xff]
        %v1528 = vld [vmem:[%s1310 + $0x5b0] sm:$0xff]
        %v1529 = vld [vmem:[%s1310 + $0x5b8] sm:$0xff]
        %v1530 = vld [vmem:[%s1310 + $0x5c0] sm:$0xff]
        %v1531 = vld [vmem:[%s1310 + $0x5c8] sm:$0xff]
        %v1532 = vld [vmem:[%s1310 + $0x5d0] sm:$0xff]
        %v1533 = vld [vmem:[%s1310 + $0x5d8] sm:$0xff]
        %v1534 = vld [vmem:[%s1310 + $0x5e0] sm:$0xff]
        %v1535 = vld [vmem:[%s1310 + $0x5e8] sm:$0xff]
        %v1536 = vld [vmem:[%s1310 + $0x5f0] sm:$0xff]
        %v1537 = vld [vmem:[%s1310 + $0x5f8] sm:$0xff]
        %v1538 = vld [vmem:[%s1310 + $0x600] sm:$0xff]
        %v1539 = vld [vmem:[%s1310 + $0x608] sm:$0xff]
        %v1540 = vld [vmem:[%s1310 + $0x610] sm:$0xff]
        %v1541 = vld [vmem:[%s1310 + $0x618] sm:$0xff]
        %v1542 = vld [vmem:[%s1310 + $0x620] sm:$0xff]
        %v1543 = vld [vmem:[%s1310 + $0x628] sm:$0xff]
        %v1544 = vld [vmem:[%s1310 + $0x630] sm:$0xff]
        %v1545 = vld [vmem:[%s1310 + $0x638] sm:$0xff]
        %v1546 = vld [vmem:[%s1310 + $0x640] sm:$0xff]
        %v1547 = vld [vmem:[%s1310 + $0x648] sm:$0xff]
        %v1548 = vld [vmem:[%s1310 + $0x650] sm:$0xff]
        %v1549 = vld [vmem:[%s1310 + $0x658] sm:$0xff]
        %v1550 = vld [vmem:[%s1310 + $0x660] sm:$0xff]
        %v1551 = vld [vmem:[%s1310 + $0x668] sm:$0xff]
        %v1552 = vld [vmem:[%s1310 + $0x670] sm:$0xff]
        %v1553 = vld [vmem:[%s1310 + $0x678] sm:$0xff]
        %v1554 = vld [vmem:[%s1310 + $0x680] sm:$0xff]
        %v1555 = vld [vmem:[%s1310 + $0x688] sm:$0xff]
        %v1556 = vld [vmem:[%s1310 + $0x690] sm:$0xff]
        %v1557 = vld [vmem:[%s1310 + $0x698] sm:$0xff]
        %v1558 = vld [vmem:[%s1310 + $0x6a0] sm:$0xff]
        %v1559 = vld [vmem:[%s1310 + $0x6a8] sm:$0xff]
        %v1560 = vld [vmem:[%s1310 + $0x6b0] sm:$0xff]
        %v1561 = vld [vmem:[%s1310 + $0x6b8] sm:$0xff]
        %v1562 = vld [vmem:[%s1310 + $0x6c0] sm:$0xff]
        %v1563 = vld [vmem:[%s1310 + $0x6c8] sm:$0xff]
        %v1564 = vld [vmem:[%s1310 + $0x6d0] sm:$0xff]
        %v1565 = vld [vmem:[%s1310 + $0x6d8] sm:$0xff]
        %v1566 = vld [vmem:[%s1310 + $0x6e0] sm:$0xff]
        %v1567 = vld [vmem:[%s1310 + $0x6e8] sm:$0xff]
        %v1568 = vld [vmem:[%s1310 + $0x6f0] sm:$0xff]
        %v1569 = vld [vmem:[%s1310 + $0x6f8] sm:$0xff]
        %v1570 = vld [vmem:[%s1310 + $0x700] sm:$0xff]
        %v1571 = vld [vmem:[%s1310 + $0x708] sm:$0xff]
        %v1572 = vld [vmem:[%s1310 + $0x710] sm:$0xff]
        %v1573 = vld [vmem:[%s1310 + $0x718] sm:$0xff]
        %v1574 = vld [vmem:[%s1310 + $0x720] sm:$0xff]
        %v1575 = vld [vmem:[%s1310 + $0x728] sm:$0xff]
        %v1576 = vld [vmem:[%s1310 + $0x730] sm:$0xff]
        %v1577 = vld [vmem:[%s1310 + $0x738] sm:$0xff]
        %v1578 = vld [vmem:[%s1310 + $0x740] sm:$0xff]
        %v1579 = vld [vmem:[%s1310 + $0x748] sm:$0xff]
        %v1580 = vld [vmem:[%s1310 + $0x750] sm:$0xff]
        %v1581 = vld [vmem:[%s1310 + $0x758] sm:$0xff]
        %v1582 = vld [vmem:[%s1310 + $0x760] sm:$0xff]
        %v1583 = vld [vmem:[%s1310 + $0x768] sm:$0xff]
        %v1584 = vld [vmem:[%s1310 + $0x770] sm:$0xff]
        %v1585 = vld [vmem:[%s1310 + $0x778] sm:$0xff]
        %v1586 = vld [vmem:[%s1310 + $0x780] sm:$0xff]
        %v1587 = vld [vmem:[%s1310 + $0x788] sm:$0xff]
        %v1588 = vld [vmem:[%s1310 + $0x790] sm:$0xff]
        %v1589 = vld [vmem:[%s1310 + $0x798] sm:$0xff]
        %v1590 = vld [vmem:[%s1310 + $0x7a0] sm:$0xff]
        %v1591 = vld [vmem:[%s1310 + $0x7a8] sm:$0xff]
        %v1592 = vld [vmem:[%s1310 + $0x7b0] sm:$0xff]
        %v1593 = vld [vmem:[%s1310 + $0x7b8] sm:$0xff]
        %v1594 = vld [vmem:[%s1310 + $0x7c0] sm:$0xff]
        %v1595 = vld [vmem:[%s1310 + $0x7c8] sm:$0xff]
        %v1596 = vld [vmem:[%s1310 + $0x7d0] sm:$0xff]
        %v1597 = vld [vmem:[%s1310 + $0x7d8] sm:$0xff]
        %v1598 = vld [vmem:[%s1310 + $0x7e0] sm:$0xff]
        %v1599 = vld [vmem:[%s1310 + $0x7e8] sm:$0xff]
        %v1600 = vld [vmem:[%s1310 + $0x7f0] sm:$0xff]
        %v1601 = vld [vmem:[%s1310 + $0x7f8] sm:$0xff]
        %v1602 = vunpack.c.l.bf16 %v1346
        %v1603 = vunpack.c.h.bf16 %v1346
        %v1604 = vunpack.c.l.bf16 %v1347
        %v1605 = vunpack.c.h.bf16 %v1347
        %v1606 = vunpack.c.l.bf16 %v1348
        %v1607 = vunpack.c.h.bf16 %v1348
        %v1608 = vunpack.c.l.bf16 %v1349
        %v1609 = vunpack.c.h.bf16 %v1349
        %v1610 = vunpack.c.l.bf16 %v1350
        %v1611 = vunpack.c.h.bf16 %v1350
        %v1612 = vunpack.c.l.bf16 %v1351
        %v1613 = vunpack.c.h.bf16 %v1351
        %v1614 = vunpack.c.l.bf16 %v1352
        %v1615 = vunpack.c.h.bf16 %v1352
        %v1616 = vunpack.c.l.bf16 %v1353
        %v1617 = vunpack.c.h.bf16 %v1353
        %v1618 = vunpack.c.l.bf16 %v1354
        %v1619 = vunpack.c.h.bf16 %v1354
        %v1620 = vunpack.c.l.bf16 %v1355
        %v1621 = vunpack.c.h.bf16 %v1355
        %v1622 = vunpack.c.l.bf16 %v1356
        %v1623 = vunpack.c.h.bf16 %v1356
        %v1624 = vunpack.c.l.bf16 %v1357
        %v1625 = vunpack.c.h.bf16 %v1357
        %v1626 = vunpack.c.l.bf16 %v1358
        %v1627 = vunpack.c.h.bf16 %v1358
        %v1628 = vunpack.c.l.bf16 %v1359
        %v1629 = vunpack.c.h.bf16 %v1359
        %v1630 = vunpack.c.l.bf16 %v1360
        %v1631 = vunpack.c.h.bf16 %v1360
        %v1632 = vunpack.c.l.bf16 %v1361
        %v1633 = vunpack.c.h.bf16 %v1361
        %v1634 = vunpack.c.l.bf16 %v1362
        %v1635 = vunpack.c.h.bf16 %v1362
        %v1636 = vunpack.c.l.bf16 %v1363
        %v1637 = vunpack.c.h.bf16 %v1363
        %v1638 = vunpack.c.l.bf16 %v1364
        %v1639 = vunpack.c.h.bf16 %v1364
        %v1640 = vunpack.c.l.bf16 %v1365
        %v1641 = vunpack.c.h.bf16 %v1365
        %v1642 = vunpack.c.l.bf16 %v1366
        %v1643 = vunpack.c.h.bf16 %v1366
        %v1644 = vunpack.c.l.bf16 %v1367
        %v1645 = vunpack.c.h.bf16 %v1367
        %v1646 = vunpack.c.l.bf16 %v1368
        %v1647 = vunpack.c.h.bf16 %v1368
        %v1648 = vunpack.c.l.bf16 %v1369
        %v1649 = vunpack.c.h.bf16 %v1369
        %v1650 = vunpack.c.l.bf16 %v1370
        %v1651 = vunpack.c.h.bf16 %v1370
        %v1652 = vunpack.c.l.bf16 %v1371
        %v1653 = vunpack.c.h.bf16 %v1371
        %v1654 = vunpack.c.l.bf16 %v1372
        %v1655 = vunpack.c.h.bf16 %v1372
        %v1656 = vunpack.c.l.bf16 %v1373
        %v1657 = vunpack.c.h.bf16 %v1373
        %v1658 = vunpack.c.l.bf16 %v1374
        %v1659 = vunpack.c.h.bf16 %v1374
        %v1660 = vunpack.c.l.bf16 %v1375
        %v1661 = vunpack.c.h.bf16 %v1375
        %v1662 = vunpack.c.l.bf16 %v1376
        %v1663 = vunpack.c.h.bf16 %v1376
        %v1664 = vunpack.c.l.bf16 %v1377
        %v1665 = vunpack.c.h.bf16 %v1377
        %v1666 = vunpack.c.l.bf16 %v1378
        %v1667 = vunpack.c.h.bf16 %v1378
        %v1668 = vunpack.c.l.bf16 %v1379
        %v1669 = vunpack.c.h.bf16 %v1379
        %v1670 = vunpack.c.l.bf16 %v1380
        %v1671 = vunpack.c.h.bf16 %v1380
        %v1672 = vunpack.c.l.bf16 %v1381
        %v1673 = vunpack.c.h.bf16 %v1381
        %v1674 = vunpack.c.l.bf16 %v1382
        %v1675 = vunpack.c.h.bf16 %v1382
        %v1676 = vunpack.c.l.bf16 %v1383
        %v1677 = vunpack.c.h.bf16 %v1383
        %v1678 = vunpack.c.l.bf16 %v1384
        %v1679 = vunpack.c.h.bf16 %v1384
        %v1680 = vunpack.c.l.bf16 %v1385
        %v1681 = vunpack.c.h.bf16 %v1385
        %v1682 = vunpack.c.l.bf16 %v1386
        %v1683 = vunpack.c.h.bf16 %v1386
        %v1684 = vunpack.c.l.bf16 %v1387
        %v1685 = vunpack.c.h.bf16 %v1387
        %v1686 = vunpack.c.l.bf16 %v1388
        %v1687 = vunpack.c.h.bf16 %v1388
        %v1688 = vunpack.c.l.bf16 %v1389
        %v1689 = vunpack.c.h.bf16 %v1389
        %v1690 = vunpack.c.l.bf16 %v1390
        %v1691 = vunpack.c.h.bf16 %v1390
        %v1692 = vunpack.c.l.bf16 %v1391
        %v1693 = vunpack.c.h.bf16 %v1391
        %v1694 = vunpack.c.l.bf16 %v1392
        %v1695 = vunpack.c.h.bf16 %v1392
        %v1696 = vunpack.c.l.bf16 %v1393
        %v1697 = vunpack.c.h.bf16 %v1393
        %v1698 = vunpack.c.l.bf16 %v1394
        %v1699 = vunpack.c.h.bf16 %v1394
        %v1700 = vunpack.c.l.bf16 %v1395
        %v1701 = vunpack.c.h.bf16 %v1395
        %v1702 = vunpack.c.l.bf16 %v1396
        %v1703 = vunpack.c.h.bf16 %v1396
        %v1704 = vunpack.c.l.bf16 %v1397
        %v1705 = vunpack.c.h.bf16 %v1397
        %v1706 = vunpack.c.l.bf16 %v1398
        %v1707 = vunpack.c.h.bf16 %v1398
        %v1708 = vunpack.c.l.bf16 %v1399
        %v1709 = vunpack.c.h.bf16 %v1399
        %v1710 = vunpack.c.l.bf16 %v1400
        %v1711 = vunpack.c.h.bf16 %v1400
        %v1712 = vunpack.c.l.bf16 %v1401
        %v1713 = vunpack.c.h.bf16 %v1401
        %v1714 = vunpack.c.l.bf16 %v1402
        %v1715 = vunpack.c.h.bf16 %v1402
        %v1716 = vunpack.c.l.bf16 %v1403
        %v1717 = vunpack.c.h.bf16 %v1403
        %v1718 = vunpack.c.l.bf16 %v1404
        %v1719 = vunpack.c.h.bf16 %v1404
        %v1720 = vunpack.c.l.bf16 %v1405
        %v1721 = vunpack.c.h.bf16 %v1405
        %v1722 = vunpack.c.l.bf16 %v1406
        %v1723 = vunpack.c.h.bf16 %v1406
        %v1724 = vunpack.c.l.bf16 %v1407
        %v1725 = vunpack.c.h.bf16 %v1407
        %v1726 = vunpack.c.l.bf16 %v1408
        %v1727 = vunpack.c.h.bf16 %v1408
        %v1728 = vunpack.c.l.bf16 %v1409
        %v1729 = vunpack.c.h.bf16 %v1409
        %v1730 = vunpack.c.l.bf16 %v1410
        %v1731 = vunpack.c.h.bf16 %v1410
        %v1732 = vunpack.c.l.bf16 %v1411
        %v1733 = vunpack.c.h.bf16 %v1411
        %v1734 = vunpack.c.l.bf16 %v1412
        %v1735 = vunpack.c.h.bf16 %v1412
        %v1736 = vunpack.c.l.bf16 %v1413
        %v1737 = vunpack.c.h.bf16 %v1413
        %v1738 = vunpack.c.l.bf16 %v1414
        %v1739 = vunpack.c.h.bf16 %v1414
        %v1740 = vunpack.c.l.bf16 %v1415
        %v1741 = vunpack.c.h.bf16 %v1415
        %v1742 = vunpack.c.l.bf16 %v1416
        %v1743 = vunpack.c.h.bf16 %v1416
        %v1744 = vunpack.c.l.bf16 %v1417
        %v1745 = vunpack.c.h.bf16 %v1417
        %v1746 = vunpack.c.l.bf16 %v1418
        %v1747 = vunpack.c.h.bf16 %v1418
        %v1748 = vunpack.c.l.bf16 %v1419
        %v1749 = vunpack.c.h.bf16 %v1419
        %v1750 = vunpack.c.l.bf16 %v1420
        %v1751 = vunpack.c.h.bf16 %v1420
        %v1752 = vunpack.c.l.bf16 %v1421
        %v1753 = vunpack.c.h.bf16 %v1421
        %v1754 = vunpack.c.l.bf16 %v1422
        %v1755 = vunpack.c.h.bf16 %v1422
        %v1756 = vunpack.c.l.bf16 %v1423
        %v1757 = vunpack.c.h.bf16 %v1423
        %v1758 = vunpack.c.l.bf16 %v1424
        %v1759 = vunpack.c.h.bf16 %v1424
        %v1760 = vunpack.c.l.bf16 %v1425
        %v1761 = vunpack.c.h.bf16 %v1425
        %v1762 = vunpack.c.l.bf16 %v1426
        %v1763 = vunpack.c.h.bf16 %v1426
        %v1764 = vunpack.c.l.bf16 %v1427
        %v1765 = vunpack.c.h.bf16 %v1427
        %v1766 = vunpack.c.l.bf16 %v1428
        %v1767 = vunpack.c.h.bf16 %v1428
        %v1768 = vunpack.c.l.bf16 %v1429
        %v1769 = vunpack.c.h.bf16 %v1429
        %v1770 = vunpack.c.l.bf16 %v1430
        %v1771 = vunpack.c.h.bf16 %v1430
        %v1772 = vunpack.c.l.bf16 %v1431
        %v1773 = vunpack.c.h.bf16 %v1431
        %v1774 = vunpack.c.l.bf16 %v1432
        %v1775 = vunpack.c.h.bf16 %v1432
        %v1776 = vunpack.c.l.bf16 %v1433
        %v1777 = vunpack.c.h.bf16 %v1433
        %v1778 = vunpack.c.l.bf16 %v1434
        %v1779 = vunpack.c.h.bf16 %v1434
        %v1780 = vunpack.c.l.bf16 %v1435
        %v1781 = vunpack.c.h.bf16 %v1435
        %v1782 = vunpack.c.l.bf16 %v1436
        %v1783 = vunpack.c.h.bf16 %v1436
        %v1784 = vunpack.c.l.bf16 %v1437
        %v1785 = vunpack.c.h.bf16 %v1437
        %v1786 = vunpack.c.l.bf16 %v1438
        %v1787 = vunpack.c.h.bf16 %v1438
        %v1788 = vunpack.c.l.bf16 %v1439
        %v1789 = vunpack.c.h.bf16 %v1439
        %v1790 = vunpack.c.l.bf16 %v1440
        %v1791 = vunpack.c.h.bf16 %v1440
        %v1792 = vunpack.c.l.bf16 %v1441
        %v1793 = vunpack.c.h.bf16 %v1441
        %v1794 = vunpack.c.l.bf16 %v1442
        %v1795 = vunpack.c.h.bf16 %v1442
        %v1796 = vunpack.c.l.bf16 %v1443
        %v1797 = vunpack.c.h.bf16 %v1443
        %v1798 = vunpack.c.l.bf16 %v1444
        %v1799 = vunpack.c.h.bf16 %v1444
        %v1800 = vunpack.c.l.bf16 %v1445
        %v1801 = vunpack.c.h.bf16 %v1445
        %v1802 = vunpack.c.l.bf16 %v1446
        %v1803 = vunpack.c.h.bf16 %v1446
        %v1804 = vunpack.c.l.bf16 %v1447
        %v1805 = vunpack.c.h.bf16 %v1447
        %v1806 = vunpack.c.l.bf16 %v1448
        %v1807 = vunpack.c.h.bf16 %v1448
        %v1808 = vunpack.c.l.bf16 %v1449
        %v1809 = vunpack.c.h.bf16 %v1449
        %v1810 = vunpack.c.l.bf16 %v1450
        %v1811 = vunpack.c.h.bf16 %v1450
        %v1812 = vunpack.c.l.bf16 %v1451
        %v1813 = vunpack.c.h.bf16 %v1451
        %v1814 = vunpack.c.l.bf16 %v1452
        %v1815 = vunpack.c.h.bf16 %v1452
        %v1816 = vunpack.c.l.bf16 %v1453
        %v1817 = vunpack.c.h.bf16 %v1453
        %v1818 = vunpack.c.l.bf16 %v1454
        %v1819 = vunpack.c.h.bf16 %v1454
        %v1820 = vunpack.c.l.bf16 %v1455
        %v1821 = vunpack.c.h.bf16 %v1455
        %v1822 = vunpack.c.l.bf16 %v1456
        %v1823 = vunpack.c.h.bf16 %v1456
        %v1824 = vunpack.c.l.bf16 %v1457
        %v1825 = vunpack.c.h.bf16 %v1457
        %v1826 = vunpack.c.l.bf16 %v1458
        %v1827 = vunpack.c.h.bf16 %v1458
        %v1828 = vunpack.c.l.bf16 %v1459
        %v1829 = vunpack.c.h.bf16 %v1459
        %v1830 = vunpack.c.l.bf16 %v1460
        %v1831 = vunpack.c.h.bf16 %v1460
        %v1832 = vunpack.c.l.bf16 %v1461
        %v1833 = vunpack.c.h.bf16 %v1461
        %v1834 = vunpack.c.l.bf16 %v1462
        %v1835 = vunpack.c.h.bf16 %v1462
        %v1836 = vunpack.c.l.bf16 %v1463
        %v1837 = vunpack.c.h.bf16 %v1463
        %v1838 = vunpack.c.l.bf16 %v1464
        %v1839 = vunpack.c.h.bf16 %v1464
        %v1840 = vunpack.c.l.bf16 %v1465
        %v1841 = vunpack.c.h.bf16 %v1465
        %v1842 = vunpack.c.l.bf16 %v1466
        %v1843 = vunpack.c.h.bf16 %v1466
        %v1844 = vunpack.c.l.bf16 %v1467
        %v1845 = vunpack.c.h.bf16 %v1467
        %v1846 = vunpack.c.l.bf16 %v1468
        %v1847 = vunpack.c.h.bf16 %v1468
        %v1848 = vunpack.c.l.bf16 %v1469
        %v1849 = vunpack.c.h.bf16 %v1469
        %v1850 = vunpack.c.l.bf16 %v1470
        %v1851 = vunpack.c.h.bf16 %v1470
        %v1852 = vunpack.c.l.bf16 %v1471
        %v1853 = vunpack.c.h.bf16 %v1471
        %v1854 = vunpack.c.l.bf16 %v1472
        %v1855 = vunpack.c.h.bf16 %v1472
        %v1856 = vunpack.c.l.bf16 %v1473
        %v1857 = vunpack.c.h.bf16 %v1473
        %v1858 = vunpack.c.l.bf16 %v1474
        %v1859 = vunpack.c.h.bf16 %v1474
        %v1860 = vunpack.c.l.bf16 %v1475
        %v1861 = vunpack.c.h.bf16 %v1475
        %v1862 = vunpack.c.l.bf16 %v1476
        %v1863 = vunpack.c.h.bf16 %v1476
        %v1864 = vunpack.c.l.bf16 %v1477
        %v1865 = vunpack.c.h.bf16 %v1477
        %v1866 = vunpack.c.l.bf16 %v1478
        %v1867 = vunpack.c.h.bf16 %v1478
        %v1868 = vunpack.c.l.bf16 %v1479
        %v1869 = vunpack.c.h.bf16 %v1479
        %v1870 = vunpack.c.l.bf16 %v1480
        %v1871 = vunpack.c.h.bf16 %v1480
        %v1872 = vunpack.c.l.bf16 %v1481
        %v1873 = vunpack.c.h.bf16 %v1481
        %v1874 = vunpack.c.l.bf16 %v1482
        %v1875 = vunpack.c.h.bf16 %v1482
        %v1876 = vunpack.c.l.bf16 %v1483
        %v1877 = vunpack.c.h.bf16 %v1483
        %v1878 = vunpack.c.l.bf16 %v1484
        %v1879 = vunpack.c.h.bf16 %v1484
        %v1880 = vunpack.c.l.bf16 %v1485
        %v1881 = vunpack.c.h.bf16 %v1485
        %v1882 = vunpack.c.l.bf16 %v1486
        %v1883 = vunpack.c.h.bf16 %v1486
        %v1884 = vunpack.c.l.bf16 %v1487
        %v1885 = vunpack.c.h.bf16 %v1487
        %v1886 = vunpack.c.l.bf16 %v1488
        %v1887 = vunpack.c.h.bf16 %v1488
        %v1888 = vunpack.c.l.bf16 %v1489
        %v1889 = vunpack.c.h.bf16 %v1489
        %v1890 = vunpack.c.l.bf16 %v1490
        %v1891 = vunpack.c.h.bf16 %v1490
        %v1892 = vunpack.c.l.bf16 %v1491
        %v1893 = vunpack.c.h.bf16 %v1491
        %v1894 = vunpack.c.l.bf16 %v1492
        %v1895 = vunpack.c.h.bf16 %v1492
        %v1896 = vunpack.c.l.bf16 %v1493
        %v1897 = vunpack.c.h.bf16 %v1493
        %v1898 = vunpack.c.l.bf16 %v1494
        %v1899 = vunpack.c.h.bf16 %v1494
        %v1900 = vunpack.c.l.bf16 %v1495
        %v1901 = vunpack.c.h.bf16 %v1495
        %v1902 = vunpack.c.l.bf16 %v1496
        %v1903 = vunpack.c.h.bf16 %v1496
        %v1904 = vunpack.c.l.bf16 %v1497
        %v1905 = vunpack.c.h.bf16 %v1497
        %v1906 = vunpack.c.l.bf16 %v1498
        %v1907 = vunpack.c.h.bf16 %v1498
        %v1908 = vunpack.c.l.bf16 %v1499
        %v1909 = vunpack.c.h.bf16 %v1499
        %v1910 = vunpack.c.l.bf16 %v1500
        %v1911 = vunpack.c.h.bf16 %v1500
        %v1912 = vunpack.c.l.bf16 %v1501
        %v1913 = vunpack.c.h.bf16 %v1501
        %v1914 = vunpack.c.l.bf16 %v1502
        %v1915 = vunpack.c.h.bf16 %v1502
        %v1916 = vunpack.c.l.bf16 %v1503
        %v1917 = vunpack.c.h.bf16 %v1503
        %v1918 = vunpack.c.l.bf16 %v1504
        %v1919 = vunpack.c.h.bf16 %v1504
        %v1920 = vunpack.c.l.bf16 %v1505
        %v1921 = vunpack.c.h.bf16 %v1505
        %v1922 = vunpack.c.l.bf16 %v1506
        %v1923 = vunpack.c.h.bf16 %v1506
        %v1924 = vunpack.c.l.bf16 %v1507
        %v1925 = vunpack.c.h.bf16 %v1507
        %v1926 = vunpack.c.l.bf16 %v1508
        %v1927 = vunpack.c.h.bf16 %v1508
        %v1928 = vunpack.c.l.bf16 %v1509
        %v1929 = vunpack.c.h.bf16 %v1509
        %v1930 = vunpack.c.l.bf16 %v1510
        %v1931 = vunpack.c.h.bf16 %v1510
        %v1932 = vunpack.c.l.bf16 %v1511
        %v1933 = vunpack.c.h.bf16 %v1511
        %v1934 = vunpack.c.l.bf16 %v1512
        %v1935 = vunpack.c.h.bf16 %v1512
        %v1936 = vunpack.c.l.bf16 %v1513
        %v1937 = vunpack.c.h.bf16 %v1513
        %v1938 = vunpack.c.l.bf16 %v1514
        %v1939 = vunpack.c.h.bf16 %v1514
        %v1940 = vunpack.c.l.bf16 %v1515
        %v1941 = vunpack.c.h.bf16 %v1515
        %v1942 = vunpack.c.l.bf16 %v1516
        %v1943 = vunpack.c.h.bf16 %v1516
        %v1944 = vunpack.c.l.bf16 %v1517
        %v1945 = vunpack.c.h.bf16 %v1517
        %v1946 = vunpack.c.l.bf16 %v1518
        %v1947 = vunpack.c.h.bf16 %v1518
        %v1948 = vunpack.c.l.bf16 %v1519
        %v1949 = vunpack.c.h.bf16 %v1519
        %v1950 = vunpack.c.l.bf16 %v1520
        %v1951 = vunpack.c.h.bf16 %v1520
        %v1952 = vunpack.c.l.bf16 %v1521
        %v1953 = vunpack.c.h.bf16 %v1521
        %v1954 = vunpack.c.l.bf16 %v1522
        %v1955 = vunpack.c.h.bf16 %v1522
        %v1956 = vunpack.c.l.bf16 %v1523
        %v1957 = vunpack.c.h.bf16 %v1523
        %v1958 = vunpack.c.l.bf16 %v1524
        %v1959 = vunpack.c.h.bf16 %v1524
        %v1960 = vunpack.c.l.bf16 %v1525
        %v1961 = vunpack.c.h.bf16 %v1525
        %v1962 = vunpack.c.l.bf16 %v1526
        %v1963 = vunpack.c.h.bf16 %v1526
        %v1964 = vunpack.c.l.bf16 %v1527
        %v1965 = vunpack.c.h.bf16 %v1527
        %v1966 = vunpack.c.l.bf16 %v1528
        %v1967 = vunpack.c.h.bf16 %v1528
        %v1968 = vunpack.c.l.bf16 %v1529
        %v1969 = vunpack.c.h.bf16 %v1529
        %v1970 = vunpack.c.l.bf16 %v1530
        %v1971 = vunpack.c.h.bf16 %v1530
        %v1972 = vunpack.c.l.bf16 %v1531
        %v1973 = vunpack.c.h.bf16 %v1531
        %v1974 = vunpack.c.l.bf16 %v1532
        %v1975 = vunpack.c.h.bf16 %v1532
        %v1976 = vunpack.c.l.bf16 %v1533
        %v1977 = vunpack.c.h.bf16 %v1533
        %v1978 = vunpack.c.l.bf16 %v1534
        %v1979 = vunpack.c.h.bf16 %v1534
        %v1980 = vunpack.c.l.bf16 %v1535
        %v1981 = vunpack.c.h.bf16 %v1535
        %v1982 = vunpack.c.l.bf16 %v1536
        %v1983 = vunpack.c.h.bf16 %v1536
        %v1984 = vunpack.c.l.bf16 %v1537
        %v1985 = vunpack.c.h.bf16 %v1537
        %v1986 = vunpack.c.l.bf16 %v1538
        %v1987 = vunpack.c.h.bf16 %v1538
        %v1988 = vunpack.c.l.bf16 %v1539
        %v1989 = vunpack.c.h.bf16 %v1539
        %v1990 = vunpack.c.l.bf16 %v1540
        %v1991 = vunpack.c.h.bf16 %v1540
        %v1992 = vunpack.c.l.bf16 %v1541
        %v1993 = vunpack.c.h.bf16 %v1541
        %v1994 = vunpack.c.l.bf16 %v1542
        %v1995 = vunpack.c.h.bf16 %v1542
        %v1996 = vunpack.c.l.bf16 %v1543
        %v1997 = vunpack.c.h.bf16 %v1543
        %v1998 = vunpack.c.l.bf16 %v1544
        %v1999 = vunpack.c.h.bf16 %v1544
        %v2000 = vunpack.c.l.bf16 %v1545
        %v2001 = vunpack.c.h.bf16 %v1545
        %v2002 = vunpack.c.l.bf16 %v1546
        %v2003 = vunpack.c.h.bf16 %v1546
        %v2004 = vunpack.c.l.bf16 %v1547
        %v2005 = vunpack.c.h.bf16 %v1547
        %v2006 = vunpack.c.l.bf16 %v1548
        %v2007 = vunpack.c.h.bf16 %v1548
        %v2008 = vunpack.c.l.bf16 %v1549
        %v2009 = vunpack.c.h.bf16 %v1549
        %v2010 = vunpack.c.l.bf16 %v1550
        %v2011 = vunpack.c.h.bf16 %v1550
        %v2012 = vunpack.c.l.bf16 %v1551
        %v2013 = vunpack.c.h.bf16 %v1551
        %v2014 = vunpack.c.l.bf16 %v1552
        %v2015 = vunpack.c.h.bf16 %v1552
        %v2016 = vunpack.c.l.bf16 %v1553
        %v2017 = vunpack.c.h.bf16 %v1553
        %v2018 = vunpack.c.l.bf16 %v1554
        %v2019 = vunpack.c.h.bf16 %v1554
        %v2020 = vunpack.c.l.bf16 %v1555
        %v2021 = vunpack.c.h.bf16 %v1555
        %v2022 = vunpack.c.l.bf16 %v1556
        %v2023 = vunpack.c.h.bf16 %v1556
        %v2024 = vunpack.c.l.bf16 %v1557
        %v2025 = vunpack.c.h.bf16 %v1557
        %v2026 = vunpack.c.l.bf16 %v1558
        %v2027 = vunpack.c.h.bf16 %v1558
        %v2028 = vunpack.c.l.bf16 %v1559
        %v2029 = vunpack.c.h.bf16 %v1559
        %v2030 = vunpack.c.l.bf16 %v1560
        %v2031 = vunpack.c.h.bf16 %v1560
        %v2032 = vunpack.c.l.bf16 %v1561
        %v2033 = vunpack.c.h.bf16 %v1561
        %v2034 = vunpack.c.l.bf16 %v1562
        %v2035 = vunpack.c.h.bf16 %v1562
        %v2036 = vunpack.c.l.bf16 %v1563
        %v2037 = vunpack.c.h.bf16 %v1563
        %v2038 = vunpack.c.l.bf16 %v1564
        %v2039 = vunpack.c.h.bf16 %v1564
        %v2040 = vunpack.c.l.bf16 %v1565
        %v2041 = vunpack.c.h.bf16 %v1565
        %v2042 = vunpack.c.l.bf16 %v1566
        %v2043 = vunpack.c.h.bf16 %v1566
        %v2044 = vunpack.c.l.bf16 %v1567
        %v2045 = vunpack.c.h.bf16 %v1567
        %v2046 = vunpack.c.l.bf16 %v1568
        %v2047 = vunpack.c.h.bf16 %v1568
        %v2048 = vunpack.c.l.bf16 %v1569
        %v2049 = vunpack.c.h.bf16 %v1569
        %v2050 = vunpack.c.l.bf16 %v1570
        %v2051 = vunpack.c.h.bf16 %v1570
        %v2052 = vunpack.c.l.bf16 %v1571
        %v2053 = vunpack.c.h.bf16 %v1571
        %v2054 = vunpack.c.l.bf16 %v1572
        %v2055 = vunpack.c.h.bf16 %v1572
        %v2056 = vunpack.c.l.bf16 %v1573
        %v2057 = vunpack.c.h.bf16 %v1573
        %v2058 = vunpack.c.l.bf16 %v1574
        %v2059 = vunpack.c.h.bf16 %v1574
        %v2060 = vunpack.c.l.bf16 %v1575
        %v2061 = vunpack.c.h.bf16 %v1575
        %v2062 = vunpack.c.l.bf16 %v1576
        %v2063 = vunpack.c.h.bf16 %v1576
        %v2064 = vunpack.c.l.bf16 %v1577
        %v2065 = vunpack.c.h.bf16 %v1577
        %v2066 = vunpack.c.l.bf16 %v1578
        %v2067 = vunpack.c.h.bf16 %v1578
        %v2068 = vunpack.c.l.bf16 %v1579
        %v2069 = vunpack.c.h.bf16 %v1579
        %v2070 = vunpack.c.l.bf16 %v1580
        %v2071 = vunpack.c.h.bf16 %v1580
        %v2072 = vunpack.c.l.bf16 %v1581
        %v2073 = vunpack.c.h.bf16 %v1581
        %v2074 = vunpack.c.l.bf16 %v1582
        %v2075 = vunpack.c.h.bf16 %v1582
        %v2076 = vunpack.c.l.bf16 %v1583
        %v2077 = vunpack.c.h.bf16 %v1583
        %v2078 = vunpack.c.l.bf16 %v1584
        %v2079 = vunpack.c.h.bf16 %v1584
        %v2080 = vunpack.c.l.bf16 %v1585
        %v2081 = vunpack.c.h.bf16 %v1585
        %v2082 = vunpack.c.l.bf16 %v1586
        %v2083 = vunpack.c.h.bf16 %v1586
        %v2084 = vunpack.c.l.bf16 %v1587
        %v2085 = vunpack.c.h.bf16 %v1587
        %v2086 = vunpack.c.l.bf16 %v1588
        %v2087 = vunpack.c.h.bf16 %v1588
        %v2088 = vunpack.c.l.bf16 %v1589
        %v2089 = vunpack.c.h.bf16 %v1589
        %v2090 = vunpack.c.l.bf16 %v1590
        %v2091 = vunpack.c.h.bf16 %v1590
        %v2092 = vunpack.c.l.bf16 %v1591
        %v2093 = vunpack.c.h.bf16 %v1591
        %v2094 = vunpack.c.l.bf16 %v1592
        %v2095 = vunpack.c.h.bf16 %v1592
        %v2096 = vunpack.c.l.bf16 %v1593
        %v2097 = vunpack.c.h.bf16 %v1593
        %v2098 = vunpack.c.l.bf16 %v1594
        %v2099 = vunpack.c.h.bf16 %v1594
        %v2100 = vunpack.c.l.bf16 %v1595
        %v2101 = vunpack.c.h.bf16 %v1595
        %v2102 = vunpack.c.l.bf16 %v1596
        %v2103 = vunpack.c.h.bf16 %v1596
        %v2104 = vunpack.c.l.bf16 %v1597
        %v2105 = vunpack.c.h.bf16 %v1597
        %v2106 = vunpack.c.l.bf16 %v1598
        %v2107 = vunpack.c.h.bf16 %v1598
        %v2108 = vunpack.c.l.bf16 %v1599
        %v2109 = vunpack.c.h.bf16 %v1599
        %v2110 = vunpack.c.l.bf16 %v1600
        %v2111 = vunpack.c.h.bf16 %v1600
        %v2112 = vunpack.c.l.bf16 %v1601
        %v2113 = vunpack.c.h.bf16 %v1601
        %v2114 = vadd.f32 %v1602, %v1604
        %v2115 = vadd.f32 %v2114, %v1606
        %v2116 = vadd.f32 %v2115, %v1608
        %v2117 = vadd.f32 %v2116, %v1610
        %v2118 = vadd.f32 %v2117, %v1612
        %v2119 = vadd.f32 %v2118, %v1614
        %v2120 = vadd.f32 %v2119, %v1616
        %v2121 = vrot.slane %v2120, 4
        %v2122 = vadd.f32 %v2120, %v2121
        %v2123 = vrot.slane %v2122, 2
        %v2124 = vadd.f32 %v2122, %v2123
        %v2125 = vrot.slane %v2124, 1
        %v2126 = vadd.f32 %v2124, %v2125
        %v2127 = vadd.f32 %v1603, %v1605
        %v2128 = vadd.f32 %v2127, %v1607
        %v2129 = vadd.f32 %v2128, %v1609
        %v2130 = vadd.f32 %v2129, %v1611
        %v2131 = vadd.f32 %v2130, %v1613
        %v2132 = vadd.f32 %v2131, %v1615
        %v2133 = vadd.f32 %v2132, %v1617
        %v2134 = vrot.slane %v2133, 4
        %v2135 = vadd.f32 %v2133, %v2134
        %v2136 = vrot.slane %v2135, 2
        %v2137 = vadd.f32 %v2135, %v2136
        %v2138 = vrot.slane %v2137, 1
        %v2139 = vadd.f32 %v2137, %v2138
        %v2140 = vadd.f32 %v1618, %v1620
        %v2141 = vadd.f32 %v2140, %v1622
        %v2142 = vadd.f32 %v2141, %v1624
        %v2143 = vadd.f32 %v2142, %v1626
        %v2144 = vadd.f32 %v2143, %v1628
        %v2145 = vadd.f32 %v2144, %v1630
        %v2146 = vadd.f32 %v2145, %v1632
        %v2147 = vrot.slane %v2146, 4
        %v2148 = vadd.f32 %v2146, %v2147
        %v2149 = vrot.slane %v2148, 2
        %v2150 = vadd.f32 %v2148, %v2149
        %v2151 = vrot.slane %v2150, 1
        %v2152 = vadd.f32 %v2150, %v2151
        %v2153 = vadd.f32 %v1619, %v1621
        %v2154 = vadd.f32 %v2153, %v1623
        %v2155 = vadd.f32 %v2154, %v1625
        %v2156 = vadd.f32 %v2155, %v1627
        %v2157 = vadd.f32 %v2156, %v1629
        %v2158 = vadd.f32 %v2157, %v1631
        %v2159 = vadd.f32 %v2158, %v1633
        %v2160 = vrot.slane %v2159, 4
        %v2161 = vadd.f32 %v2159, %v2160
        %v2162 = vrot.slane %v2161, 2
        %v2163 = vadd.f32 %v2161, %v2162
        %v2164 = vrot.slane %v2163, 1
        %v2165 = vadd.f32 %v2163, %v2164
        %v2166 = vadd.f32 %v1634, %v1636
        %v2167 = vadd.f32 %v2166, %v1638
        %v2168 = vadd.f32 %v2167, %v1640
        %v2169 = vadd.f32 %v2168, %v1642
        %v2170 = vadd.f32 %v2169, %v1644
        %v2171 = vadd.f32 %v2170, %v1646
        %v2172 = vadd.f32 %v2171, %v1648
        %v2173 = vrot.slane %v2172, 4
        %v2174 = vadd.f32 %v2172, %v2173
        %v2175 = vrot.slane %v2174, 2
        %v2176 = vadd.f32 %v2174, %v2175
        %v2177 = vrot.slane %v2176, 1
        %v2178 = vadd.f32 %v2176, %v2177
        %v2179 = vadd.f32 %v1635, %v1637
        %v2180 = vadd.f32 %v2179, %v1639
        %v2181 = vadd.f32 %v2180, %v1641
        %v2182 = vadd.f32 %v2181, %v1643
        %v2183 = vadd.f32 %v2182, %v1645
        %v2184 = vadd.f32 %v2183, %v1647
        %v2185 = vadd.f32 %v2184, %v1649
        %v2186 = vrot.slane %v2185, 4
        %v2187 = vadd.f32 %v2185, %v2186
        %v2188 = vrot.slane %v2187, 2
        %v2189 = vadd.f32 %v2187, %v2188
        %v2190 = vrot.slane %v2189, 1
        %v2191 = vadd.f32 %v2189, %v2190
        %v2192 = vadd.f32 %v1650, %v1652
        %v2193 = vadd.f32 %v2192, %v1654
        %v2194 = vadd.f32 %v2193, %v1656
        %v2195 = vadd.f32 %v2194, %v1658
        %v2196 = vadd.f32 %v2195, %v1660
        %v2197 = vadd.f32 %v2196, %v1662
        %v2198 = vadd.f32 %v2197, %v1664
        %v2199 = vrot.slane %v2198, 4
        %v2200 = vadd.f32 %v2198, %v2199
        %v2201 = vrot.slane %v2200, 2
        %v2202 = vadd.f32 %v2200, %v2201
        %v2203 = vrot.slane %v2202, 1
        %v2204 = vadd.f32 %v2202, %v2203
        %v2205 = vadd.f32 %v1651, %v1653
        %v2206 = vadd.f32 %v2205, %v1655
        %v2207 = vadd.f32 %v2206, %v1657
        %v2208 = vadd.f32 %v2207, %v1659
        %v2209 = vadd.f32 %v2208, %v1661
        %v2210 = vadd.f32 %v2209, %v1663
        %v2211 = vadd.f32 %v2210, %v1665
        %v2212 = vrot.slane %v2211, 4
        %v2213 = vadd.f32 %v2211, %v2212
        %v2214 = vrot.slane %v2213, 2
        %v2215 = vadd.f32 %v2213, %v2214
        %v2216 = vrot.slane %v2215, 1
        %v2217 = vadd.f32 %v2215, %v2216
        %v2218 = vadd.f32 %v1666, %v1668
        %v2219 = vadd.f32 %v2218, %v1670
        %v2220 = vadd.f32 %v2219, %v1672
        %v2221 = vadd.f32 %v2220, %v1674
        %v2222 = vadd.f32 %v2221, %v1676
        %v2223 = vadd.f32 %v2222, %v1678
        %v2224 = vadd.f32 %v2223, %v1680
        %v2225 = vrot.slane %v2224, 4
        %v2226 = vadd.f32 %v2224, %v2225
        %v2227 = vrot.slane %v2226, 2
        %v2228 = vadd.f32 %v2226, %v2227
        %v2229 = vrot.slane %v2228, 1
        %v2230 = vadd.f32 %v2228, %v2229
        %v2231 = vadd.f32 %v1667, %v1669
        %v2232 = vadd.f32 %v2231, %v1671
        %v2233 = vadd.f32 %v2232, %v1673
        %v2234 = vadd.f32 %v2233, %v1675
        %v2235 = vadd.f32 %v2234, %v1677
        %v2236 = vadd.f32 %v2235, %v1679
        %v2237 = vadd.f32 %v2236, %v1681
        %v2238 = vrot.slane %v2237, 4
        %v2239 = vadd.f32 %v2237, %v2238
        %v2240 = vrot.slane %v2239, 2
        %v2241 = vadd.f32 %v2239, %v2240
        %v2242 = vrot.slane %v2241, 1
        %v2243 = vadd.f32 %v2241, %v2242
        %v2244 = vadd.f32 %v1682, %v1684
        %v2245 = vadd.f32 %v2244, %v1686
        %v2246 = vadd.f32 %v2245, %v1688
        %v2247 = vadd.f32 %v2246, %v1690
        %v2248 = vadd.f32 %v2247, %v1692
        %v2249 = vadd.f32 %v2248, %v1694
        %v2250 = vadd.f32 %v2249, %v1696
        %v2251 = vrot.slane %v2250, 4
        %v2252 = vadd.f32 %v2250, %v2251
        %v2253 = vrot.slane %v2252, 2
        %v2254 = vadd.f32 %v2252, %v2253
        %v2255 = vrot.slane %v2254, 1
        %v2256 = vadd.f32 %v2254, %v2255
        %v2257 = vadd.f32 %v1683, %v1685
        %v2258 = vadd.f32 %v2257, %v1687
        %v2259 = vadd.f32 %v2258, %v1689
        %v2260 = vadd.f32 %v2259, %v1691
        %v2261 = vadd.f32 %v2260, %v1693
        %v2262 = vadd.f32 %v2261, %v1695
        %v2263 = vadd.f32 %v2262, %v1697
        %v2264 = vrot.slane %v2263, 4
        %v2265 = vadd.f32 %v2263, %v2264
        %v2266 = vrot.slane %v2265, 2
        %v2267 = vadd.f32 %v2265, %v2266
        %v2268 = vrot.slane %v2267, 1
        %v2269 = vadd.f32 %v2267, %v2268
        %v2270 = vadd.f32 %v1698, %v1700
        %v2271 = vadd.f32 %v2270, %v1702
        %v2272 = vadd.f32 %v2271, %v1704
        %v2273 = vadd.f32 %v2272, %v1706
        %v2274 = vadd.f32 %v2273, %v1708
        %v2275 = vadd.f32 %v2274, %v1710
        %v2276 = vadd.f32 %v2275, %v1712
        %v2277 = vrot.slane %v2276, 4
        %v2278 = vadd.f32 %v2276, %v2277
        %v2279 = vrot.slane %v2278, 2
        %v2280 = vadd.f32 %v2278, %v2279
        %v2281 = vrot.slane %v2280, 1
        %v2282 = vadd.f32 %v2280, %v2281
        %v2283 = vadd.f32 %v1699, %v1701
        %v2284 = vadd.f32 %v2283, %v1703
        %v2285 = vadd.f32 %v2284, %v1705
        %v2286 = vadd.f32 %v2285, %v1707
        %v2287 = vadd.f32 %v2286, %v1709
        %v2288 = vadd.f32 %v2287, %v1711
        %v2289 = vadd.f32 %v2288, %v1713
        %v2290 = vrot.slane %v2289, 4
        %v2291 = vadd.f32 %v2289, %v2290
        %v2292 = vrot.slane %v2291, 2
        %v2293 = vadd.f32 %v2291, %v2292
        %v2294 = vrot.slane %v2293, 1
        %v2295 = vadd.f32 %v2293, %v2294
        %v2296 = vadd.f32 %v1714, %v1716
        %v2297 = vadd.f32 %v2296, %v1718
        %v2298 = vadd.f32 %v2297, %v1720
        %v2299 = vadd.f32 %v2298, %v1722
        %v2300 = vadd.f32 %v2299, %v1724
        %v2301 = vadd.f32 %v2300, %v1726
        %v2302 = vadd.f32 %v2301, %v1728
        %v2303 = vrot.slane %v2302, 4
        %v2304 = vadd.f32 %v2302, %v2303
        %v2305 = vrot.slane %v2304, 2
        %v2306 = vadd.f32 %v2304, %v2305
        %v2307 = vrot.slane %v2306, 1
        %v2308 = vadd.f32 %v2306, %v2307
        %v2309 = vadd.f32 %v1715, %v1717
        %v2310 = vadd.f32 %v2309, %v1719
        %v2311 = vadd.f32 %v2310, %v1721
        %v2312 = vadd.f32 %v2311, %v1723
        %v2313 = vadd.f32 %v2312, %v1725
        %v2314 = vadd.f32 %v2313, %v1727
        %v2315 = vadd.f32 %v2314, %v1729
        %v2316 = vrot.slane %v2315, 4
        %v2317 = vadd.f32 %v2315, %v2316
        %v2318 = vrot.slane %v2317, 2
        %v2319 = vadd.f32 %v2317, %v2318
        %v2320 = vrot.slane %v2319, 1
        %v2321 = vadd.f32 %v2319, %v2320
        %v2322 = vadd.f32 %v1730, %v1732
        %v2323 = vadd.f32 %v2322, %v1734
        %v2324 = vadd.f32 %v2323, %v1736
        %v2325 = vadd.f32 %v2324, %v1738
        %v2326 = vadd.f32 %v2325, %v1740
        %v2327 = vadd.f32 %v2326, %v1742
        %v2328 = vadd.f32 %v2327, %v1744
        %v2329 = vrot.slane %v2328, 4
        %v2330 = vadd.f32 %v2328, %v2329
        %v2331 = vrot.slane %v2330, 2
        %v2332 = vadd.f32 %v2330, %v2331
        %v2333 = vrot.slane %v2332, 1
        %v2334 = vadd.f32 %v2332, %v2333
        %v2335 = vadd.f32 %v1731, %v1733
        %v2336 = vadd.f32 %v2335, %v1735
        %v2337 = vadd.f32 %v2336, %v1737
        %v2338 = vadd.f32 %v2337, %v1739
        %v2339 = vadd.f32 %v2338, %v1741
        %v2340 = vadd.f32 %v2339, %v1743
        %v2341 = vadd.f32 %v2340, %v1745
        %v2342 = vrot.slane %v2341, 4
        %v2343 = vadd.f32 %v2341, %v2342
        %v2344 = vrot.slane %v2343, 2
        %v2345 = vadd.f32 %v2343, %v2344
        %v2346 = vrot.slane %v2345, 1
        %v2347 = vadd.f32 %v2345, %v2346
        %v2348 = vadd.f32 %v1746, %v1748
        %v2349 = vadd.f32 %v2348, %v1750
        %v2350 = vadd.f32 %v2349, %v1752
        %v2351 = vadd.f32 %v2350, %v1754
        %v2352 = vadd.f32 %v2351, %v1756
        %v2353 = vadd.f32 %v2352, %v1758
        %v2354 = vadd.f32 %v2353, %v1760
        %v2355 = vrot.slane %v2354, 4
        %v2356 = vadd.f32 %v2354, %v2355
        %v2357 = vrot.slane %v2356, 2
        %v2358 = vadd.f32 %v2356, %v2357
        %v2359 = vrot.slane %v2358, 1
        %v2360 = vadd.f32 %v2358, %v2359
        %v2361 = vadd.f32 %v1747, %v1749
        %v2362 = vadd.f32 %v2361, %v1751
        %v2363 = vadd.f32 %v2362, %v1753
        %v2364 = vadd.f32 %v2363, %v1755
        %v2365 = vadd.f32 %v2364, %v1757
        %v2366 = vadd.f32 %v2365, %v1759
        %v2367 = vadd.f32 %v2366, %v1761
        %v2368 = vrot.slane %v2367, 4
        %v2369 = vadd.f32 %v2367, %v2368
        %v2370 = vrot.slane %v2369, 2
        %v2371 = vadd.f32 %v2369, %v2370
        %v2372 = vrot.slane %v2371, 1
        %v2373 = vadd.f32 %v2371, %v2372
        %v2374 = vadd.f32 %v1762, %v1764
        %v2375 = vadd.f32 %v2374, %v1766
        %v2376 = vadd.f32 %v2375, %v1768
        %v2377 = vadd.f32 %v2376, %v1770
        %v2378 = vadd.f32 %v2377, %v1772
        %v2379 = vadd.f32 %v2378, %v1774
        %v2380 = vadd.f32 %v2379, %v1776
        %v2381 = vrot.slane %v2380, 4
        %v2382 = vadd.f32 %v2380, %v2381
        %v2383 = vrot.slane %v2382, 2
        %v2384 = vadd.f32 %v2382, %v2383
        %v2385 = vrot.slane %v2384, 1
        %v2386 = vadd.f32 %v2384, %v2385
        %v2387 = vadd.f32 %v1763, %v1765
        %v2388 = vadd.f32 %v2387, %v1767
        %v2389 = vadd.f32 %v2388, %v1769
        %v2390 = vadd.f32 %v2389, %v1771
        %v2391 = vadd.f32 %v2390, %v1773
        %v2392 = vadd.f32 %v2391, %v1775
        %v2393 = vadd.f32 %v2392, %v1777
        %v2394 = vrot.slane %v2393, 4
        %v2395 = vadd.f32 %v2393, %v2394
        %v2396 = vrot.slane %v2395, 2
        %v2397 = vadd.f32 %v2395, %v2396
        %v2398 = vrot.slane %v2397, 1
        %v2399 = vadd.f32 %v2397, %v2398
        %v2400 = vadd.f32 %v1778, %v1780
        %v2401 = vadd.f32 %v2400, %v1782
        %v2402 = vadd.f32 %v2401, %v1784
        %v2403 = vadd.f32 %v2402, %v1786
        %v2404 = vadd.f32 %v2403, %v1788
        %v2405 = vadd.f32 %v2404, %v1790
        %v2406 = vadd.f32 %v2405, %v1792
        %v2407 = vrot.slane %v2406, 4
        %v2408 = vadd.f32 %v2406, %v2407
        %v2409 = vrot.slane %v2408, 2
        %v2410 = vadd.f32 %v2408, %v2409
        %v2411 = vrot.slane %v2410, 1
        %v2412 = vadd.f32 %v2410, %v2411
        %v2413 = vadd.f32 %v1779, %v1781
        %v2414 = vadd.f32 %v2413, %v1783
        %v2415 = vadd.f32 %v2414, %v1785
        %v2416 = vadd.f32 %v2415, %v1787
        %v2417 = vadd.f32 %v2416, %v1789
        %v2418 = vadd.f32 %v2417, %v1791
        %v2419 = vadd.f32 %v2418, %v1793
        %v2420 = vrot.slane %v2419, 4
        %v2421 = vadd.f32 %v2419, %v2420
        %v2422 = vrot.slane %v2421, 2
        %v2423 = vadd.f32 %v2421, %v2422
        %v2424 = vrot.slane %v2423, 1
        %v2425 = vadd.f32 %v2423, %v2424
        %v2426 = vadd.f32 %v1794, %v1796
        %v2427 = vadd.f32 %v2426, %v1798
        %v2428 = vadd.f32 %v2427, %v1800
        %v2429 = vadd.f32 %v2428, %v1802
        %v2430 = vadd.f32 %v2429, %v1804
        %v2431 = vadd.f32 %v2430, %v1806
        %v2432 = vadd.f32 %v2431, %v1808
        %v2433 = vrot.slane %v2432, 4
        %v2434 = vadd.f32 %v2432, %v2433
        %v2435 = vrot.slane %v2434, 2
        %v2436 = vadd.f32 %v2434, %v2435
        %v2437 = vrot.slane %v2436, 1
        %v2438 = vadd.f32 %v2436, %v2437
        %v2439 = vadd.f32 %v1795, %v1797
        %v2440 = vadd.f32 %v2439, %v1799
        %v2441 = vadd.f32 %v2440, %v1801
        %v2442 = vadd.f32 %v2441, %v1803
        %v2443 = vadd.f32 %v2442, %v1805
        %v2444 = vadd.f32 %v2443, %v1807
        %v2445 = vadd.f32 %v2444, %v1809
        %v2446 = vrot.slane %v2445, 4
        %v2447 = vadd.f32 %v2445, %v2446
        %v2448 = vrot.slane %v2447, 2
        %v2449 = vadd.f32 %v2447, %v2448
        %v2450 = vrot.slane %v2449, 1
        %v2451 = vadd.f32 %v2449, %v2450
        %v2452 = vadd.f32 %v1810, %v1812
        %v2453 = vadd.f32 %v2452, %v1814
        %v2454 = vadd.f32 %v2453, %v1816
        %v2455 = vadd.f32 %v2454, %v1818
        %v2456 = vadd.f32 %v2455, %v1820
        %v2457 = vadd.f32 %v2456, %v1822
        %v2458 = vadd.f32 %v2457, %v1824
        %v2459 = vrot.slane %v2458, 4
        %v2460 = vadd.f32 %v2458, %v2459
        %v2461 = vrot.slane %v2460, 2
        %v2462 = vadd.f32 %v2460, %v2461
        %v2463 = vrot.slane %v2462, 1
        %v2464 = vadd.f32 %v2462, %v2463
        %v2465 = vadd.f32 %v1811, %v1813
        %v2466 = vadd.f32 %v2465, %v1815
        %v2467 = vadd.f32 %v2466, %v1817
        %v2468 = vadd.f32 %v2467, %v1819
        %v2469 = vadd.f32 %v2468, %v1821
        %v2470 = vadd.f32 %v2469, %v1823
        %v2471 = vadd.f32 %v2470, %v1825
        %v2472 = vrot.slane %v2471, 4
        %v2473 = vadd.f32 %v2471, %v2472
        %v2474 = vrot.slane %v2473, 2
        %v2475 = vadd.f32 %v2473, %v2474
        %v2476 = vrot.slane %v2475, 1
        %v2477 = vadd.f32 %v2475, %v2476
        %v2478 = vadd.f32 %v1826, %v1828
        %v2479 = vadd.f32 %v2478, %v1830
        %v2480 = vadd.f32 %v2479, %v1832
        %v2481 = vadd.f32 %v2480, %v1834
        %v2482 = vadd.f32 %v2481, %v1836
        %v2483 = vadd.f32 %v2482, %v1838
        %v2484 = vadd.f32 %v2483, %v1840
        %v2485 = vrot.slane %v2484, 4
        %v2486 = vadd.f32 %v2484, %v2485
        %v2487 = vrot.slane %v2486, 2
        %v2488 = vadd.f32 %v2486, %v2487
        %v2489 = vrot.slane %v2488, 1
        %v2490 = vadd.f32 %v2488, %v2489
        %v2491 = vadd.f32 %v1827, %v1829
        %v2492 = vadd.f32 %v2491, %v1831
        %v2493 = vadd.f32 %v2492, %v1833
        %v2494 = vadd.f32 %v2493, %v1835
        %v2495 = vadd.f32 %v2494, %v1837
        %v2496 = vadd.f32 %v2495, %v1839
        %v2497 = vadd.f32 %v2496, %v1841
        %v2498 = vrot.slane %v2497, 4
        %v2499 = vadd.f32 %v2497, %v2498
        %v2500 = vrot.slane %v2499, 2
        %v2501 = vadd.f32 %v2499, %v2500
        %v2502 = vrot.slane %v2501, 1
        %v2503 = vadd.f32 %v2501, %v2502
        %v2504 = vadd.f32 %v1842, %v1844
        %v2505 = vadd.f32 %v2504, %v1846
        %v2506 = vadd.f32 %v2505, %v1848
        %v2507 = vadd.f32 %v2506, %v1850
        %v2508 = vadd.f32 %v2507, %v1852
        %v2509 = vadd.f32 %v2508, %v1854
        %v2510 = vadd.f32 %v2509, %v1856
        %v2511 = vrot.slane %v2510, 4
        %v2512 = vadd.f32 %v2510, %v2511
        %v2513 = vrot.slane %v2512, 2
        %v2514 = vadd.f32 %v2512, %v2513
        %v2515 = vrot.slane %v2514, 1
        %v2516 = vadd.f32 %v2514, %v2515
        %v2517 = vadd.f32 %v1843, %v1845
        %v2518 = vadd.f32 %v2517, %v1847
        %v2519 = vadd.f32 %v2518, %v1849
        %v2520 = vadd.f32 %v2519, %v1851
        %v2521 = vadd.f32 %v2520, %v1853
        %v2522 = vadd.f32 %v2521, %v1855
        %v2523 = vadd.f32 %v2522, %v1857
        %v2524 = vrot.slane %v2523, 4
        %v2525 = vadd.f32 %v2523, %v2524
        %v2526 = vrot.slane %v2525, 2
        %v2527 = vadd.f32 %v2525, %v2526
        %v2528 = vrot.slane %v2527, 1
        %v2529 = vadd.f32 %v2527, %v2528
        %v2530 = vadd.f32 %v1858, %v1860
        %v2531 = vadd.f32 %v2530, %v1862
        %v2532 = vadd.f32 %v2531, %v1864
        %v2533 = vadd.f32 %v2532, %v1866
        %v2534 = vadd.f32 %v2533, %v1868
        %v2535 = vadd.f32 %v2534, %v1870
        %v2536 = vadd.f32 %v2535, %v1872
        %v2537 = vrot.slane %v2536, 4
        %v2538 = vadd.f32 %v2536, %v2537
        %v2539 = vrot.slane %v2538, 2
        %v2540 = vadd.f32 %v2538, %v2539
        %v2541 = vrot.slane %v2540, 1
        %v2542 = vadd.f32 %v2540, %v2541
        %v2543 = vadd.f32 %v1859, %v1861
        %v2544 = vadd.f32 %v2543, %v1863
        %v2545 = vadd.f32 %v2544, %v1865
        %v2546 = vadd.f32 %v2545, %v1867
        %v2547 = vadd.f32 %v2546, %v1869
        %v2548 = vadd.f32 %v2547, %v1871
        %v2549 = vadd.f32 %v2548, %v1873
        %v2550 = vrot.slane %v2549, 4
        %v2551 = vadd.f32 %v2549, %v2550
        %v2552 = vrot.slane %v2551, 2
        %v2553 = vadd.f32 %v2551, %v2552
        %v2554 = vrot.slane %v2553, 1
        %v2555 = vadd.f32 %v2553, %v2554
        %v2556 = vadd.f32 %v1874, %v1876
        %v2557 = vadd.f32 %v2556, %v1878
        %v2558 = vadd.f32 %v2557, %v1880
        %v2559 = vadd.f32 %v2558, %v1882
        %v2560 = vadd.f32 %v2559, %v1884
        %v2561 = vadd.f32 %v2560, %v1886
        %v2562 = vadd.f32 %v2561, %v1888
        %v2563 = vrot.slane %v2562, 4
        %v2564 = vadd.f32 %v2562, %v2563
        %v2565 = vrot.slane %v2564, 2
        %v2566 = vadd.f32 %v2564, %v2565
        %v2567 = vrot.slane %v2566, 1
        %v2568 = vadd.f32 %v2566, %v2567
        %v2569 = vadd.f32 %v1875, %v1877
        %v2570 = vadd.f32 %v2569, %v1879
        %v2571 = vadd.f32 %v2570, %v1881
        %v2572 = vadd.f32 %v2571, %v1883
        %v2573 = vadd.f32 %v2572, %v1885
        %v2574 = vadd.f32 %v2573, %v1887
        %v2575 = vadd.f32 %v2574, %v1889
        %v2576 = vrot.slane %v2575, 4
        %v2577 = vadd.f32 %v2575, %v2576
        %v2578 = vrot.slane %v2577, 2
        %v2579 = vadd.f32 %v2577, %v2578
        %v2580 = vrot.slane %v2579, 1
        %v2581 = vadd.f32 %v2579, %v2580
        %v2582 = vadd.f32 %v1890, %v1892
        %v2583 = vadd.f32 %v2582, %v1894
        %v2584 = vadd.f32 %v2583, %v1896
        %v2585 = vadd.f32 %v2584, %v1898
        %v2586 = vadd.f32 %v2585, %v1900
        %v2587 = vadd.f32 %v2586, %v1902
        %v2588 = vadd.f32 %v2587, %v1904
        %v2589 = vrot.slane %v2588, 4
        %v2590 = vadd.f32 %v2588, %v2589
        %v2591 = vrot.slane %v2590, 2
        %v2592 = vadd.f32 %v2590, %v2591
        %v2593 = vrot.slane %v2592, 1
        %v2594 = vadd.f32 %v2592, %v2593
        %v2595 = vadd.f32 %v1891, %v1893
        %v2596 = vadd.f32 %v2595, %v1895
        %v2597 = vadd.f32 %v2596, %v1897
        %v2598 = vadd.f32 %v2597, %v1899
        %v2599 = vadd.f32 %v2598, %v1901
        %v2600 = vadd.f32 %v2599, %v1903
        %v2601 = vadd.f32 %v2600, %v1905
        %v2602 = vrot.slane %v2601, 4
        %v2603 = vadd.f32 %v2601, %v2602
        %v2604 = vrot.slane %v2603, 2
        %v2605 = vadd.f32 %v2603, %v2604
        %v2606 = vrot.slane %v2605, 1
        %v2607 = vadd.f32 %v2605, %v2606
        %v2608 = vadd.f32 %v1906, %v1908
        %v2609 = vadd.f32 %v2608, %v1910
        %v2610 = vadd.f32 %v2609, %v1912
        %v2611 = vadd.f32 %v2610, %v1914
        %v2612 = vadd.f32 %v2611, %v1916
        %v2613 = vadd.f32 %v2612, %v1918
        %v2614 = vadd.f32 %v2613, %v1920
        %v2615 = vrot.slane %v2614, 4
        %v2616 = vadd.f32 %v2614, %v2615
        %v2617 = vrot.slane %v2616, 2
        %v2618 = vadd.f32 %v2616, %v2617
        %v2619 = vrot.slane %v2618, 1
        %v2620 = vadd.f32 %v2618, %v2619
        %v2621 = vadd.f32 %v1907, %v1909
        %v2622 = vadd.f32 %v2621, %v1911
        %v2623 = vadd.f32 %v2622, %v1913
        %v2624 = vadd.f32 %v2623, %v1915
        %v2625 = vadd.f32 %v2624, %v1917
        %v2626 = vadd.f32 %v2625, %v1919
        %v2627 = vadd.f32 %v2626, %v1921
        %v2628 = vrot.slane %v2627, 4
        %v2629 = vadd.f32 %v2627, %v2628
        %v2630 = vrot.slane %v2629, 2
        %v2631 = vadd.f32 %v2629, %v2630
        %v2632 = vrot.slane %v2631, 1
        %v2633 = vadd.f32 %v2631, %v2632
        %v2634 = vadd.f32 %v1922, %v1924
        %v2635 = vadd.f32 %v2634, %v1926
        %v2636 = vadd.f32 %v2635, %v1928
        %v2637 = vadd.f32 %v2636, %v1930
        %v2638 = vadd.f32 %v2637, %v1932
        %v2639 = vadd.f32 %v2638, %v1934
        %v2640 = vadd.f32 %v2639, %v1936
        %v2641 = vrot.slane %v2640, 4
        %v2642 = vadd.f32 %v2640, %v2641
        %v2643 = vrot.slane %v2642, 2
        %v2644 = vadd.f32 %v2642, %v2643
        %v2645 = vrot.slane %v2644, 1
        %v2646 = vadd.f32 %v2644, %v2645
        %v2647 = vadd.f32 %v1923, %v1925
        %v2648 = vadd.f32 %v2647, %v1927
        %v2649 = vadd.f32 %v2648, %v1929
        %v2650 = vadd.f32 %v2649, %v1931
        %v2651 = vadd.f32 %v2650, %v1933
        %v2652 = vadd.f32 %v2651, %v1935
        %v2653 = vadd.f32 %v2652, %v1937
        %v2654 = vrot.slane %v2653, 4
        %v2655 = vadd.f32 %v2653, %v2654
        %v2656 = vrot.slane %v2655, 2
        %v2657 = vadd.f32 %v2655, %v2656
        %v2658 = vrot.slane %v2657, 1
        %v2659 = vadd.f32 %v2657, %v2658
        %v2660 = vadd.f32 %v1938, %v1940
        %v2661 = vadd.f32 %v2660, %v1942
        %v2662 = vadd.f32 %v2661, %v1944
        %v2663 = vadd.f32 %v2662, %v1946
        %v2664 = vadd.f32 %v2663, %v1948
        %v2665 = vadd.f32 %v2664, %v1950
        %v2666 = vadd.f32 %v2665, %v1952
        %v2667 = vrot.slane %v2666, 4
        %v2668 = vadd.f32 %v2666, %v2667
        %v2669 = vrot.slane %v2668, 2
        %v2670 = vadd.f32 %v2668, %v2669
        %v2671 = vrot.slane %v2670, 1
        %v2672 = vadd.f32 %v2670, %v2671
        %v2673 = vadd.f32 %v1939, %v1941
        %v2674 = vadd.f32 %v2673, %v1943
        %v2675 = vadd.f32 %v2674, %v1945
        %v2676 = vadd.f32 %v2675, %v1947
        %v2677 = vadd.f32 %v2676, %v1949
        %v2678 = vadd.f32 %v2677, %v1951
        %v2679 = vadd.f32 %v2678, %v1953
        %v2680 = vrot.slane %v2679, 4
        %v2681 = vadd.f32 %v2679, %v2680
        %v2682 = vrot.slane %v2681, 2
        %v2683 = vadd.f32 %v2681, %v2682
        %v2684 = vrot.slane %v2683, 1
        %v2685 = vadd.f32 %v2683, %v2684
        %v2686 = vadd.f32 %v1954, %v1956
        %v2687 = vadd.f32 %v2686, %v1958
        %v2688 = vadd.f32 %v2687, %v1960
        %v2689 = vadd.f32 %v2688, %v1962
        %v2690 = vadd.f32 %v2689, %v1964
        %v2691 = vadd.f32 %v2690, %v1966
        %v2692 = vadd.f32 %v2691, %v1968
        %v2693 = vrot.slane %v2692, 4
        %v2694 = vadd.f32 %v2692, %v2693
        %v2695 = vrot.slane %v2694, 2
        %v2696 = vadd.f32 %v2694, %v2695
        %v2697 = vrot.slane %v2696, 1
        %v2698 = vadd.f32 %v2696, %v2697
        %v2699 = vadd.f32 %v1955, %v1957
        %v2700 = vadd.f32 %v2699, %v1959
        %v2701 = vadd.f32 %v2700, %v1961
        %v2702 = vadd.f32 %v2701, %v1963
        %v2703 = vadd.f32 %v2702, %v1965
        %v2704 = vadd.f32 %v2703, %v1967
        %v2705 = vadd.f32 %v2704, %v1969
        %v2706 = vrot.slane %v2705, 4
        %v2707 = vadd.f32 %v2705, %v2706
        %v2708 = vrot.slane %v2707, 2
        %v2709 = vadd.f32 %v2707, %v2708
        %v2710 = vrot.slane %v2709, 1
        %v2711 = vadd.f32 %v2709, %v2710
        %v2712 = vadd.f32 %v1970, %v1972
        %v2713 = vadd.f32 %v2712, %v1974
        %v2714 = vadd.f32 %v2713, %v1976
        %v2715 = vadd.f32 %v2714, %v1978
        %v2716 = vadd.f32 %v2715, %v1980
        %v2717 = vadd.f32 %v2716, %v1982
        %v2718 = vadd.f32 %v2717, %v1984
        %v2719 = vrot.slane %v2718, 4
        %v2720 = vadd.f32 %v2718, %v2719
        %v2721 = vrot.slane %v2720, 2
        %v2722 = vadd.f32 %v2720, %v2721
        %v2723 = vrot.slane %v2722, 1
        %v2724 = vadd.f32 %v2722, %v2723
        %v2725 = vadd.f32 %v1971, %v1973
        %v2726 = vadd.f32 %v2725, %v1975
        %v2727 = vadd.f32 %v2726, %v1977
        %v2728 = vadd.f32 %v2727, %v1979
        %v2729 = vadd.f32 %v2728, %v1981
        %v2730 = vadd.f32 %v2729, %v1983
        %v2731 = vadd.f32 %v2730, %v1985
        %v2732 = vrot.slane %v2731, 4
        %v2733 = vadd.f32 %v2731, %v2732
        %v2734 = vrot.slane %v2733, 2
        %v2735 = vadd.f32 %v2733, %v2734
        %v2736 = vrot.slane %v2735, 1
        %v2737 = vadd.f32 %v2735, %v2736
        %v2738 = vadd.f32 %v1986, %v1988
        %v2739 = vadd.f32 %v2738, %v1990
        %v2740 = vadd.f32 %v2739, %v1992
        %v2741 = vadd.f32 %v2740, %v1994
        %v2742 = vadd.f32 %v2741, %v1996
        %v2743 = vadd.f32 %v2742, %v1998
        %v2744 = vadd.f32 %v2743, %v2000
        %v2745 = vrot.slane %v2744, 4
        %v2746 = vadd.f32 %v2744, %v2745
        %v2747 = vrot.slane %v2746, 2
        %v2748 = vadd.f32 %v2746, %v2747
        %v2749 = vrot.slane %v2748, 1
        %v2750 = vadd.f32 %v2748, %v2749
        %v2751 = vadd.f32 %v1987, %v1989
        %v2752 = vadd.f32 %v2751, %v1991
        %v2753 = vadd.f32 %v2752, %v1993
        %v2754 = vadd.f32 %v2753, %v1995
        %v2755 = vadd.f32 %v2754, %v1997
        %v2756 = vadd.f32 %v2755, %v1999
        %v2757 = vadd.f32 %v2756, %v2001
        %v2758 = vrot.slane %v2757, 4
        %v2759 = vadd.f32 %v2757, %v2758
        %v2760 = vrot.slane %v2759, 2
        %v2761 = vadd.f32 %v2759, %v2760
        %v2762 = vrot.slane %v2761, 1
        %v2763 = vadd.f32 %v2761, %v2762
        %v2764 = vadd.f32 %v2002, %v2004
        %v2765 = vadd.f32 %v2764, %v2006
        %v2766 = vadd.f32 %v2765, %v2008
        %v2767 = vadd.f32 %v2766, %v2010
        %v2768 = vadd.f32 %v2767, %v2012
        %v2769 = vadd.f32 %v2768, %v2014
        %v2770 = vadd.f32 %v2769, %v2016
        %v2771 = vrot.slane %v2770, 4
        %v2772 = vadd.f32 %v2770, %v2771
        %v2773 = vrot.slane %v2772, 2
        %v2774 = vadd.f32 %v2772, %v2773
        %v2775 = vrot.slane %v2774, 1
        %v2776 = vadd.f32 %v2774, %v2775
        %v2777 = vadd.f32 %v2003, %v2005
        %v2778 = vadd.f32 %v2777, %v2007
        %v2779 = vadd.f32 %v2778, %v2009
        %v2780 = vadd.f32 %v2779, %v2011
        %v2781 = vadd.f32 %v2780, %v2013
        %v2782 = vadd.f32 %v2781, %v2015
        %v2783 = vadd.f32 %v2782, %v2017
        %v2784 = vrot.slane %v2783, 4
        %v2785 = vadd.f32 %v2783, %v2784
        %v2786 = vrot.slane %v2785, 2
        %v2787 = vadd.f32 %v2785, %v2786
        %v2788 = vrot.slane %v2787, 1
        %v2789 = vadd.f32 %v2787, %v2788
        %v2790 = vadd.f32 %v2018, %v2020
        %v2791 = vadd.f32 %v2790, %v2022
        %v2792 = vadd.f32 %v2791, %v2024
        %v2793 = vadd.f32 %v2792, %v2026
        %v2794 = vadd.f32 %v2793, %v2028
        %v2795 = vadd.f32 %v2794, %v2030
        %v2796 = vadd.f32 %v2795, %v2032
        %v2797 = vrot.slane %v2796, 4
        %v2798 = vadd.f32 %v2796, %v2797
        %v2799 = vrot.slane %v2798, 2
        %v2800 = vadd.f32 %v2798, %v2799
        %v2801 = vrot.slane %v2800, 1
        %v2802 = vadd.f32 %v2800, %v2801
        %v2803 = vadd.f32 %v2019, %v2021
        %v2804 = vadd.f32 %v2803, %v2023
        %v2805 = vadd.f32 %v2804, %v2025
        %v2806 = vadd.f32 %v2805, %v2027
        %v2807 = vadd.f32 %v2806, %v2029
        %v2808 = vadd.f32 %v2807, %v2031
        %v2809 = vadd.f32 %v2808, %v2033
        %v2810 = vrot.slane %v2809, 4
        %v2811 = vadd.f32 %v2809, %v2810
        %v2812 = vrot.slane %v2811, 2
        %v2813 = vadd.f32 %v2811, %v2812
        %v2814 = vrot.slane %v2813, 1
        %v2815 = vadd.f32 %v2813, %v2814
        %v2816 = vadd.f32 %v2034, %v2036
        %v2817 = vadd.f32 %v2816, %v2038
        %v2818 = vadd.f32 %v2817, %v2040
        %v2819 = vadd.f32 %v2818, %v2042
        %v2820 = vadd.f32 %v2819, %v2044
        %v2821 = vadd.f32 %v2820, %v2046
        %v2822 = vadd.f32 %v2821, %v2048
        %v2823 = vrot.slane %v2822, 4
        %v2824 = vadd.f32 %v2822, %v2823
        %v2825 = vrot.slane %v2824, 2
        %v2826 = vadd.f32 %v2824, %v2825
        %v2827 = vrot.slane %v2826, 1
        %v2828 = vadd.f32 %v2826, %v2827
        %v2829 = vadd.f32 %v2035, %v2037
        %v2830 = vadd.f32 %v2829, %v2039
        %v2831 = vadd.f32 %v2830, %v2041
        %v2832 = vadd.f32 %v2831, %v2043
        %v2833 = vadd.f32 %v2832, %v2045
        %v2834 = vadd.f32 %v2833, %v2047
        %v2835 = vadd.f32 %v2834, %v2049
        %v2836 = vrot.slane %v2835, 4
        %v2837 = vadd.f32 %v2835, %v2836
        %v2838 = vrot.slane %v2837, 2
        %v2839 = vadd.f32 %v2837, %v2838
        %v2840 = vrot.slane %v2839, 1
        %v2841 = vadd.f32 %v2839, %v2840
        %v2842 = vadd.f32 %v2050, %v2052
        %v2843 = vadd.f32 %v2842, %v2054
        %v2844 = vadd.f32 %v2843, %v2056
        %v2845 = vadd.f32 %v2844, %v2058
        %v2846 = vadd.f32 %v2845, %v2060
        %v2847 = vadd.f32 %v2846, %v2062
        %v2848 = vadd.f32 %v2847, %v2064
        %v2849 = vrot.slane %v2848, 4
        %v2850 = vadd.f32 %v2848, %v2849
        %v2851 = vrot.slane %v2850, 2
        %v2852 = vadd.f32 %v2850, %v2851
        %v2853 = vrot.slane %v2852, 1
        %v2854 = vadd.f32 %v2852, %v2853
        %v2855 = vadd.f32 %v2051, %v2053
        %v2856 = vadd.f32 %v2855, %v2055
        %v2857 = vadd.f32 %v2856, %v2057
        %v2858 = vadd.f32 %v2857, %v2059
        %v2859 = vadd.f32 %v2858, %v2061
        %v2860 = vadd.f32 %v2859, %v2063
        %v2861 = vadd.f32 %v2860, %v2065
        %v2862 = vrot.slane %v2861, 4
        %v2863 = vadd.f32 %v2861, %v2862
        %v2864 = vrot.slane %v2863, 2
        %v2865 = vadd.f32 %v2863, %v2864
        %v2866 = vrot.slane %v2865, 1
        %v2867 = vadd.f32 %v2865, %v2866
        %v2868 = vadd.f32 %v2066, %v2068
        %v2869 = vadd.f32 %v2868, %v2070
        %v2870 = vadd.f32 %v2869, %v2072
        %v2871 = vadd.f32 %v2870, %v2074
        %v2872 = vadd.f32 %v2871, %v2076
        %v2873 = vadd.f32 %v2872, %v2078
        %v2874 = vadd.f32 %v2873, %v2080
        %v2875 = vrot.slane %v2874, 4
        %v2876 = vadd.f32 %v2874, %v2875
        %v2877 = vrot.slane %v2876, 2
        %v2878 = vadd.f32 %v2876, %v2877
        %v2879 = vrot.slane %v2878, 1
        %v2880 = vadd.f32 %v2878, %v2879
        %v2881 = vadd.f32 %v2067, %v2069
        %v2882 = vadd.f32 %v2881, %v2071
        %v2883 = vadd.f32 %v2882, %v2073
        %v2884 = vadd.f32 %v2883, %v2075
        %v2885 = vadd.f32 %v2884, %v2077
        %v2886 = vadd.f32 %v2885, %v2079
        %v2887 = vadd.f32 %v2886, %v2081
        %v2888 = vrot.slane %v2887, 4
        %v2889 = vadd.f32 %v2887, %v2888
        %v2890 = vrot.slane %v2889, 2
        %v2891 = vadd.f32 %v2889, %v2890
        %v2892 = vrot.slane %v2891, 1
        %v2893 = vadd.f32 %v2891, %v2892
        %v2894 = vadd.f32 %v2082, %v2084
        %v2895 = vadd.f32 %v2894, %v2086
        %v2896 = vadd.f32 %v2895, %v2088
        %v2897 = vadd.f32 %v2896, %v2090
        %v2898 = vadd.f32 %v2897, %v2092
        %v2899 = vadd.f32 %v2898, %v2094
        %v2900 = vadd.f32 %v2899, %v2096
        %v2901 = vrot.slane %v2900, 4
        %v2902 = vadd.f32 %v2900, %v2901
        %v2903 = vrot.slane %v2902, 2
        %v2904 = vadd.f32 %v2902, %v2903
        %v2905 = vrot.slane %v2904, 1
        %v2906 = vadd.f32 %v2904, %v2905
        %v2907 = vadd.f32 %v2083, %v2085
        %v2908 = vadd.f32 %v2907, %v2087
        %v2909 = vadd.f32 %v2908, %v2089
        %v2910 = vadd.f32 %v2909, %v2091
        %v2911 = vadd.f32 %v2910, %v2093
        %v2912 = vadd.f32 %v2911, %v2095
        %v2913 = vadd.f32 %v2912, %v2097
        %v2914 = vrot.slane %v2913, 4
        %v2915 = vadd.f32 %v2913, %v2914
        %v2916 = vrot.slane %v2915, 2
        %v2917 = vadd.f32 %v2915, %v2916
        %v2918 = vrot.slane %v2917, 1
        %v2919 = vadd.f32 %v2917, %v2918
        %v2920 = vadd.f32 %v2098, %v2100
        %v2921 = vadd.f32 %v2920, %v2102
        %v2922 = vadd.f32 %v2921, %v2104
        %v2923 = vadd.f32 %v2922, %v2106
        %v2924 = vadd.f32 %v2923, %v2108
        %v2925 = vadd.f32 %v2924, %v2110
        %v2926 = vadd.f32 %v2925, %v2112
        %v2927 = vrot.slane %v2926, 4
        %v2928 = vadd.f32 %v2926, %v2927
        %v2929 = vrot.slane %v2928, 2
        %v2930 = vadd.f32 %v2928, %v2929
        %v2931 = vrot.slane %v2930, 1
        %v2932 = vadd.f32 %v2930, %v2931
        %v2933 = vadd.f32 %v2099, %v2101
        %v2934 = vadd.f32 %v2933, %v2103
        %v2935 = vadd.f32 %v2934, %v2105
        %v2936 = vadd.f32 %v2935, %v2107
        %v2937 = vadd.f32 %v2936, %v2109
        %v2938 = vadd.f32 %v2937, %v2111
        %v2939 = vadd.f32 %v2938, %v2113
        %v2940 = vrot.slane %v2939, 4
        %v2941 = vadd.f32 %v2939, %v2940
        %v2942 = vrot.slane %v2941, 2
        %v2943 = vadd.f32 %v2941, %v2942
        %v2944 = vrot.slane %v2943, 1
        %v2945 = vadd.f32 %v2943, %v2944
        %v3202 = vunpack.c.l.b16 %v1346
        %v3203 = vunpack.c.h.b16 %v1346
        %v3204 = vunpack.c.l.b16 %v1347
        %v3205 = vunpack.c.h.b16 %v1347
        %v3206 = vunpack.c.l.b16 %v1348
        %v3207 = vunpack.c.h.b16 %v1348
        %v3208 = vunpack.c.l.b16 %v1349
        %v3209 = vunpack.c.h.b16 %v1349
        %v3210 = vunpack.c.l.b16 %v1350
        %v3211 = vunpack.c.h.b16 %v1350
        %v3212 = vunpack.c.l.b16 %v1351
        %v3213 = vunpack.c.h.b16 %v1351
        %v3214 = vunpack.c.l.b16 %v1352
        %v3215 = vunpack.c.h.b16 %v1352
        %v3216 = vunpack.c.l.b16 %v1353
        %v3217 = vunpack.c.h.b16 %v1353
        %v3218 = vunpack.c.l.b16 %v1354
        %v3219 = vunpack.c.h.b16 %v1354
        %v3220 = vunpack.c.l.b16 %v1355
        %v3221 = vunpack.c.h.b16 %v1355
        %v3222 = vunpack.c.l.b16 %v1356
        %v3223 = vunpack.c.h.b16 %v1356
        %v3224 = vunpack.c.l.b16 %v1357
        %v3225 = vunpack.c.h.b16 %v1357
        %v3226 = vunpack.c.l.b16 %v1358
        %v3227 = vunpack.c.h.b16 %v1358
        %v3228 = vunpack.c.l.b16 %v1359
        %v3229 = vunpack.c.h.b16 %v1359
        %v3230 = vunpack.c.l.b16 %v1360
        %v3231 = vunpack.c.h.b16 %v1360
        %v3232 = vunpack.c.l.b16 %v1361
        %v3233 = vunpack.c.h.b16 %v1361
        %v3234 = vunpack.c.l.b16 %v1362
        %v3235 = vunpack.c.h.b16 %v1362
        %v3236 = vunpack.c.l.b16 %v1363
        %v3237 = vunpack.c.h.b16 %v1363
        %v3238 = vunpack.c.l.b16 %v1364
        %v3239 = vunpack.c.h.b16 %v1364
        %v3240 = vunpack.c.l.b16 %v1365
        %v3241 = vunpack.c.h.b16 %v1365
        %v3242 = vunpack.c.l.b16 %v1366
        %v3243 = vunpack.c.h.b16 %v1366
        %v3244 = vunpack.c.l.b16 %v1367
        %v3245 = vunpack.c.h.b16 %v1367
        %v3246 = vunpack.c.l.b16 %v1368
        %v3247 = vunpack.c.h.b16 %v1368
        %v3248 = vunpack.c.l.b16 %v1369
        %v3249 = vunpack.c.h.b16 %v1369
        %v3250 = vunpack.c.l.b16 %v1370
        %v3251 = vunpack.c.h.b16 %v1370
        %v3252 = vunpack.c.l.b16 %v1371
        %v3253 = vunpack.c.h.b16 %v1371
        %v3254 = vunpack.c.l.b16 %v1372
        %v3255 = vunpack.c.h.b16 %v1372
        %v3256 = vunpack.c.l.b16 %v1373
        %v3257 = vunpack.c.h.b16 %v1373
        %v3258 = vunpack.c.l.b16 %v1374
        %v3259 = vunpack.c.h.b16 %v1374
        %v3260 = vunpack.c.l.b16 %v1375
        %v3261 = vunpack.c.h.b16 %v1375
        %v3262 = vunpack.c.l.b16 %v1376
        %v3263 = vunpack.c.h.b16 %v1376
        %v3264 = vunpack.c.l.b16 %v1377
        %v3265 = vunpack.c.h.b16 %v1377
        %v3266 = vunpack.c.l.b16 %v1378
        %v3267 = vunpack.c.h.b16 %v1378
        %v3268 = vunpack.c.l.b16 %v1379
        %v3269 = vunpack.c.h.b16 %v1379
        %v3270 = vunpack.c.l.b16 %v1380
        %v3271 = vunpack.c.h.b16 %v1380
        %v3272 = vunpack.c.l.b16 %v1381
        %v3273 = vunpack.c.h.b16 %v1381
        %v3274 = vunpack.c.l.b16 %v1382
        %v3275 = vunpack.c.h.b16 %v1382
        %v3276 = vunpack.c.l.b16 %v1383
        %v3277 = vunpack.c.h.b16 %v1383
        %v3278 = vunpack.c.l.b16 %v1384
        %v3279 = vunpack.c.h.b16 %v1384
        %v3280 = vunpack.c.l.b16 %v1385
        %v3281 = vunpack.c.h.b16 %v1385
        %v3282 = vunpack.c.l.b16 %v1386
        %v3283 = vunpack.c.h.b16 %v1386
        %v3284 = vunpack.c.l.b16 %v1387
        %v3285 = vunpack.c.h.b16 %v1387
        %v3286 = vunpack.c.l.b16 %v1388
        %v3287 = vunpack.c.h.b16 %v1388
        %v3288 = vunpack.c.l.b16 %v1389
        %v3289 = vunpack.c.h.b16 %v1389
        %v3290 = vunpack.c.l.b16 %v1390
        %v3291 = vunpack.c.h.b16 %v1390
        %v3292 = vunpack.c.l.b16 %v1391
        %v3293 = vunpack.c.h.b16 %v1391
        %v3294 = vunpack.c.l.b16 %v1392
        %v3295 = vunpack.c.h.b16 %v1392
        %v3296 = vunpack.c.l.b16 %v1393
        %v3297 = vunpack.c.h.b16 %v1393
        %v3298 = vunpack.c.l.b16 %v1394
        %v3299 = vunpack.c.h.b16 %v1394
        %v3300 = vunpack.c.l.b16 %v1395
        %v3301 = vunpack.c.h.b16 %v1395
        %v3302 = vunpack.c.l.b16 %v1396
        %v3303 = vunpack.c.h.b16 %v1396
        %v3304 = vunpack.c.l.b16 %v1397
        %v3305 = vunpack.c.h.b16 %v1397
        %v3306 = vunpack.c.l.b16 %v1398
        %v3307 = vunpack.c.h.b16 %v1398
        %v3308 = vunpack.c.l.b16 %v1399
        %v3309 = vunpack.c.h.b16 %v1399
        %v3310 = vunpack.c.l.b16 %v1400
        %v3311 = vunpack.c.h.b16 %v1400
        %v3312 = vunpack.c.l.b16 %v1401
        %v3313 = vunpack.c.h.b16 %v1401
        %v3314 = vunpack.c.l.b16 %v1402
        %v3315 = vunpack.c.h.b16 %v1402
        %v3316 = vunpack.c.l.b16 %v1403
        %v3317 = vunpack.c.h.b16 %v1403
        %v3318 = vunpack.c.l.b16 %v1404
        %v3319 = vunpack.c.h.b16 %v1404
        %v3320 = vunpack.c.l.b16 %v1405
        %v3321 = vunpack.c.h.b16 %v1405
        %v3322 = vunpack.c.l.b16 %v1406
        %v3323 = vunpack.c.h.b16 %v1406
        %v3324 = vunpack.c.l.b16 %v1407
        %v3325 = vunpack.c.h.b16 %v1407
        %v3326 = vunpack.c.l.b16 %v1408
        %v3327 = vunpack.c.h.b16 %v1408
        %v3328 = vunpack.c.l.b16 %v1409
        %v3329 = vunpack.c.h.b16 %v1409
        %v3330 = vunpack.c.l.b16 %v1410
        %v3331 = vunpack.c.h.b16 %v1410
        %v3332 = vunpack.c.l.b16 %v1411
        %v3333 = vunpack.c.h.b16 %v1411
        %v3334 = vunpack.c.l.b16 %v1412
        %v3335 = vunpack.c.h.b16 %v1412
        %v3336 = vunpack.c.l.b16 %v1413
        %v3337 = vunpack.c.h.b16 %v1413
        %v3338 = vunpack.c.l.b16 %v1414
        %v3339 = vunpack.c.h.b16 %v1414
        %v3340 = vunpack.c.l.b16 %v1415
        %v3341 = vunpack.c.h.b16 %v1415
        %v3342 = vunpack.c.l.b16 %v1416
        %v3343 = vunpack.c.h.b16 %v1416
        %v3344 = vunpack.c.l.b16 %v1417
        %v3345 = vunpack.c.h.b16 %v1417
        %v3346 = vunpack.c.l.b16 %v1418
        %v3347 = vunpack.c.h.b16 %v1418
        %v3348 = vunpack.c.l.b16 %v1419
        %v3349 = vunpack.c.h.b16 %v1419
        %v3350 = vunpack.c.l.b16 %v1420
        %v3351 = vunpack.c.h.b16 %v1420
        %v3352 = vunpack.c.l.b16 %v1421
        %v3353 = vunpack.c.h.b16 %v1421
        %v3354 = vunpack.c.l.b16 %v1422
        %v3355 = vunpack.c.h.b16 %v1422
        %v3356 = vunpack.c.l.b16 %v1423
        %v3357 = vunpack.c.h.b16 %v1423
        %v3358 = vunpack.c.l.b16 %v1424
        %v3359 = vunpack.c.h.b16 %v1424
        %v3360 = vunpack.c.l.b16 %v1425
        %v3361 = vunpack.c.h.b16 %v1425
        %v3362 = vunpack.c.l.b16 %v1426
        %v3363 = vunpack.c.h.b16 %v1426
        %v3364 = vunpack.c.l.b16 %v1427
        %v3365 = vunpack.c.h.b16 %v1427
        %v3366 = vunpack.c.l.b16 %v1428
        %v3367 = vunpack.c.h.b16 %v1428
        %v3368 = vunpack.c.l.b16 %v1429
        %v3369 = vunpack.c.h.b16 %v1429
        %v3370 = vunpack.c.l.b16 %v1430
        %v3371 = vunpack.c.h.b16 %v1430
        %v3372 = vunpack.c.l.b16 %v1431
        %v3373 = vunpack.c.h.b16 %v1431
        %v3374 = vunpack.c.l.b16 %v1432
        %v3375 = vunpack.c.h.b16 %v1432
        %v3376 = vunpack.c.l.b16 %v1433
        %v3377 = vunpack.c.h.b16 %v1433
        %v3378 = vunpack.c.l.b16 %v1434
        %v3379 = vunpack.c.h.b16 %v1434
        %v3380 = vunpack.c.l.b16 %v1435
        %v3381 = vunpack.c.h.b16 %v1435
        %v3382 = vunpack.c.l.b16 %v1436
        %v3383 = vunpack.c.h.b16 %v1436
        %v3384 = vunpack.c.l.b16 %v1437
        %v3385 = vunpack.c.h.b16 %v1437
        %v3386 = vunpack.c.l.b16 %v1438
        %v3387 = vunpack.c.h.b16 %v1438
        %v3388 = vunpack.c.l.b16 %v1439
        %v3389 = vunpack.c.h.b16 %v1439
        %v3390 = vunpack.c.l.b16 %v1440
        %v3391 = vunpack.c.h.b16 %v1440
        %v3392 = vunpack.c.l.b16 %v1441
        %v3393 = vunpack.c.h.b16 %v1441
        %v3394 = vunpack.c.l.b16 %v1442
        %v3395 = vunpack.c.h.b16 %v1442
        %v3396 = vunpack.c.l.b16 %v1443
        %v3397 = vunpack.c.h.b16 %v1443
        %v3398 = vunpack.c.l.b16 %v1444
        %v3399 = vunpack.c.h.b16 %v1444
        %v3400 = vunpack.c.l.b16 %v1445
        %v3401 = vunpack.c.h.b16 %v1445
        %v3402 = vunpack.c.l.b16 %v1446
        %v3403 = vunpack.c.h.b16 %v1446
        %v3404 = vunpack.c.l.b16 %v1447
        %v3405 = vunpack.c.h.b16 %v1447
        %v3406 = vunpack.c.l.b16 %v1448
        %v3407 = vunpack.c.h.b16 %v1448
        %v3408 = vunpack.c.l.b16 %v1449
        %v3409 = vunpack.c.h.b16 %v1449
        %v3410 = vunpack.c.l.b16 %v1450
        %v3411 = vunpack.c.h.b16 %v1450
        %v3412 = vunpack.c.l.b16 %v1451
        %v3413 = vunpack.c.h.b16 %v1451
        %v3414 = vunpack.c.l.b16 %v1452
        %v3415 = vunpack.c.h.b16 %v1452
        %v3416 = vunpack.c.l.b16 %v1453
        %v3417 = vunpack.c.h.b16 %v1453
        %v3418 = vunpack.c.l.b16 %v1454
        %v3419 = vunpack.c.h.b16 %v1454
        %v3420 = vunpack.c.l.b16 %v1455
        %v3421 = vunpack.c.h.b16 %v1455
        %v3422 = vunpack.c.l.b16 %v1456
        %v3423 = vunpack.c.h.b16 %v1456
        %v3424 = vunpack.c.l.b16 %v1457
        %v3425 = vunpack.c.h.b16 %v1457
        %v3426 = vunpack.c.l.b16 %v1458
        %v3427 = vunpack.c.h.b16 %v1458
        %v3428 = vunpack.c.l.b16 %v1459
        %v3429 = vunpack.c.h.b16 %v1459
        %v3430 = vunpack.c.l.b16 %v1460
        %v3431 = vunpack.c.h.b16 %v1460
        %v3432 = vunpack.c.l.b16 %v1461
        %v3433 = vunpack.c.h.b16 %v1461
        %v3434 = vunpack.c.l.b16 %v1462
        %v3435 = vunpack.c.h.b16 %v1462
        %v3436 = vunpack.c.l.b16 %v1463
        %v3437 = vunpack.c.h.b16 %v1463
        %v3438 = vunpack.c.l.b16 %v1464
        %v3439 = vunpack.c.h.b16 %v1464
        %v3440 = vunpack.c.l.b16 %v1465
        %v3441 = vunpack.c.h.b16 %v1465
        %v3442 = vunpack.c.l.b16 %v1466
        %v3443 = vunpack.c.h.b16 %v1466
        %v3444 = vunpack.c.l.b16 %v1467
        %v3445 = vunpack.c.h.b16 %v1467
        %v3446 = vunpack.c.l.b16 %v1468
        %v3447 = vunpack.c.h.b16 %v1468
        %v3448 = vunpack.c.l.b16 %v1469
        %v3449 = vunpack.c.h.b16 %v1469
        %v3450 = vunpack.c.l.b16 %v1470
        %v3451 = vunpack.c.h.b16 %v1470
        %v3452 = vunpack.c.l.b16 %v1471
        %v3453 = vunpack.c.h.b16 %v1471
        %v3454 = vunpack.c.l.b16 %v1472
        %v3455 = vunpack.c.h.b16 %v1472
        %v3456 = vunpack.c.l.b16 %v1473
        %v3457 = vunpack.c.h.b16 %v1473
        %v3458 = vunpack.c.l.b16 %v1474
        %v3459 = vunpack.c.h.b16 %v1474
        %v3460 = vunpack.c.l.b16 %v1475
        %v3461 = vunpack.c.h.b16 %v1475
        %v3462 = vunpack.c.l.b16 %v1476
        %v3463 = vunpack.c.h.b16 %v1476
        %v3464 = vunpack.c.l.b16 %v1477
        %v3465 = vunpack.c.h.b16 %v1477
        %v3466 = vunpack.c.l.b16 %v1478
        %v3467 = vunpack.c.h.b16 %v1478
        %v3468 = vunpack.c.l.b16 %v1479
        %v3469 = vunpack.c.h.b16 %v1479
        %v3470 = vunpack.c.l.b16 %v1480
        %v3471 = vunpack.c.h.b16 %v1480
        %v3472 = vunpack.c.l.b16 %v1481
        %v3473 = vunpack.c.h.b16 %v1481
        %v3474 = vunpack.c.l.b16 %v1482
        %v3475 = vunpack.c.h.b16 %v1482
        %v3476 = vunpack.c.l.b16 %v1483
        %v3477 = vunpack.c.h.b16 %v1483
        %v3478 = vunpack.c.l.b16 %v1484
        %v3479 = vunpack.c.h.b16 %v1484
        %v3480 = vunpack.c.l.b16 %v1485
        %v3481 = vunpack.c.h.b16 %v1485
        %v3482 = vunpack.c.l.b16 %v1486
        %v3483 = vunpack.c.h.b16 %v1486
        %v3484 = vunpack.c.l.b16 %v1487
        %v3485 = vunpack.c.h.b16 %v1487
        %v3486 = vunpack.c.l.b16 %v1488
        %v3487 = vunpack.c.h.b16 %v1488
        %v3488 = vunpack.c.l.b16 %v1489
        %v3489 = vunpack.c.h.b16 %v1489
        %v3490 = vunpack.c.l.b16 %v1490
        %v3491 = vunpack.c.h.b16 %v1490
        %v3492 = vunpack.c.l.b16 %v1491
        %v3493 = vunpack.c.h.b16 %v1491
        %v3494 = vunpack.c.l.b16 %v1492
        %v3495 = vunpack.c.h.b16 %v1492
        %v3496 = vunpack.c.l.b16 %v1493
        %v3497 = vunpack.c.h.b16 %v1493
        %v3498 = vunpack.c.l.b16 %v1494
        %v3499 = vunpack.c.h.b16 %v1494
        %v3500 = vunpack.c.l.b16 %v1495
        %v3501 = vunpack.c.h.b16 %v1495
        %v3502 = vunpack.c.l.b16 %v1496
        %v3503 = vunpack.c.h.b16 %v1496
        %v3504 = vunpack.c.l.b16 %v1497
        %v3505 = vunpack.c.h.b16 %v1497
        %v3506 = vunpack.c.l.b16 %v1498
        %v3507 = vunpack.c.h.b16 %v1498
        %v3508 = vunpack.c.l.b16 %v1499
        %v3509 = vunpack.c.h.b16 %v1499
        %v3510 = vunpack.c.l.b16 %v1500
        %v3511 = vunpack.c.h.b16 %v1500
        %v3512 = vunpack.c.l.b16 %v1501
        %v3513 = vunpack.c.h.b16 %v1501
        %v3514 = vunpack.c.l.b16 %v1502
        %v3515 = vunpack.c.h.b16 %v1502
        %v3516 = vunpack.c.l.b16 %v1503
        %v3517 = vunpack.c.h.b16 %v1503
        %v3518 = vunpack.c.l.b16 %v1504
        %v3519 = vunpack.c.h.b16 %v1504
        %v3520 = vunpack.c.l.b16 %v1505
        %v3521 = vunpack.c.h.b16 %v1505
        %v3522 = vunpack.c.l.b16 %v1506
        %v3523 = vunpack.c.h.b16 %v1506
        %v3524 = vunpack.c.l.b16 %v1507
        %v3525 = vunpack.c.h.b16 %v1507
        %v3526 = vunpack.c.l.b16 %v1508
        %v3527 = vunpack.c.h.b16 %v1508
        %v3528 = vunpack.c.l.b16 %v1509
        %v3529 = vunpack.c.h.b16 %v1509
        %v3530 = vunpack.c.l.b16 %v1510
        %v3531 = vunpack.c.h.b16 %v1510
        %v3532 = vunpack.c.l.b16 %v1511
        %v3533 = vunpack.c.h.b16 %v1511
        %v3534 = vunpack.c.l.b16 %v1512
        %v3535 = vunpack.c.h.b16 %v1512
        %v3536 = vunpack.c.l.b16 %v1513
        %v3537 = vunpack.c.h.b16 %v1513
        %v3538 = vunpack.c.l.b16 %v1514
        %v3539 = vunpack.c.h.b16 %v1514
        %v3540 = vunpack.c.l.b16 %v1515
        %v3541 = vunpack.c.h.b16 %v1515
        %v3542 = vunpack.c.l.b16 %v1516
        %v3543 = vunpack.c.h.b16 %v1516
        %v3544 = vunpack.c.l.b16 %v1517
        %v3545 = vunpack.c.h.b16 %v1517
        %v3546 = vunpack.c.l.b16 %v1518
        %v3547 = vunpack.c.h.b16 %v1518
        %v3548 = vunpack.c.l.b16 %v1519
        %v3549 = vunpack.c.h.b16 %v1519
        %v3550 = vunpack.c.l.b16 %v1520
        %v3551 = vunpack.c.h.b16 %v1520
        %v3552 = vunpack.c.l.b16 %v1521
        %v3553 = vunpack.c.h.b16 %v1521
        %v3554 = vunpack.c.l.b16 %v1522
        %v3555 = vunpack.c.h.b16 %v1522
        %v3556 = vunpack.c.l.b16 %v1523
        %v3557 = vunpack.c.h.b16 %v1523
        %v3558 = vunpack.c.l.b16 %v1524
        %v3559 = vunpack.c.h.b16 %v1524
        %v3560 = vunpack.c.l.b16 %v1525
        %v3561 = vunpack.c.h.b16 %v1525
        %v3562 = vunpack.c.l.b16 %v1526
        %v3563 = vunpack.c.h.b16 %v1526
        %v3564 = vunpack.c.l.b16 %v1527
        %v3565 = vunpack.c.h.b16 %v1527
        %v3566 = vunpack.c.l.b16 %v1528
        %v3567 = vunpack.c.h.b16 %v1528
        %v3568 = vunpack.c.l.b16 %v1529
        %v3569 = vunpack.c.h.b16 %v1529
        %v3570 = vunpack.c.l.b16 %v1530
        %v3571 = vunpack.c.h.b16 %v1530
        %v3572 = vunpack.c.l.b16 %v1531
        %v3573 = vunpack.c.h.b16 %v1531
        %v3574 = vunpack.c.l.b16 %v1532
        %v3575 = vunpack.c.h.b16 %v1532
        %v3576 = vunpack.c.l.b16 %v1533
        %v3577 = vunpack.c.h.b16 %v1533
        %v3578 = vunpack.c.l.b16 %v1534
        %v3579 = vunpack.c.h.b16 %v1534
        %v3580 = vunpack.c.l.b16 %v1535
        %v3581 = vunpack.c.h.b16 %v1535
        %v3582 = vunpack.c.l.b16 %v1536
        %v3583 = vunpack.c.h.b16 %v1536
        %v3584 = vunpack.c.l.b16 %v1537
        %v3585 = vunpack.c.h.b16 %v1537
        %v3586 = vunpack.c.l.b16 %v1538
        %v3587 = vunpack.c.h.b16 %v1538
        %v3588 = vunpack.c.l.b16 %v1539
        %v3589 = vunpack.c.h.b16 %v1539
        %v3590 = vunpack.c.l.b16 %v1540
        %v3591 = vunpack.c.h.b16 %v1540
        %v3592 = vunpack.c.l.b16 %v1541
        %v3593 = vunpack.c.h.b16 %v1541
        %v3594 = vunpack.c.l.b16 %v1542
        %v3595 = vunpack.c.h.b16 %v1542
        %v3596 = vunpack.c.l.b16 %v1543
        %v3597 = vunpack.c.h.b16 %v1543
        %v3598 = vunpack.c.l.b16 %v1544
        %v3599 = vunpack.c.h.b16 %v1544
        %v3600 = vunpack.c.l.b16 %v1545
        %v3601 = vunpack.c.h.b16 %v1545
        %v3602 = vunpack.c.l.b16 %v1546
        %v3603 = vunpack.c.h.b16 %v1546
        %v3604 = vunpack.c.l.b16 %v1547
        %v3605 = vunpack.c.h.b16 %v1547
        %v3606 = vunpack.c.l.b16 %v1548
        %v3607 = vunpack.c.h.b16 %v1548
        %v3608 = vunpack.c.l.b16 %v1549
        %v3609 = vunpack.c.h.b16 %v1549
        %v3610 = vunpack.c.l.b16 %v1550
        %v3611 = vunpack.c.h.b16 %v1550
        %v3612 = vunpack.c.l.b16 %v1551
        %v3613 = vunpack.c.h.b16 %v1551
        %v3614 = vunpack.c.l.b16 %v1552
        %v3615 = vunpack.c.h.b16 %v1552
        %v3616 = vunpack.c.l.b16 %v1553
        %v3617 = vunpack.c.h.b16 %v1553
        %v3618 = vunpack.c.l.b16 %v1554
        %v3619 = vunpack.c.h.b16 %v1554
        %v3620 = vunpack.c.l.b16 %v1555
        %v3621 = vunpack.c.h.b16 %v1555
        %v3622 = vunpack.c.l.b16 %v1556
        %v3623 = vunpack.c.h.b16 %v1556
        %v3624 = vunpack.c.l.b16 %v1557
        %v3625 = vunpack.c.h.b16 %v1557
        %v3626 = vunpack.c.l.b16 %v1558
        %v3627 = vunpack.c.h.b16 %v1558
        %v3628 = vunpack.c.l.b16 %v1559
        %v3629 = vunpack.c.h.b16 %v1559
        %v3630 = vunpack.c.l.b16 %v1560
        %v3631 = vunpack.c.h.b16 %v1560
        %v3632 = vunpack.c.l.b16 %v1561
        %v3633 = vunpack.c.h.b16 %v1561
        %v3634 = vunpack.c.l.b16 %v1562
        %v3635 = vunpack.c.h.b16 %v1562
        %v3636 = vunpack.c.l.b16 %v1563
        %v3637 = vunpack.c.h.b16 %v1563
        %v3638 = vunpack.c.l.b16 %v1564
        %v3639 = vunpack.c.h.b16 %v1564
        %v3640 = vunpack.c.l.b16 %v1565
        %v3641 = vunpack.c.h.b16 %v1565
        %v3642 = vunpack.c.l.b16 %v1566
        %v3643 = vunpack.c.h.b16 %v1566
        %v3644 = vunpack.c.l.b16 %v1567
        %v3645 = vunpack.c.h.b16 %v1567
        %v3646 = vunpack.c.l.b16 %v1568
        %v3647 = vunpack.c.h.b16 %v1568
        %v3648 = vunpack.c.l.b16 %v1569
        %v3649 = vunpack.c.h.b16 %v1569
        %v3650 = vunpack.c.l.b16 %v1570
        %v3651 = vunpack.c.h.b16 %v1570
        %v3652 = vunpack.c.l.b16 %v1571
        %v3653 = vunpack.c.h.b16 %v1571
        %v3654 = vunpack.c.l.b16 %v1572
        %v3655 = vunpack.c.h.b16 %v1572
        %v3656 = vunpack.c.l.b16 %v1573
        %v3657 = vunpack.c.h.b16 %v1573
        %v3658 = vunpack.c.l.b16 %v1574
        %v3659 = vunpack.c.h.b16 %v1574
        %v3660 = vunpack.c.l.b16 %v1575
        %v3661 = vunpack.c.h.b16 %v1575
        %v3662 = vunpack.c.l.b16 %v1576
        %v3663 = vunpack.c.h.b16 %v1576
        %v3664 = vunpack.c.l.b16 %v1577
        %v3665 = vunpack.c.h.b16 %v1577
        %v3666 = vunpack.c.l.b16 %v1578
        %v3667 = vunpack.c.h.b16 %v1578
        %v3668 = vunpack.c.l.b16 %v1579
        %v3669 = vunpack.c.h.b16 %v1579
        %v3670 = vunpack.c.l.b16 %v1580
        %v3671 = vunpack.c.h.b16 %v1580
        %v3672 = vunpack.c.l.b16 %v1581
        %v3673 = vunpack.c.h.b16 %v1581
        %v3674 = vunpack.c.l.b16 %v1582
        %v3675 = vunpack.c.h.b16 %v1582
        %v3676 = vunpack.c.l.b16 %v1583
        %v3677 = vunpack.c.h.b16 %v1583
        %v3678 = vunpack.c.l.b16 %v1584
        %v3679 = vunpack.c.h.b16 %v1584
        %v3680 = vunpack.c.l.b16 %v1585
        %v3681 = vunpack.c.h.b16 %v1585
        %v3682 = vunpack.c.l.b16 %v1586
        %v3683 = vunpack.c.h.b16 %v1586
        %v3684 = vunpack.c.l.b16 %v1587
        %v3685 = vunpack.c.h.b16 %v1587
        %v3686 = vunpack.c.l.b16 %v1588
        %v3687 = vunpack.c.h.b16 %v1588
        %v3688 = vunpack.c.l.b16 %v1589
        %v3689 = vunpack.c.h.b16 %v1589
        %v3690 = vunpack.c.l.b16 %v1590
        %v3691 = vunpack.c.h.b16 %v1590
        %v3692 = vunpack.c.l.b16 %v1591
        %v3693 = vunpack.c.h.b16 %v1591
        %v3694 = vunpack.c.l.b16 %v1592
        %v3695 = vunpack.c.h.b16 %v1592
        %v3696 = vunpack.c.l.b16 %v1593
        %v3697 = vunpack.c.h.b16 %v1593
        %v3698 = vunpack.c.l.b16 %v1594
        %v3699 = vunpack.c.h.b16 %v1594
        %v3700 = vunpack.c.l.b16 %v1595
        %v3701 = vunpack.c.h.b16 %v1595
        %v3702 = vunpack.c.l.b16 %v1596
        %v3703 = vunpack.c.h.b16 %v1596
        %v3704 = vunpack.c.l.b16 %v1597
        %v3705 = vunpack.c.h.b16 %v1597
        %v3706 = vunpack.c.l.b16 %v1598
        %v3707 = vunpack.c.h.b16 %v1598
        %v3708 = vunpack.c.l.b16 %v1599
        %v3709 = vunpack.c.h.b16 %v1599
        %v3710 = vunpack.c.l.b16 %v1600
        %v3711 = vunpack.c.h.b16 %v1600
        %v3712 = vunpack.c.l.b16 %v1601
        %v3713 = vunpack.c.h.b16 %v1601
        %v3714 = vpack.c.b16 %v3204, %v3202
        %v3715 = vpack.c.b16 %v3205, %v3203
        %v3716 = vpack.c.b16 %v3208, %v3206
        %v3717 = vpack.c.b16 %v3209, %v3207
        %v3718 = vpack.c.b16 %v3212, %v3210
        %v3719 = vpack.c.b16 %v3213, %v3211
        %v3720 = vpack.c.b16 %v3216, %v3214
        %v3721 = vpack.c.b16 %v3217, %v3215
        %v3722 = vpack.c.b16 %v3220, %v3218
        %v3723 = vpack.c.b16 %v3221, %v3219
        %v3724 = vpack.c.b16 %v3224, %v3222
        %v3725 = vpack.c.b16 %v3225, %v3223
        %v3726 = vpack.c.b16 %v3228, %v3226
        %v3727 = vpack.c.b16 %v3229, %v3227
        %v3728 = vpack.c.b16 %v3232, %v3230
        %v3729 = vpack.c.b16 %v3233, %v3231
        %v3730 = vpack.c.b16 %v3236, %v3234
        %v3731 = vpack.c.b16 %v3237, %v3235
        %v3732 = vpack.c.b16 %v3240, %v3238
        %v3733 = vpack.c.b16 %v3241, %v3239
        %v3734 = vpack.c.b16 %v3244, %v3242
        %v3735 = vpack.c.b16 %v3245, %v3243
        %v3736 = vpack.c.b16 %v3248, %v3246
        %v3737 = vpack.c.b16 %v3249, %v3247
        %v3738 = vpack.c.b16 %v3252, %v3250
        %v3739 = vpack.c.b16 %v3253, %v3251
        %v3740 = vpack.c.b16 %v3256, %v3254
        %v3741 = vpack.c.b16 %v3257, %v3255
        %v3742 = vpack.c.b16 %v3260, %v3258
        %v3743 = vpack.c.b16 %v3261, %v3259
        %v3744 = vpack.c.b16 %v3264, %v3262
        %v3745 = vpack.c.b16 %v3265, %v3263
        %v3746 = vpack.c.b16 %v3268, %v3266
        %v3747 = vpack.c.b16 %v3269, %v3267
        %v3748 = vpack.c.b16 %v3272, %v3270
        %v3749 = vpack.c.b16 %v3273, %v3271
        %v3750 = vpack.c.b16 %v3276, %v3274
        %v3751 = vpack.c.b16 %v3277, %v3275
        %v3752 = vpack.c.b16 %v3280, %v3278
        %v3753 = vpack.c.b16 %v3281, %v3279
        %v3754 = vpack.c.b16 %v3284, %v3282
        %v3755 = vpack.c.b16 %v3285, %v3283
        %v3756 = vpack.c.b16 %v3288, %v3286
        %v3757 = vpack.c.b16 %v3289, %v3287
        %v3758 = vpack.c.b16 %v3292, %v3290
        %v3759 = vpack.c.b16 %v3293, %v3291
        %v3760 = vpack.c.b16 %v3296, %v3294
        %v3761 = vpack.c.b16 %v3297, %v3295
        %v3762 = vpack.c.b16 %v3300, %v3298
        %v3763 = vpack.c.b16 %v3301, %v3299
        %v3764 = vpack.c.b16 %v3304, %v3302
        %v3765 = vpack.c.b16 %v3305, %v3303
        %v3766 = vpack.c.b16 %v3308, %v3306
        %v3767 = vpack.c.b16 %v3309, %v3307
        %v3768 = vpack.c.b16 %v3312, %v3310
        %v3769 = vpack.c.b16 %v3313, %v3311
        %v3770 = vpack.c.b16 %v3316, %v3314
        %v3771 = vpack.c.b16 %v3317, %v3315
        %v3772 = vpack.c.b16 %v3320, %v3318
        %v3773 = vpack.c.b16 %v3321, %v3319
        %v3774 = vpack.c.b16 %v3324, %v3322
        %v3775 = vpack.c.b16 %v3325, %v3323
        %v3776 = vpack.c.b16 %v3328, %v3326
        %v3777 = vpack.c.b16 %v3329, %v3327
        %v3778 = vpack.c.b16 %v3332, %v3330
        %v3779 = vpack.c.b16 %v3333, %v3331
        %v3780 = vpack.c.b16 %v3336, %v3334
        %v3781 = vpack.c.b16 %v3337, %v3335
        %v3782 = vpack.c.b16 %v3340, %v3338
        %v3783 = vpack.c.b16 %v3341, %v3339
        %v3784 = vpack.c.b16 %v3344, %v3342
        %v3785 = vpack.c.b16 %v3345, %v3343
        %v3786 = vpack.c.b16 %v3348, %v3346
        %v3787 = vpack.c.b16 %v3349, %v3347
        %v3788 = vpack.c.b16 %v3352, %v3350
        %v3789 = vpack.c.b16 %v3353, %v3351
        %v3790 = vpack.c.b16 %v3356, %v3354
        %v3791 = vpack.c.b16 %v3357, %v3355
        %v3792 = vpack.c.b16 %v3360, %v3358
        %v3793 = vpack.c.b16 %v3361, %v3359
        %v3794 = vpack.c.b16 %v3364, %v3362
        %v3795 = vpack.c.b16 %v3365, %v3363
        %v3796 = vpack.c.b16 %v3368, %v3366
        %v3797 = vpack.c.b16 %v3369, %v3367
        %v3798 = vpack.c.b16 %v3372, %v3370
        %v3799 = vpack.c.b16 %v3373, %v3371
        %v3800 = vpack.c.b16 %v3376, %v3374
        %v3801 = vpack.c.b16 %v3377, %v3375
        %v3802 = vpack.c.b16 %v3380, %v3378
        %v3803 = vpack.c.b16 %v3381, %v3379
        %v3804 = vpack.c.b16 %v3384, %v3382
        %v3805 = vpack.c.b16 %v3385, %v3383
        %v3806 = vpack.c.b16 %v3388, %v3386
        %v3807 = vpack.c.b16 %v3389, %v3387
        %v3808 = vpack.c.b16 %v3392, %v3390
        %v3809 = vpack.c.b16 %v3393, %v3391
        %v3810 = vpack.c.b16 %v3396, %v3394
        %v3811 = vpack.c.b16 %v3397, %v3395
        %v3812 = vpack.c.b16 %v3400, %v3398
        %v3813 = vpack.c.b16 %v3401, %v3399
        %v3814 = vpack.c.b16 %v3404, %v3402
        %v3815 = vpack.c.b16 %v3405, %v3403
        %v3816 = vpack.c.b16 %v3408, %v3406
        %v3817 = vpack.c.b16 %v3409, %v3407
        %v3818 = vpack.c.b16 %v3412, %v3410
        %v3819 = vpack.c.b16 %v3413, %v3411
        %v3820 = vpack.c.b16 %v3416, %v3414
        %v3821 = vpack.c.b16 %v3417, %v3415
        %v3822 = vpack.c.b16 %v3420, %v3418
        %v3823 = vpack.c.b16 %v3421, %v3419
        %v3824 = vpack.c.b16 %v3424, %v3422
        %v3825 = vpack.c.b16 %v3425, %v3423
        %v3826 = vpack.c.b16 %v3428, %v3426
        %v3827 = vpack.c.b16 %v3429, %v3427
        %v3828 = vpack.c.b16 %v3432, %v3430
        %v3829 = vpack.c.b16 %v3433, %v3431
        %v3830 = vpack.c.b16 %v3436, %v3434
        %v3831 = vpack.c.b16 %v3437, %v3435
        %v3832 = vpack.c.b16 %v3440, %v3438
        %v3833 = vpack.c.b16 %v3441, %v3439
        %v3834 = vpack.c.b16 %v3444, %v3442
        %v3835 = vpack.c.b16 %v3445, %v3443
        %v3836 = vpack.c.b16 %v3448, %v3446
        %v3837 = vpack.c.b16 %v3449, %v3447
        %v3838 = vpack.c.b16 %v3452, %v3450
        %v3839 = vpack.c.b16 %v3453, %v3451
        %v3840 = vpack.c.b16 %v3456, %v3454
        %v3841 = vpack.c.b16 %v3457, %v3455
        %v3842 = vpack.c.b16 %v3460, %v3458
        %v3843 = vpack.c.b16 %v3461, %v3459
        %v3844 = vpack.c.b16 %v3464, %v3462
        %v3845 = vpack.c.b16 %v3465, %v3463
        %v3846 = vpack.c.b16 %v3468, %v3466
        %v3847 = vpack.c.b16 %v3469, %v3467
        %v3848 = vpack.c.b16 %v3472, %v3470
        %v3849 = vpack.c.b16 %v3473, %v3471
        %v3850 = vpack.c.b16 %v3476, %v3474
        %v3851 = vpack.c.b16 %v3477, %v3475
        %v3852 = vpack.c.b16 %v3480, %v3478
        %v3853 = vpack.c.b16 %v3481, %v3479
        %v3854 = vpack.c.b16 %v3484, %v3482
        %v3855 = vpack.c.b16 %v3485, %v3483
        %v3856 = vpack.c.b16 %v3488, %v3486
        %v3857 = vpack.c.b16 %v3489, %v3487
        %v3858 = vpack.c.b16 %v3492, %v3490
        %v3859 = vpack.c.b16 %v3493, %v3491
        %v3860 = vpack.c.b16 %v3496, %v3494
        %v3861 = vpack.c.b16 %v3497, %v3495
        %v3862 = vpack.c.b16 %v3500, %v3498
        %v3863 = vpack.c.b16 %v3501, %v3499
        %v3864 = vpack.c.b16 %v3504, %v3502
        %v3865 = vpack.c.b16 %v3505, %v3503
        %v3866 = vpack.c.b16 %v3508, %v3506
        %v3867 = vpack.c.b16 %v3509, %v3507
        %v3868 = vpack.c.b16 %v3512, %v3510
        %v3869 = vpack.c.b16 %v3513, %v3511
        %v3870 = vpack.c.b16 %v3516, %v3514
        %v3871 = vpack.c.b16 %v3517, %v3515
        %v3872 = vpack.c.b16 %v3520, %v3518
        %v3873 = vpack.c.b16 %v3521, %v3519
        %v3874 = vpack.c.b16 %v3524, %v3522
        %v3875 = vpack.c.b16 %v3525, %v3523
        %v3876 = vpack.c.b16 %v3528, %v3526
        %v3877 = vpack.c.b16 %v3529, %v3527
        %v3878 = vpack.c.b16 %v3532, %v3530
        %v3879 = vpack.c.b16 %v3533, %v3531
        %v3880 = vpack.c.b16 %v3536, %v3534
        %v3881 = vpack.c.b16 %v3537, %v3535
        %v3882 = vpack.c.b16 %v3540, %v3538
        %v3883 = vpack.c.b16 %v3541, %v3539
        %v3884 = vpack.c.b16 %v3544, %v3542
        %v3885 = vpack.c.b16 %v3545, %v3543
        %v3886 = vpack.c.b16 %v3548, %v3546
        %v3887 = vpack.c.b16 %v3549, %v3547
        %v3888 = vpack.c.b16 %v3552, %v3550
        %v3889 = vpack.c.b16 %v3553, %v3551
        %v3890 = vpack.c.b16 %v3556, %v3554
        %v3891 = vpack.c.b16 %v3557, %v3555
        %v3892 = vpack.c.b16 %v3560, %v3558
        %v3893 = vpack.c.b16 %v3561, %v3559
        %v3894 = vpack.c.b16 %v3564, %v3562
        %v3895 = vpack.c.b16 %v3565, %v3563
        %v3896 = vpack.c.b16 %v3568, %v3566
        %v3897 = vpack.c.b16 %v3569, %v3567
        %v3898 = vpack.c.b16 %v3572, %v3570
        %v3899 = vpack.c.b16 %v3573, %v3571
        %v3900 = vpack.c.b16 %v3576, %v3574
        %v3901 = vpack.c.b16 %v3577, %v3575
        %v3902 = vpack.c.b16 %v3580, %v3578
        %v3903 = vpack.c.b16 %v3581, %v3579
        %v3904 = vpack.c.b16 %v3584, %v3582
        %v3905 = vpack.c.b16 %v3585, %v3583
        %v3906 = vpack.c.b16 %v3588, %v3586
        %v3907 = vpack.c.b16 %v3589, %v3587
        %v3908 = vpack.c.b16 %v3592, %v3590
        %v3909 = vpack.c.b16 %v3593, %v3591
        %v3910 = vpack.c.b16 %v3596, %v3594
        %v3911 = vpack.c.b16 %v3597, %v3595
        %v3912 = vpack.c.b16 %v3600, %v3598
        %v3913 = vpack.c.b16 %v3601, %v3599
        %v3914 = vpack.c.b16 %v3604, %v3602
        %v3915 = vpack.c.b16 %v3605, %v3603
        %v3916 = vpack.c.b16 %v3608, %v3606
        %v3917 = vpack.c.b16 %v3609, %v3607
        %v3918 = vpack.c.b16 %v3612, %v3610
        %v3919 = vpack.c.b16 %v3613, %v3611
        %v3920 = vpack.c.b16 %v3616, %v3614
        %v3921 = vpack.c.b16 %v3617, %v3615
        %v3922 = vpack.c.b16 %v3620, %v3618
        %v3923 = vpack.c.b16 %v3621, %v3619
        %v3924 = vpack.c.b16 %v3624, %v3622
        %v3925 = vpack.c.b16 %v3625, %v3623
        %v3926 = vpack.c.b16 %v3628, %v3626
        %v3927 = vpack.c.b16 %v3629, %v3627
        %v3928 = vpack.c.b16 %v3632, %v3630
        %v3929 = vpack.c.b16 %v3633, %v3631
        %v3930 = vpack.c.b16 %v3636, %v3634
        %v3931 = vpack.c.b16 %v3637, %v3635
        %v3932 = vpack.c.b16 %v3640, %v3638
        %v3933 = vpack.c.b16 %v3641, %v3639
        %v3934 = vpack.c.b16 %v3644, %v3642
        %v3935 = vpack.c.b16 %v3645, %v3643
        %v3936 = vpack.c.b16 %v3648, %v3646
        %v3937 = vpack.c.b16 %v3649, %v3647
        %v3938 = vpack.c.b16 %v3652, %v3650
        %v3939 = vpack.c.b16 %v3653, %v3651
        %v3940 = vpack.c.b16 %v3656, %v3654
        %v3941 = vpack.c.b16 %v3657, %v3655
        %v3942 = vpack.c.b16 %v3660, %v3658
        %v3943 = vpack.c.b16 %v3661, %v3659
        %v3944 = vpack.c.b16 %v3664, %v3662
        %v3945 = vpack.c.b16 %v3665, %v3663
        %v3946 = vpack.c.b16 %v3668, %v3666
        %v3947 = vpack.c.b16 %v3669, %v3667
        %v3948 = vpack.c.b16 %v3672, %v3670
        %v3949 = vpack.c.b16 %v3673, %v3671
        %v3950 = vpack.c.b16 %v3676, %v3674
        %v3951 = vpack.c.b16 %v3677, %v3675
        %v3952 = vpack.c.b16 %v3680, %v3678
        %v3953 = vpack.c.b16 %v3681, %v3679
        %v3954 = vpack.c.b16 %v3684, %v3682
        %v3955 = vpack.c.b16 %v3685, %v3683
        %v3956 = vpack.c.b16 %v3688, %v3686
        %v3957 = vpack.c.b16 %v3689, %v3687
        %v3958 = vpack.c.b16 %v3692, %v3690
        %v3959 = vpack.c.b16 %v3693, %v3691
        %v3960 = vpack.c.b16 %v3696, %v3694
        %v3961 = vpack.c.b16 %v3697, %v3695
        %v3962 = vpack.c.b16 %v3700, %v3698
        %v3963 = vpack.c.b16 %v3701, %v3699
        %v3964 = vpack.c.b16 %v3704, %v3702
        %v3965 = vpack.c.b16 %v3705, %v3703
        %v3966 = vpack.c.b16 %v3708, %v3706
        %v3967 = vpack.c.b16 %v3709, %v3707
        %v3968 = vpack.c.b16 %v3712, %v3710
        %v3969 = vpack.c.b16 %v3713, %v3711
        %v4226 = vmax.bf16 %v3714, %v3716
        %v4227 = vmax.bf16 %v4226, %v3718
        %v4228 = vmax.bf16 %v4227, %v3720
        %v4229 = vunpack.i.l.bf16 %v4228
        %v4230 = vunpack.i.h.bf16 %v4228
        %v4231 = vmax.f32 %v4229, %v4230
        %v4232 = vrot.slane %v4231, 4
        %v4233 = vmax.f32 %v4231, %v4232
        %v4234 = vrot.slane %v4233, 2
        %v4235 = vmax.f32 %v4233, %v4234
        %v4236 = vrot.slane %v4235, 1
        %v4237 = vmax.f32 %v4235, %v4236
        %v4238 = vpack.i.bf16 %v4237, %v4237
        %v4239 = vmax.bf16 %v3715, %v3717
        %v4240 = vmax.bf16 %v4239, %v3719
        %v4241 = vmax.bf16 %v4240, %v3721
        %v4242 = vunpack.i.l.bf16 %v4241
        %v4243 = vunpack.i.h.bf16 %v4241
        %v4244 = vmax.f32 %v4242, %v4243
        %v4245 = vrot.slane %v4244, 4
        %v4246 = vmax.f32 %v4244, %v4245
        %v4247 = vrot.slane %v4246, 2
        %v4248 = vmax.f32 %v4246, %v4247
        %v4249 = vrot.slane %v4248, 1
        %v4250 = vmax.f32 %v4248, %v4249
        %v4251 = vpack.i.bf16 %v4250, %v4250
        %v4252 = vmax.bf16 %v3722, %v3724
        %v4253 = vmax.bf16 %v4252, %v3726
        %v4254 = vmax.bf16 %v4253, %v3728
        %v4255 = vunpack.i.l.bf16 %v4254
        %v4256 = vunpack.i.h.bf16 %v4254
        %v4257 = vmax.f32 %v4255, %v4256
        %v4258 = vrot.slane %v4257, 4
        %v4259 = vmax.f32 %v4257, %v4258
        %v4260 = vrot.slane %v4259, 2
        %v4261 = vmax.f32 %v4259, %v4260
        %v4262 = vrot.slane %v4261, 1
        %v4263 = vmax.f32 %v4261, %v4262
        %v4264 = vpack.i.bf16 %v4263, %v4263
        %v4265 = vmax.bf16 %v3723, %v3725
        %v4266 = vmax.bf16 %v4265, %v3727
        %v4267 = vmax.bf16 %v4266, %v3729
        %v4268 = vunpack.i.l.bf16 %v4267
        %v4269 = vunpack.i.h.bf16 %v4267
        %v4270 = vmax.f32 %v4268, %v4269
        %v4271 = vrot.slane %v4270, 4
        %v4272 = vmax.f32 %v4270, %v4271
        %v4273 = vrot.slane %v4272, 2
        %v4274 = vmax.f32 %v4272, %v4273
        %v4275 = vrot.slane %v4274, 1
        %v4276 = vmax.f32 %v4274, %v4275
        %v4277 = vpack.i.bf16 %v4276, %v4276
        %v4278 = vmax.bf16 %v3730, %v3732
        %v4279 = vmax.bf16 %v4278, %v3734
        %v4280 = vmax.bf16 %v4279, %v3736
        %v4281 = vunpack.i.l.bf16 %v4280
        %v4282 = vunpack.i.h.bf16 %v4280
        %v4283 = vmax.f32 %v4281, %v4282
        %v4284 = vrot.slane %v4283, 4
        %v4285 = vmax.f32 %v4283, %v4284
        %v4286 = vrot.slane %v4285, 2
        %v4287 = vmax.f32 %v4285, %v4286
        %v4288 = vrot.slane %v4287, 1
        %v4289 = vmax.f32 %v4287, %v4288
        %v4290 = vpack.i.bf16 %v4289, %v4289
        %v4291 = vmax.bf16 %v3731, %v3733
        %v4292 = vmax.bf16 %v4291, %v3735
        %v4293 = vmax.bf16 %v4292, %v3737
        %v4294 = vunpack.i.l.bf16 %v4293
        %v4295 = vunpack.i.h.bf16 %v4293
        %v4296 = vmax.f32 %v4294, %v4295
        %v4297 = vrot.slane %v4296, 4
        %v4298 = vmax.f32 %v4296, %v4297
        %v4299 = vrot.slane %v4298, 2
        %v4300 = vmax.f32 %v4298, %v4299
        %v4301 = vrot.slane %v4300, 1
        %v4302 = vmax.f32 %v4300, %v4301
        %v4303 = vpack.i.bf16 %v4302, %v4302
        %v4304 = vmax.bf16 %v3738, %v3740
        %v4305 = vmax.bf16 %v4304, %v3742
        %v4306 = vmax.bf16 %v4305, %v3744
        %v4307 = vunpack.i.l.bf16 %v4306
        %v4308 = vunpack.i.h.bf16 %v4306
        %v4309 = vmax.f32 %v4307, %v4308
        %v4310 = vrot.slane %v4309, 4
        %v4311 = vmax.f32 %v4309, %v4310
        %v4312 = vrot.slane %v4311, 2
        %v4313 = vmax.f32 %v4311, %v4312
        %v4314 = vrot.slane %v4313, 1
        %v4315 = vmax.f32 %v4313, %v4314
        %v4316 = vpack.i.bf16 %v4315, %v4315
        %v4317 = vmax.bf16 %v3739, %v3741
        %v4318 = vmax.bf16 %v4317, %v3743
        %v4319 = vmax.bf16 %v4318, %v3745
        %v4320 = vunpack.i.l.bf16 %v4319
        %v4321 = vunpack.i.h.bf16 %v4319
        %v4322 = vmax.f32 %v4320, %v4321
        %v4323 = vrot.slane %v4322, 4
        %v4324 = vmax.f32 %v4322, %v4323
        %v4325 = vrot.slane %v4324, 2
        %v4326 = vmax.f32 %v4324, %v4325
        %v4327 = vrot.slane %v4326, 1
        %v4328 = vmax.f32 %v4326, %v4327
        %v4329 = vpack.i.bf16 %v4328, %v4328
        %v4330 = vmax.bf16 %v3746, %v3748
        %v4331 = vmax.bf16 %v4330, %v3750
        %v4332 = vmax.bf16 %v4331, %v3752
        %v4333 = vunpack.i.l.bf16 %v4332
        %v4334 = vunpack.i.h.bf16 %v4332
        %v4335 = vmax.f32 %v4333, %v4334
        %v4336 = vrot.slane %v4335, 4
        %v4337 = vmax.f32 %v4335, %v4336
        %v4338 = vrot.slane %v4337, 2
        %v4339 = vmax.f32 %v4337, %v4338
        %v4340 = vrot.slane %v4339, 1
        %v4341 = vmax.f32 %v4339, %v4340
        %v4342 = vpack.i.bf16 %v4341, %v4341
        %v4343 = vmax.bf16 %v3747, %v3749
        %v4344 = vmax.bf16 %v4343, %v3751
        %v4345 = vmax.bf16 %v4344, %v3753
        %v4346 = vunpack.i.l.bf16 %v4345
        %v4347 = vunpack.i.h.bf16 %v4345
        %v4348 = vmax.f32 %v4346, %v4347
        %v4349 = vrot.slane %v4348, 4
        %v4350 = vmax.f32 %v4348, %v4349
        %v4351 = vrot.slane %v4350, 2
        %v4352 = vmax.f32 %v4350, %v4351
        %v4353 = vrot.slane %v4352, 1
        %v4354 = vmax.f32 %v4352, %v4353
        %v4355 = vpack.i.bf16 %v4354, %v4354
        %v4356 = vmax.bf16 %v3754, %v3756
        %v4357 = vmax.bf16 %v4356, %v3758
        %v4358 = vmax.bf16 %v4357, %v3760
        %v4359 = vunpack.i.l.bf16 %v4358
        %v4360 = vunpack.i.h.bf16 %v4358
        %v4361 = vmax.f32 %v4359, %v4360
        %v4362 = vrot.slane %v4361, 4
        %v4363 = vmax.f32 %v4361, %v4362
        %v4364 = vrot.slane %v4363, 2
        %v4365 = vmax.f32 %v4363, %v4364
        %v4366 = vrot.slane %v4365, 1
        %v4367 = vmax.f32 %v4365, %v4366
        %v4368 = vpack.i.bf16 %v4367, %v4367
        %v4369 = vmax.bf16 %v3755, %v3757
        %v4370 = vmax.bf16 %v4369, %v3759
        %v4371 = vmax.bf16 %v4370, %v3761
        %v4372 = vunpack.i.l.bf16 %v4371
        %v4373 = vunpack.i.h.bf16 %v4371
        %v4374 = vmax.f32 %v4372, %v4373
        %v4375 = vrot.slane %v4374, 4
        %v4376 = vmax.f32 %v4374, %v4375
        %v4377 = vrot.slane %v4376, 2
        %v4378 = vmax.f32 %v4376, %v4377
        %v4379 = vrot.slane %v4378, 1
        %v4380 = vmax.f32 %v4378, %v4379
        %v4381 = vpack.i.bf16 %v4380, %v4380
        %v4382 = vmax.bf16 %v3762, %v3764
        %v4383 = vmax.bf16 %v4382, %v3766
        %v4384 = vmax.bf16 %v4383, %v3768
        %v4385 = vunpack.i.l.bf16 %v4384
        %v4386 = vunpack.i.h.bf16 %v4384
        %v4387 = vmax.f32 %v4385, %v4386
        %v4388 = vrot.slane %v4387, 4
        %v4389 = vmax.f32 %v4387, %v4388
        %v4390 = vrot.slane %v4389, 2
        %v4391 = vmax.f32 %v4389, %v4390
        %v4392 = vrot.slane %v4391, 1
        %v4393 = vmax.f32 %v4391, %v4392
        %v4394 = vpack.i.bf16 %v4393, %v4393
        %v4395 = vmax.bf16 %v3763, %v3765
        %v4396 = vmax.bf16 %v4395, %v3767
        %v4397 = vmax.bf16 %v4396, %v3769
        %v4398 = vunpack.i.l.bf16 %v4397
        %v4399 = vunpack.i.h.bf16 %v4397
        %v4400 = vmax.f32 %v4398, %v4399
        %v4401 = vrot.slane %v4400, 4
        %v4402 = vmax.f32 %v4400, %v4401
        %v4403 = vrot.slane %v4402, 2
        %v4404 = vmax.f32 %v4402, %v4403
        %v4405 = vrot.slane %v4404, 1
        %v4406 = vmax.f32 %v4404, %v4405
        %v4407 = vpack.i.bf16 %v4406, %v4406
        %v4408 = vmax.bf16 %v3770, %v3772
        %v4409 = vmax.bf16 %v4408, %v3774
        %v4410 = vmax.bf16 %v4409, %v3776
        %v4411 = vunpack.i.l.bf16 %v4410
        %v4412 = vunpack.i.h.bf16 %v4410
        %v4413 = vmax.f32 %v4411, %v4412
        %v4414 = vrot.slane %v4413, 4
        %v4415 = vmax.f32 %v4413, %v4414
        %v4416 = vrot.slane %v4415, 2
        %v4417 = vmax.f32 %v4415, %v4416
        %v4418 = vrot.slane %v4417, 1
        %v4419 = vmax.f32 %v4417, %v4418
        %v4420 = vpack.i.bf16 %v4419, %v4419
        %v4421 = vmax.bf16 %v3771, %v3773
        %v4422 = vmax.bf16 %v4421, %v3775
        %v4423 = vmax.bf16 %v4422, %v3777
        %v4424 = vunpack.i.l.bf16 %v4423
        %v4425 = vunpack.i.h.bf16 %v4423
        %v4426 = vmax.f32 %v4424, %v4425
        %v4427 = vrot.slane %v4426, 4
        %v4428 = vmax.f32 %v4426, %v4427
        %v4429 = vrot.slane %v4428, 2
        %v4430 = vmax.f32 %v4428, %v4429
        %v4431 = vrot.slane %v4430, 1
        %v4432 = vmax.f32 %v4430, %v4431
        %v4433 = vpack.i.bf16 %v4432, %v4432
        %v4434 = vmax.bf16 %v3778, %v3780
        %v4435 = vmax.bf16 %v4434, %v3782
        %v4436 = vmax.bf16 %v4435, %v3784
        %v4437 = vunpack.i.l.bf16 %v4436
        %v4438 = vunpack.i.h.bf16 %v4436
        %v4439 = vmax.f32 %v4437, %v4438
        %v4440 = vrot.slane %v4439, 4
        %v4441 = vmax.f32 %v4439, %v4440
        %v4442 = vrot.slane %v4441, 2
        %v4443 = vmax.f32 %v4441, %v4442
        %v4444 = vrot.slane %v4443, 1
        %v4445 = vmax.f32 %v4443, %v4444
        %v4446 = vpack.i.bf16 %v4445, %v4445
        %v4447 = vmax.bf16 %v3779, %v3781
        %v4448 = vmax.bf16 %v4447, %v3783
        %v4449 = vmax.bf16 %v4448, %v3785
        %v4450 = vunpack.i.l.bf16 %v4449
        %v4451 = vunpack.i.h.bf16 %v4449
        %v4452 = vmax.f32 %v4450, %v4451
        %v4453 = vrot.slane %v4452, 4
        %v4454 = vmax.f32 %v4452, %v4453
        %v4455 = vrot.slane %v4454, 2
        %v4456 = vmax.f32 %v4454, %v4455
        %v4457 = vrot.slane %v4456, 1
        %v4458 = vmax.f32 %v4456, %v4457
        %v4459 = vpack.i.bf16 %v4458, %v4458
        %v4460 = vmax.bf16 %v3786, %v3788
        %v4461 = vmax.bf16 %v4460, %v3790
        %v4462 = vmax.bf16 %v4461, %v3792
        %v4463 = vunpack.i.l.bf16 %v4462
        %v4464 = vunpack.i.h.bf16 %v4462
        %v4465 = vmax.f32 %v4463, %v4464
        %v4466 = vrot.slane %v4465, 4
        %v4467 = vmax.f32 %v4465, %v4466
        %v4468 = vrot.slane %v4467, 2
        %v4469 = vmax.f32 %v4467, %v4468
        %v4470 = vrot.slane %v4469, 1
        %v4471 = vmax.f32 %v4469, %v4470
        %v4472 = vpack.i.bf16 %v4471, %v4471
        %v4473 = vmax.bf16 %v3787, %v3789
        %v4474 = vmax.bf16 %v4473, %v3791
        %v4475 = vmax.bf16 %v4474, %v3793
        %v4476 = vunpack.i.l.bf16 %v4475
        %v4477 = vunpack.i.h.bf16 %v4475
        %v4478 = vmax.f32 %v4476, %v4477
        %v4479 = vrot.slane %v4478, 4
        %v4480 = vmax.f32 %v4478, %v4479
        %v4481 = vrot.slane %v4480, 2
        %v4482 = vmax.f32 %v4480, %v4481
        %v4483 = vrot.slane %v4482, 1
        %v4484 = vmax.f32 %v4482, %v4483
        %v4485 = vpack.i.bf16 %v4484, %v4484
        %v4486 = vmax.bf16 %v3794, %v3796
        %v4487 = vmax.bf16 %v4486, %v3798
        %v4488 = vmax.bf16 %v4487, %v3800
        %v4489 = vunpack.i.l.bf16 %v4488
        %v4490 = vunpack.i.h.bf16 %v4488
        %v4491 = vmax.f32 %v4489, %v4490
        %v4492 = vrot.slane %v4491, 4
        %v4493 = vmax.f32 %v4491, %v4492
        %v4494 = vrot.slane %v4493, 2
        %v4495 = vmax.f32 %v4493, %v4494
        %v4496 = vrot.slane %v4495, 1
        %v4497 = vmax.f32 %v4495, %v4496
        %v4498 = vpack.i.bf16 %v4497, %v4497
        %v4499 = vmax.bf16 %v3795, %v3797
        %v4500 = vmax.bf16 %v4499, %v3799
        %v4501 = vmax.bf16 %v4500, %v3801
        %v4502 = vunpack.i.l.bf16 %v4501
        %v4503 = vunpack.i.h.bf16 %v4501
        %v4504 = vmax.f32 %v4502, %v4503
        %v4505 = vrot.slane %v4504, 4
        %v4506 = vmax.f32 %v4504, %v4505
        %v4507 = vrot.slane %v4506, 2
        %v4508 = vmax.f32 %v4506, %v4507
        %v4509 = vrot.slane %v4508, 1
        %v4510 = vmax.f32 %v4508, %v4509
        %v4511 = vpack.i.bf16 %v4510, %v4510
        %v4512 = vmax.bf16 %v3802, %v3804
        %v4513 = vmax.bf16 %v4512, %v3806
        %v4514 = vmax.bf16 %v4513, %v3808
        %v4515 = vunpack.i.l.bf16 %v4514
        %v4516 = vunpack.i.h.bf16 %v4514
        %v4517 = vmax.f32 %v4515, %v4516
        %v4518 = vrot.slane %v4517, 4
        %v4519 = vmax.f32 %v4517, %v4518
        %v4520 = vrot.slane %v4519, 2
        %v4521 = vmax.f32 %v4519, %v4520
        %v4522 = vrot.slane %v4521, 1
        %v4523 = vmax.f32 %v4521, %v4522
        %v4524 = vpack.i.bf16 %v4523, %v4523
        %v4525 = vmax.bf16 %v3803, %v3805
        %v4526 = vmax.bf16 %v4525, %v3807
        %v4527 = vmax.bf16 %v4526, %v3809
        %v4528 = vunpack.i.l.bf16 %v4527
        %v4529 = vunpack.i.h.bf16 %v4527
        %v4530 = vmax.f32 %v4528, %v4529
        %v4531 = vrot.slane %v4530, 4
        %v4532 = vmax.f32 %v4530, %v4531
        %v4533 = vrot.slane %v4532, 2
        %v4534 = vmax.f32 %v4532, %v4533
        %v4535 = vrot.slane %v4534, 1
        %v4536 = vmax.f32 %v4534, %v4535
        %v4537 = vpack.i.bf16 %v4536, %v4536
        %v4538 = vmax.bf16 %v3810, %v3812
        %v4539 = vmax.bf16 %v4538, %v3814
        %v4540 = vmax.bf16 %v4539, %v3816
        %v4541 = vunpack.i.l.bf16 %v4540
        %v4542 = vunpack.i.h.bf16 %v4540
        %v4543 = vmax.f32 %v4541, %v4542
        %v4544 = vrot.slane %v4543, 4
        %v4545 = vmax.f32 %v4543, %v4544
        %v4546 = vrot.slane %v4545, 2
        %v4547 = vmax.f32 %v4545, %v4546
        %v4548 = vrot.slane %v4547, 1
        %v4549 = vmax.f32 %v4547, %v4548
        %v4550 = vpack.i.bf16 %v4549, %v4549
        %v4551 = vmax.bf16 %v3811, %v3813
        %v4552 = vmax.bf16 %v4551, %v3815
        %v4553 = vmax.bf16 %v4552, %v3817
        %v4554 = vunpack.i.l.bf16 %v4553
        %v4555 = vunpack.i.h.bf16 %v4553
        %v4556 = vmax.f32 %v4554, %v4555
        %v4557 = vrot.slane %v4556, 4
        %v4558 = vmax.f32 %v4556, %v4557
        %v4559 = vrot.slane %v4558, 2
        %v4560 = vmax.f32 %v4558, %v4559
        %v4561 = vrot.slane %v4560, 1
        %v4562 = vmax.f32 %v4560, %v4561
        %v4563 = vpack.i.bf16 %v4562, %v4562
        %v4564 = vmax.bf16 %v3818, %v3820
        %v4565 = vmax.bf16 %v4564, %v3822
        %v4566 = vmax.bf16 %v4565, %v3824
        %v4567 = vunpack.i.l.bf16 %v4566
        %v4568 = vunpack.i.h.bf16 %v4566
        %v4569 = vmax.f32 %v4567, %v4568
        %v4570 = vrot.slane %v4569, 4
        %v4571 = vmax.f32 %v4569, %v4570
        %v4572 = vrot.slane %v4571, 2
        %v4573 = vmax.f32 %v4571, %v4572
        %v4574 = vrot.slane %v4573, 1
        %v4575 = vmax.f32 %v4573, %v4574
        %v4576 = vpack.i.bf16 %v4575, %v4575
        %v4577 = vmax.bf16 %v3819, %v3821
        %v4578 = vmax.bf16 %v4577, %v3823
        %v4579 = vmax.bf16 %v4578, %v3825
        %v4580 = vunpack.i.l.bf16 %v4579
        %v4581 = vunpack.i.h.bf16 %v4579
        %v4582 = vmax.f32 %v4580, %v4581
        %v4583 = vrot.slane %v4582, 4
        %v4584 = vmax.f32 %v4582, %v4583
        %v4585 = vrot.slane %v4584, 2
        %v4586 = vmax.f32 %v4584, %v4585
        %v4587 = vrot.slane %v4586, 1
        %v4588 = vmax.f32 %v4586, %v4587
        %v4589 = vpack.i.bf16 %v4588, %v4588
        %v4590 = vmax.bf16 %v3826, %v3828
        %v4591 = vmax.bf16 %v4590, %v3830
        %v4592 = vmax.bf16 %v4591, %v3832
        %v4593 = vunpack.i.l.bf16 %v4592
        %v4594 = vunpack.i.h.bf16 %v4592
        %v4595 = vmax.f32 %v4593, %v4594
        %v4596 = vrot.slane %v4595, 4
        %v4597 = vmax.f32 %v4595, %v4596
        %v4598 = vrot.slane %v4597, 2
        %v4599 = vmax.f32 %v4597, %v4598
        %v4600 = vrot.slane %v4599, 1
        %v4601 = vmax.f32 %v4599, %v4600
        %v4602 = vpack.i.bf16 %v4601, %v4601
        %v4603 = vmax.bf16 %v3827, %v3829
        %v4604 = vmax.bf16 %v4603, %v3831
        %v4605 = vmax.bf16 %v4604, %v3833
        %v4606 = vunpack.i.l.bf16 %v4605
        %v4607 = vunpack.i.h.bf16 %v4605
        %v4608 = vmax.f32 %v4606, %v4607
        %v4609 = vrot.slane %v4608, 4
        %v4610 = vmax.f32 %v4608, %v4609
        %v4611 = vrot.slane %v4610, 2
        %v4612 = vmax.f32 %v4610, %v4611
        %v4613 = vrot.slane %v4612, 1
        %v4614 = vmax.f32 %v4612, %v4613
        %v4615 = vpack.i.bf16 %v4614, %v4614
        %v4616 = vmax.bf16 %v3834, %v3836
        %v4617 = vmax.bf16 %v4616, %v3838
        %v4618 = vmax.bf16 %v4617, %v3840
        %v4619 = vunpack.i.l.bf16 %v4618
        %v4620 = vunpack.i.h.bf16 %v4618
        %v4621 = vmax.f32 %v4619, %v4620
        %v4622 = vrot.slane %v4621, 4
        %v4623 = vmax.f32 %v4621, %v4622
        %v4624 = vrot.slane %v4623, 2
        %v4625 = vmax.f32 %v4623, %v4624
        %v4626 = vrot.slane %v4625, 1
        %v4627 = vmax.f32 %v4625, %v4626
        %v4628 = vpack.i.bf16 %v4627, %v4627
        %v4629 = vmax.bf16 %v3835, %v3837
        %v4630 = vmax.bf16 %v4629, %v3839
        %v4631 = vmax.bf16 %v4630, %v3841
        %v4632 = vunpack.i.l.bf16 %v4631
        %v4633 = vunpack.i.h.bf16 %v4631
        %v4634 = vmax.f32 %v4632, %v4633
        %v4635 = vrot.slane %v4634, 4
        %v4636 = vmax.f32 %v4634, %v4635
        %v4637 = vrot.slane %v4636, 2
        %v4638 = vmax.f32 %v4636, %v4637
        %v4639 = vrot.slane %v4638, 1
        %v4640 = vmax.f32 %v4638, %v4639
        %v4641 = vpack.i.bf16 %v4640, %v4640
        %v4642 = vmax.bf16 %v3842, %v3844
        %v4643 = vmax.bf16 %v4642, %v3846
        %v4644 = vmax.bf16 %v4643, %v3848
        %v4645 = vunpack.i.l.bf16 %v4644
        %v4646 = vunpack.i.h.bf16 %v4644
        %v4647 = vmax.f32 %v4645, %v4646
        %v4648 = vrot.slane %v4647, 4
        %v4649 = vmax.f32 %v4647, %v4648
        %v4650 = vrot.slane %v4649, 2
        %v4651 = vmax.f32 %v4649, %v4650
        %v4652 = vrot.slane %v4651, 1
        %v4653 = vmax.f32 %v4651, %v4652
        %v4654 = vpack.i.bf16 %v4653, %v4653
        %v4655 = vmax.bf16 %v3843, %v3845
        %v4656 = vmax.bf16 %v4655, %v3847
        %v4657 = vmax.bf16 %v4656, %v3849
        %v4658 = vunpack.i.l.bf16 %v4657
        %v4659 = vunpack.i.h.bf16 %v4657
        %v4660 = vmax.f32 %v4658, %v4659
        %v4661 = vrot.slane %v4660, 4
        %v4662 = vmax.f32 %v4660, %v4661
        %v4663 = vrot.slane %v4662, 2
        %v4664 = vmax.f32 %v4662, %v4663
        %v4665 = vrot.slane %v4664, 1
        %v4666 = vmax.f32 %v4664, %v4665
        %v4667 = vpack.i.bf16 %v4666, %v4666
        %v4668 = vmax.bf16 %v3850, %v3852
        %v4669 = vmax.bf16 %v4668, %v3854
        %v4670 = vmax.bf16 %v4669, %v3856
        %v4671 = vunpack.i.l.bf16 %v4670
        %v4672 = vunpack.i.h.bf16 %v4670
        %v4673 = vmax.f32 %v4671, %v4672
        %v4674 = vrot.slane %v4673, 4
        %v4675 = vmax.f32 %v4673, %v4674
        %v4676 = vrot.slane %v4675, 2
        %v4677 = vmax.f32 %v4675, %v4676
        %v4678 = vrot.slane %v4677, 1
        %v4679 = vmax.f32 %v4677, %v4678
        %v4680 = vpack.i.bf16 %v4679, %v4679
        %v4681 = vmax.bf16 %v3851, %v3853
        %v4682 = vmax.bf16 %v4681, %v3855
        %v4683 = vmax.bf16 %v4682, %v3857
        %v4684 = vunpack.i.l.bf16 %v4683
        %v4685 = vunpack.i.h.bf16 %v4683
        %v4686 = vmax.f32 %v4684, %v4685
        %v4687 = vrot.slane %v4686, 4
        %v4688 = vmax.f32 %v4686, %v4687
        %v4689 = vrot.slane %v4688, 2
        %v4690 = vmax.f32 %v4688, %v4689
        %v4691 = vrot.slane %v4690, 1
        %v4692 = vmax.f32 %v4690, %v4691
        %v4693 = vpack.i.bf16 %v4692, %v4692
        %v4694 = vmax.bf16 %v3858, %v3860
        %v4695 = vmax.bf16 %v4694, %v3862
        %v4696 = vmax.bf16 %v4695, %v3864
        %v4697 = vunpack.i.l.bf16 %v4696
        %v4698 = vunpack.i.h.bf16 %v4696
        %v4699 = vmax.f32 %v4697, %v4698
        %v4700 = vrot.slane %v4699, 4
        %v4701 = vmax.f32 %v4699, %v4700
        %v4702 = vrot.slane %v4701, 2
        %v4703 = vmax.f32 %v4701, %v4702
        %v4704 = vrot.slane %v4703, 1
        %v4705 = vmax.f32 %v4703, %v4704
        %v4706 = vpack.i.bf16 %v4705, %v4705
        %v4707 = vmax.bf16 %v3859, %v3861
        %v4708 = vmax.bf16 %v4707, %v3863
        %v4709 = vmax.bf16 %v4708, %v3865
        %v4710 = vunpack.i.l.bf16 %v4709
        %v4711 = vunpack.i.h.bf16 %v4709
        %v4712 = vmax.f32 %v4710, %v4711
        %v4713 = vrot.slane %v4712, 4
        %v4714 = vmax.f32 %v4712, %v4713
        %v4715 = vrot.slane %v4714, 2
        %v4716 = vmax.f32 %v4714, %v4715
        %v4717 = vrot.slane %v4716, 1
        %v4718 = vmax.f32 %v4716, %v4717
        %v4719 = vpack.i.bf16 %v4718, %v4718
        %v4720 = vmax.bf16 %v3866, %v3868
        %v4721 = vmax.bf16 %v4720, %v3870
        %v4722 = vmax.bf16 %v4721, %v3872
        %v4723 = vunpack.i.l.bf16 %v4722
        %v4724 = vunpack.i.h.bf16 %v4722
        %v4725 = vmax.f32 %v4723, %v4724
        %v4726 = vrot.slane %v4725, 4
        %v4727 = vmax.f32 %v4725, %v4726
        %v4728 = vrot.slane %v4727, 2
        %v4729 = vmax.f32 %v4727, %v4728
        %v4730 = vrot.slane %v4729, 1
        %v4731 = vmax.f32 %v4729, %v4730
        %v4732 = vpack.i.bf16 %v4731, %v4731
        %v4733 = vmax.bf16 %v3867, %v3869
        %v4734 = vmax.bf16 %v4733, %v3871
        %v4735 = vmax.bf16 %v4734, %v3873
        %v4736 = vunpack.i.l.bf16 %v4735
        %v4737 = vunpack.i.h.bf16 %v4735
        %v4738 = vmax.f32 %v4736, %v4737
        %v4739 = vrot.slane %v4738, 4
        %v4740 = vmax.f32 %v4738, %v4739
        %v4741 = vrot.slane %v4740, 2
        %v4742 = vmax.f32 %v4740, %v4741
        %v4743 = vrot.slane %v4742, 1
        %v4744 = vmax.f32 %v4742, %v4743
        %v4745 = vpack.i.bf16 %v4744, %v4744
        %v4746 = vmax.bf16 %v3874, %v3876
        %v4747 = vmax.bf16 %v4746, %v3878
        %v4748 = vmax.bf16 %v4747, %v3880
        %v4749 = vunpack.i.l.bf16 %v4748
        %v4750 = vunpack.i.h.bf16 %v4748
        %v4751 = vmax.f32 %v4749, %v4750
        %v4752 = vrot.slane %v4751, 4
        %v4753 = vmax.f32 %v4751, %v4752
        %v4754 = vrot.slane %v4753, 2
        %v4755 = vmax.f32 %v4753, %v4754
        %v4756 = vrot.slane %v4755, 1
        %v4757 = vmax.f32 %v4755, %v4756
        %v4758 = vpack.i.bf16 %v4757, %v4757
        %v4759 = vmax.bf16 %v3875, %v3877
        %v4760 = vmax.bf16 %v4759, %v3879
        %v4761 = vmax.bf16 %v4760, %v3881
        %v4762 = vunpack.i.l.bf16 %v4761
        %v4763 = vunpack.i.h.bf16 %v4761
        %v4764 = vmax.f32 %v4762, %v4763
        %v4765 = vrot.slane %v4764, 4
        %v4766 = vmax.f32 %v4764, %v4765
        %v4767 = vrot.slane %v4766, 2
        %v4768 = vmax.f32 %v4766, %v4767
        %v4769 = vrot.slane %v4768, 1
        %v4770 = vmax.f32 %v4768, %v4769
        %v4771 = vpack.i.bf16 %v4770, %v4770
        %v4772 = vmax.bf16 %v3882, %v3884
        %v4773 = vmax.bf16 %v4772, %v3886
        %v4774 = vmax.bf16 %v4773, %v3888
        %v4775 = vunpack.i.l.bf16 %v4774
        %v4776 = vunpack.i.h.bf16 %v4774
        %v4777 = vmax.f32 %v4775, %v4776
        %v4778 = vrot.slane %v4777, 4
        %v4779 = vmax.f32 %v4777, %v4778
        %v4780 = vrot.slane %v4779, 2
        %v4781 = vmax.f32 %v4779, %v4780
        %v4782 = vrot.slane %v4781, 1
        %v4783 = vmax.f32 %v4781, %v4782
        %v4784 = vpack.i.bf16 %v4783, %v4783
        %v4785 = vmax.bf16 %v3883, %v3885
        %v4786 = vmax.bf16 %v4785, %v3887
        %v4787 = vmax.bf16 %v4786, %v3889
        %v4788 = vunpack.i.l.bf16 %v4787
        %v4789 = vunpack.i.h.bf16 %v4787
        %v4790 = vmax.f32 %v4788, %v4789
        %v4791 = vrot.slane %v4790, 4
        %v4792 = vmax.f32 %v4790, %v4791
        %v4793 = vrot.slane %v4792, 2
        %v4794 = vmax.f32 %v4792, %v4793
        %v4795 = vrot.slane %v4794, 1
        %v4796 = vmax.f32 %v4794, %v4795
        %v4797 = vpack.i.bf16 %v4796, %v4796
        %v4798 = vmax.bf16 %v3890, %v3892
        %v4799 = vmax.bf16 %v4798, %v3894
        %v4800 = vmax.bf16 %v4799, %v3896
        %v4801 = vunpack.i.l.bf16 %v4800
        %v4802 = vunpack.i.h.bf16 %v4800
        %v4803 = vmax.f32 %v4801, %v4802
        %v4804 = vrot.slane %v4803, 4
        %v4805 = vmax.f32 %v4803, %v4804
        %v4806 = vrot.slane %v4805, 2
        %v4807 = vmax.f32 %v4805, %v4806
        %v4808 = vrot.slane %v4807, 1
        %v4809 = vmax.f32 %v4807, %v4808
        %v4810 = vpack.i.bf16 %v4809, %v4809
        %v4811 = vmax.bf16 %v3891, %v3893
        %v4812 = vmax.bf16 %v4811, %v3895
        %v4813 = vmax.bf16 %v4812, %v3897
        %v4814 = vunpack.i.l.bf16 %v4813
        %v4815 = vunpack.i.h.bf16 %v4813
        %v4816 = vmax.f32 %v4814, %v4815
        %v4817 = vrot.slane %v4816, 4
        %v4818 = vmax.f32 %v4816, %v4817
        %v4819 = vrot.slane %v4818, 2
        %v4820 = vmax.f32 %v4818, %v4819
        %v4821 = vrot.slane %v4820, 1
        %v4822 = vmax.f32 %v4820, %v4821
        %v4823 = vpack.i.bf16 %v4822, %v4822
        %v4824 = vmax.bf16 %v3898, %v3900
        %v4825 = vmax.bf16 %v4824, %v3902
        %v4826 = vmax.bf16 %v4825, %v3904
        %v4827 = vunpack.i.l.bf16 %v4826
        %v4828 = vunpack.i.h.bf16 %v4826
        %v4829 = vmax.f32 %v4827, %v4828
        %v4830 = vrot.slane %v4829, 4
        %v4831 = vmax.f32 %v4829, %v4830
        %v4832 = vrot.slane %v4831, 2
        %v4833 = vmax.f32 %v4831, %v4832
        %v4834 = vrot.slane %v4833, 1
        %v4835 = vmax.f32 %v4833, %v4834
        %v4836 = vpack.i.bf16 %v4835, %v4835
        %v4837 = vmax.bf16 %v3899, %v3901
        %v4838 = vmax.bf16 %v4837, %v3903
        %v4839 = vmax.bf16 %v4838, %v3905
        %v4840 = vunpack.i.l.bf16 %v4839
        %v4841 = vunpack.i.h.bf16 %v4839
        %v4842 = vmax.f32 %v4840, %v4841
        %v4843 = vrot.slane %v4842, 4
        %v4844 = vmax.f32 %v4842, %v4843
        %v4845 = vrot.slane %v4844, 2
        %v4846 = vmax.f32 %v4844, %v4845
        %v4847 = vrot.slane %v4846, 1
        %v4848 = vmax.f32 %v4846, %v4847
        %v4849 = vpack.i.bf16 %v4848, %v4848
        %v4850 = vmax.bf16 %v3906, %v3908
        %v4851 = vmax.bf16 %v4850, %v3910
        %v4852 = vmax.bf16 %v4851, %v3912
        %v4853 = vunpack.i.l.bf16 %v4852
        %v4854 = vunpack.i.h.bf16 %v4852
        %v4855 = vmax.f32 %v4853, %v4854
        %v4856 = vrot.slane %v4855, 4
        %v4857 = vmax.f32 %v4855, %v4856
        %v4858 = vrot.slane %v4857, 2
        %v4859 = vmax.f32 %v4857, %v4858
        %v4860 = vrot.slane %v4859, 1
        %v4861 = vmax.f32 %v4859, %v4860
        %v4862 = vpack.i.bf16 %v4861, %v4861
        %v4863 = vmax.bf16 %v3907, %v3909
        %v4864 = vmax.bf16 %v4863, %v3911
        %v4865 = vmax.bf16 %v4864, %v3913
        %v4866 = vunpack.i.l.bf16 %v4865
        %v4867 = vunpack.i.h.bf16 %v4865
        %v4868 = vmax.f32 %v4866, %v4867
        %v4869 = vrot.slane %v4868, 4
        %v4870 = vmax.f32 %v4868, %v4869
        %v4871 = vrot.slane %v4870, 2
        %v4872 = vmax.f32 %v4870, %v4871
        %v4873 = vrot.slane %v4872, 1
        %v4874 = vmax.f32 %v4872, %v4873
        %v4875 = vpack.i.bf16 %v4874, %v4874
        %v4876 = vmax.bf16 %v3914, %v3916
        %v4877 = vmax.bf16 %v4876, %v3918
        %v4878 = vmax.bf16 %v4877, %v3920
        %v4879 = vunpack.i.l.bf16 %v4878
        %v4880 = vunpack.i.h.bf16 %v4878
        %v4881 = vmax.f32 %v4879, %v4880
        %v4882 = vrot.slane %v4881, 4
        %v4883 = vmax.f32 %v4881, %v4882
        %v4884 = vrot.slane %v4883, 2
        %v4885 = vmax.f32 %v4883, %v4884
        %v4886 = vrot.slane %v4885, 1
        %v4887 = vmax.f32 %v4885, %v4886
        %v4888 = vpack.i.bf16 %v4887, %v4887
        %v4889 = vmax.bf16 %v3915, %v3917
        %v4890 = vmax.bf16 %v4889, %v3919
        %v4891 = vmax.bf16 %v4890, %v3921
        %v4892 = vunpack.i.l.bf16 %v4891
        %v4893 = vunpack.i.h.bf16 %v4891
        %v4894 = vmax.f32 %v4892, %v4893
        %v4895 = vrot.slane %v4894, 4
        %v4896 = vmax.f32 %v4894, %v4895
        %v4897 = vrot.slane %v4896, 2
        %v4898 = vmax.f32 %v4896, %v4897
        %v4899 = vrot.slane %v4898, 1
        %v4900 = vmax.f32 %v4898, %v4899
        %v4901 = vpack.i.bf16 %v4900, %v4900
        %v4902 = vmax.bf16 %v3922, %v3924
        %v4903 = vmax.bf16 %v4902, %v3926
        %v4904 = vmax.bf16 %v4903, %v3928
        %v4905 = vunpack.i.l.bf16 %v4904
        %v4906 = vunpack.i.h.bf16 %v4904
        %v4907 = vmax.f32 %v4905, %v4906
        %v4908 = vrot.slane %v4907, 4
        %v4909 = vmax.f32 %v4907, %v4908
        %v4910 = vrot.slane %v4909, 2
        %v4911 = vmax.f32 %v4909, %v4910
        %v4912 = vrot.slane %v4911, 1
        %v4913 = vmax.f32 %v4911, %v4912
        %v4914 = vpack.i.bf16 %v4913, %v4913
        %v4915 = vmax.bf16 %v3923, %v3925
        %v4916 = vmax.bf16 %v4915, %v3927
        %v4917 = vmax.bf16 %v4916, %v3929
        %v4918 = vunpack.i.l.bf16 %v4917
        %v4919 = vunpack.i.h.bf16 %v4917
        %v4920 = vmax.f32 %v4918, %v4919
        %v4921 = vrot.slane %v4920, 4
        %v4922 = vmax.f32 %v4920, %v4921
        %v4923 = vrot.slane %v4922, 2
        %v4924 = vmax.f32 %v4922, %v4923
        %v4925 = vrot.slane %v4924, 1
        %v4926 = vmax.f32 %v4924, %v4925
        %v4927 = vpack.i.bf16 %v4926, %v4926
        %v4928 = vmax.bf16 %v3930, %v3932
        %v4929 = vmax.bf16 %v4928, %v3934
        %v4930 = vmax.bf16 %v4929, %v3936
        %v4931 = vunpack.i.l.bf16 %v4930
        %v4932 = vunpack.i.h.bf16 %v4930
        %v4933 = vmax.f32 %v4931, %v4932
        %v4934 = vrot.slane %v4933, 4
        %v4935 = vmax.f32 %v4933, %v4934
        %v4936 = vrot.slane %v4935, 2
        %v4937 = vmax.f32 %v4935, %v4936
        %v4938 = vrot.slane %v4937, 1
        %v4939 = vmax.f32 %v4937, %v4938
        %v4940 = vpack.i.bf16 %v4939, %v4939
        %v4941 = vmax.bf16 %v3931, %v3933
        %v4942 = vmax.bf16 %v4941, %v3935
        %v4943 = vmax.bf16 %v4942, %v3937
        %v4944 = vunpack.i.l.bf16 %v4943
        %v4945 = vunpack.i.h.bf16 %v4943
        %v4946 = vmax.f32 %v4944, %v4945
        %v4947 = vrot.slane %v4946, 4
        %v4948 = vmax.f32 %v4946, %v4947
        %v4949 = vrot.slane %v4948, 2
        %v4950 = vmax.f32 %v4948, %v4949
        %v4951 = vrot.slane %v4950, 1
        %v4952 = vmax.f32 %v4950, %v4951
        %v4953 = vpack.i.bf16 %v4952, %v4952
        %v4954 = vmax.bf16 %v3938, %v3940
        %v4955 = vmax.bf16 %v4954, %v3942
        %v4956 = vmax.bf16 %v4955, %v3944
        %v4957 = vunpack.i.l.bf16 %v4956
        %v4958 = vunpack.i.h.bf16 %v4956
        %v4959 = vmax.f32 %v4957, %v4958
        %v4960 = vrot.slane %v4959, 4
        %v4961 = vmax.f32 %v4959, %v4960
        %v4962 = vrot.slane %v4961, 2
        %v4963 = vmax.f32 %v4961, %v4962
        %v4964 = vrot.slane %v4963, 1
        %v4965 = vmax.f32 %v4963, %v4964
        %v4966 = vpack.i.bf16 %v4965, %v4965
        %v4967 = vmax.bf16 %v3939, %v3941
        %v4968 = vmax.bf16 %v4967, %v3943
        %v4969 = vmax.bf16 %v4968, %v3945
        %v4970 = vunpack.i.l.bf16 %v4969
        %v4971 = vunpack.i.h.bf16 %v4969
        %v4972 = vmax.f32 %v4970, %v4971
        %v4973 = vrot.slane %v4972, 4
        %v4974 = vmax.f32 %v4972, %v4973
        %v4975 = vrot.slane %v4974, 2
        %v4976 = vmax.f32 %v4974, %v4975
        %v4977 = vrot.slane %v4976, 1
        %v4978 = vmax.f32 %v4976, %v4977
        %v4979 = vpack.i.bf16 %v4978, %v4978
        %v4980 = vmax.bf16 %v3946, %v3948
        %v4981 = vmax.bf16 %v4980, %v3950
        %v4982 = vmax.bf16 %v4981, %v3952
        %v4983 = vunpack.i.l.bf16 %v4982
        %v4984 = vunpack.i.h.bf16 %v4982
        %v4985 = vmax.f32 %v4983, %v4984
        %v4986 = vrot.slane %v4985, 4
        %v4987 = vmax.f32 %v4985, %v4986
        %v4988 = vrot.slane %v4987, 2
        %v4989 = vmax.f32 %v4987, %v4988
        %v4990 = vrot.slane %v4989, 1
        %v4991 = vmax.f32 %v4989, %v4990
        %v4992 = vpack.i.bf16 %v4991, %v4991
        %v4993 = vmax.bf16 %v3947, %v3949
        %v4994 = vmax.bf16 %v4993, %v3951
        %v4995 = vmax.bf16 %v4994, %v3953
        %v4996 = vunpack.i.l.bf16 %v4995
        %v4997 = vunpack.i.h.bf16 %v4995
        %v4998 = vmax.f32 %v4996, %v4997
        %v4999 = vrot.slane %v4998, 4
        %v5000 = vmax.f32 %v4998, %v4999
        %v5001 = vrot.slane %v5000, 2
        %v5002 = vmax.f32 %v5000, %v5001
        %v5003 = vrot.slane %v5002, 1
        %v5004 = vmax.f32 %v5002, %v5003
        %v5005 = vpack.i.bf16 %v5004, %v5004
        %v5006 = vmax.bf16 %v3954, %v3956
        %v5007 = vmax.bf16 %v5006, %v3958
        %v5008 = vmax.bf16 %v5007, %v3960
        %v5009 = vunpack.i.l.bf16 %v5008
        %v5010 = vunpack.i.h.bf16 %v5008
        %v5011 = vmax.f32 %v5009, %v5010
        %v5012 = vrot.slane %v5011, 4
        %v5013 = vmax.f32 %v5011, %v5012
        %v5014 = vrot.slane %v5013, 2
        %v5015 = vmax.f32 %v5013, %v5014
        %v5016 = vrot.slane %v5015, 1
        %v5017 = vmax.f32 %v5015, %v5016
        %v5018 = vpack.i.bf16 %v5017, %v5017
        %v5019 = vmax.bf16 %v3955, %v3957
        %v5020 = vmax.bf16 %v5019, %v3959
        %v5021 = vmax.bf16 %v5020, %v3961
        %v5022 = vunpack.i.l.bf16 %v5021
        %v5023 = vunpack.i.h.bf16 %v5021
        %v5024 = vmax.f32 %v5022, %v5023
        %v5025 = vrot.slane %v5024, 4
        %v5026 = vmax.f32 %v5024, %v5025
        %v5027 = vrot.slane %v5026, 2
        %v5028 = vmax.f32 %v5026, %v5027
        %v5029 = vrot.slane %v5028, 1
        %v5030 = vmax.f32 %v5028, %v5029
        %v5031 = vpack.i.bf16 %v5030, %v5030
        %v5032 = vmax.bf16 %v3962, %v3964
        %v5033 = vmax.bf16 %v5032, %v3966
        %v5034 = vmax.bf16 %v5033, %v3968
        %v5035 = vunpack.i.l.bf16 %v5034
        %v5036 = vunpack.i.h.bf16 %v5034
        %v5037 = vmax.f32 %v5035, %v5036
        %v5038 = vrot.slane %v5037, 4
        %v5039 = vmax.f32 %v5037, %v5038
        %v5040 = vrot.slane %v5039, 2
        %v5041 = vmax.f32 %v5039, %v5040
        %v5042 = vrot.slane %v5041, 1
        %v5043 = vmax.f32 %v5041, %v5042
        %v5044 = vpack.i.bf16 %v5043, %v5043
        %v5045 = vmax.bf16 %v3963, %v3965
        %v5046 = vmax.bf16 %v5045, %v3967
        %v5047 = vmax.bf16 %v5046, %v3969
        %v5048 = vunpack.i.l.bf16 %v5047
        %v5049 = vunpack.i.h.bf16 %v5047
        %v5050 = vmax.f32 %v5048, %v5049
        %v5051 = vrot.slane %v5050, 4
        %v5052 = vmax.f32 %v5050, %v5051
        %v5053 = vrot.slane %v5052, 2
        %v5054 = vmax.f32 %v5052, %v5053
        %v5055 = vrot.slane %v5054, 1
        %v5056 = vmax.f32 %v5054, %v5055
        %v5057 = vpack.i.bf16 %v5056, %v5056
        %v5058 = vpack.c.bf16 %v2126, %v2126
        %v5059 = vpack.c.bf16 %v2139, %v2139
        %v5060 = vpack.c.bf16 %v2152, %v2152
        %v5061 = vpack.c.bf16 %v2165, %v2165
        %v5062 = vpack.c.bf16 %v2178, %v2178
        %v5063 = vpack.c.bf16 %v2191, %v2191
        %v5064 = vpack.c.bf16 %v2204, %v2204
        %v5065 = vpack.c.bf16 %v2217, %v2217
        %v5066 = vpack.c.bf16 %v2230, %v2230
        %v5067 = vpack.c.bf16 %v2243, %v2243
        %v5068 = vpack.c.bf16 %v2256, %v2256
        %v5069 = vpack.c.bf16 %v2269, %v2269
        %v5070 = vpack.c.bf16 %v2282, %v2282
        %v5071 = vpack.c.bf16 %v2295, %v2295
        %v5072 = vpack.c.bf16 %v2308, %v2308
        %v5073 = vpack.c.bf16 %v2321, %v2321
        %v5074 = vpack.c.bf16 %v2334, %v2334
        %v5075 = vpack.c.bf16 %v2347, %v2347
        %v5076 = vpack.c.bf16 %v2360, %v2360
        %v5077 = vpack.c.bf16 %v2373, %v2373
        %v5078 = vpack.c.bf16 %v2386, %v2386
        %v5079 = vpack.c.bf16 %v2399, %v2399
        %v5080 = vpack.c.bf16 %v2412, %v2412
        %v5081 = vpack.c.bf16 %v2425, %v2425
        %v5082 = vpack.c.bf16 %v2438, %v2438
        %v5083 = vpack.c.bf16 %v2451, %v2451
        %v5084 = vpack.c.bf16 %v2464, %v2464
        %v5085 = vpack.c.bf16 %v2477, %v2477
        %v5086 = vpack.c.bf16 %v2490, %v2490
        %v5087 = vpack.c.bf16 %v2503, %v2503
        %v5088 = vpack.c.bf16 %v2516, %v2516
        %v5089 = vpack.c.bf16 %v2529, %v2529
        %v5090 = vpack.c.bf16 %v2542, %v2542
        %v5091 = vpack.c.bf16 %v2555, %v2555
        %v5092 = vpack.c.bf16 %v2568, %v2568
        %v5093 = vpack.c.bf16 %v2581, %v2581
        %v5094 = vpack.c.bf16 %v2594, %v2594
        %v5095 = vpack.c.bf16 %v2607, %v2607
        %v5096 = vpack.c.bf16 %v2620, %v2620
        %v5097 = vpack.c.bf16 %v2633, %v2633
        %v5098 = vpack.c.bf16 %v2646, %v2646
        %v5099 = vpack.c.bf16 %v2659, %v2659
        %v5100 = vpack.c.bf16 %v2672, %v2672
        %v5101 = vpack.c.bf16 %v2685, %v2685
        %v5102 = vpack.c.bf16 %v2698, %v2698
        %v5103 = vpack.c.bf16 %v2711, %v2711
        %v5104 = vpack.c.bf16 %v2724, %v2724
        %v5105 = vpack.c.bf16 %v2737, %v2737
        %v5106 = vpack.c.bf16 %v2750, %v2750
        %v5107 = vpack.c.bf16 %v2763, %v2763
        %v5108 = vpack.c.bf16 %v2776, %v2776
        %v5109 = vpack.c.bf16 %v2789, %v2789
        %v5110 = vpack.c.bf16 %v2802, %v2802
        %v5111 = vpack.c.bf16 %v2815, %v2815
        %v5112 = vpack.c.bf16 %v2828, %v2828
        %v5113 = vpack.c.bf16 %v2841, %v2841
        %v5114 = vpack.c.bf16 %v2854, %v2854
        %v5115 = vpack.c.bf16 %v2867, %v2867
        %v5116 = vpack.c.bf16 %v2880, %v2880
        %v5117 = vpack.c.bf16 %v2893, %v2893
        %v5118 = vpack.c.bf16 %v2906, %v2906
        %v5119 = vpack.c.bf16 %v2919, %v2919
        %v5120 = vpack.c.bf16 %v2932, %v2932
        %v5121 = vpack.c.bf16 %v2945, %v2945
        %v5122 = vld [vmem:[%s1] sm:$0xf]
        %v5123 = vld [vmem:[%s1 + $0x4] sm:$0xf]
        %v5124 = vld [vmem:[%s1 + $0x8] sm:$0xf]
        %v5125 = vld [vmem:[%s1 + $0xc] sm:$0xf]
        %v5126 = vld [vmem:[%s1 + $0x10] sm:$0xf]
        %v5127 = vld [vmem:[%s1 + $0x14] sm:$0xf]
        %v5128 = vld [vmem:[%s1 + $0x18] sm:$0xf]
        %v5129 = vld [vmem:[%s1 + $0x1c] sm:$0xf]
        %v5130 = vld [vmem:[%s1 + $0x20] sm:$0xf]
        %v5131 = vld [vmem:[%s1 + $0x24] sm:$0xf]
        %v5132 = vld [vmem:[%s1 + $0x28] sm:$0xf]
        %v5133 = vld [vmem:[%s1 + $0x2c] sm:$0xf]
        %v5134 = vld [vmem:[%s1 + $0x30] sm:$0xf]
        %v5135 = vld [vmem:[%s1 + $0x34] sm:$0xf]
        %v5136 = vld [vmem:[%s1 + $0x38] sm:$0xf]
        %v5137 = vld [vmem:[%s1 + $0x3c] sm:$0xf]
        %v5138 = vld [vmem:[%s1 + $0x40] sm:$0xf]
        %v5139 = vld [vmem:[%s1 + $0x44] sm:$0xf]
        %v5140 = vld [vmem:[%s1 + $0x48] sm:$0xf]
        %v5141 = vld [vmem:[%s1 + $0x4c] sm:$0xf]
        %v5142 = vld [vmem:[%s1 + $0x50] sm:$0xf]
        %v5143 = vld [vmem:[%s1 + $0x54] sm:$0xf]
        %v5144 = vld [vmem:[%s1 + $0x58] sm:$0xf]
        %v5145 = vld [vmem:[%s1 + $0x5c] sm:$0xf]
        %v5146 = vld [vmem:[%s1 + $0x60] sm:$0xf]
        %v5147 = vld [vmem:[%s1 + $0x64] sm:$0xf]
        %v5148 = vld [vmem:[%s1 + $0x68] sm:$0xf]
        %v5149 = vld [vmem:[%s1 + $0x6c] sm:$0xf]
        %v5150 = vld [vmem:[%s1 + $0x70] sm:$0xf]
        %v5151 = vld [vmem:[%s1 + $0x74] sm:$0xf]
        %v5152 = vld [vmem:[%s1 + $0x78] sm:$0xf]
        %v5153 = vld [vmem:[%s1 + $0x7c] sm:$0xf]
        %v5154 = vld [vmem:[%s2] sm:$0xf]
        %v5155 = vld [vmem:[%s2 + $0x4] sm:$0xf]
        %v5156 = vld [vmem:[%s2 + $0x8] sm:$0xf]
        %v5157 = vld [vmem:[%s2 + $0xc] sm:$0xf]
        %v5158 = vld [vmem:[%s2 + $0x10] sm:$0xf]
        %v5159 = vld [vmem:[%s2 + $0x14] sm:$0xf]
        %v5160 = vld [vmem:[%s2 + $0x18] sm:$0xf]
        %v5161 = vld [vmem:[%s2 + $0x1c] sm:$0xf]
        %v5162 = vld [vmem:[%s2 + $0x20] sm:$0xf]
        %v5163 = vld [vmem:[%s2 + $0x24] sm:$0xf]
        %v5164 = vld [vmem:[%s2 + $0x28] sm:$0xf]
        %v5165 = vld [vmem:[%s2 + $0x2c] sm:$0xf]
        %v5166 = vld [vmem:[%s2 + $0x30] sm:$0xf]
        %v5167 = vld [vmem:[%s2 + $0x34] sm:$0xf]
        %v5168 = vld [vmem:[%s2 + $0x38] sm:$0xf]
        %v5169 = vld [vmem:[%s2 + $0x3c] sm:$0xf]
        %v5170 = vld [vmem:[%s2 + $0x40] sm:$0xf]
        %v5171 = vld [vmem:[%s2 + $0x44] sm:$0xf]
        %v5172 = vld [vmem:[%s2 + $0x48] sm:$0xf]
        %v5173 = vld [vmem:[%s2 + $0x4c] sm:$0xf]
        %v5174 = vld [vmem:[%s2 + $0x50] sm:$0xf]
        %v5175 = vld [vmem:[%s2 + $0x54] sm:$0xf]
        %v5176 = vld [vmem:[%s2 + $0x58] sm:$0xf]
        %v5177 = vld [vmem:[%s2 + $0x5c] sm:$0xf]
        %v5178 = vld [vmem:[%s2 + $0x60] sm:$0xf]
        %v5179 = vld [vmem:[%s2 + $0x64] sm:$0xf]
        %v5180 = vld [vmem:[%s2 + $0x68] sm:$0xf]
        %v5181 = vld [vmem:[%s2 + $0x6c] sm:$0xf]
        %v5182 = vld [vmem:[%s2 + $0x70] sm:$0xf]
        %v5183 = vld [vmem:[%s2 + $0x74] sm:$0xf]
        %v5184 = vld [vmem:[%s2 + $0x78] sm:$0xf]
        %v5185 = vld [vmem:[%s2 + $0x7c] sm:$0xf]
        %v5250 = vunpack.c.l.b16 %v4238
        %v5251 = vunpack.c.l.b16 %v4251
        %v5252 = vunpack.c.l.b16 %v4264
        %v5253 = vunpack.c.l.b16 %v4277
        %v5254 = vunpack.c.l.b16 %v4290
        %v5255 = vunpack.c.l.b16 %v4303
        %v5256 = vunpack.c.l.b16 %v4316
        %v5257 = vunpack.c.l.b16 %v4329
        %v5258 = vunpack.c.l.b16 %v4342
        %v5259 = vunpack.c.l.b16 %v4355
        %v5260 = vunpack.c.l.b16 %v4368
        %v5261 = vunpack.c.l.b16 %v4381
        %v5262 = vunpack.c.l.b16 %v4394
        %v5263 = vunpack.c.l.b16 %v4407
        %v5264 = vunpack.c.l.b16 %v4420
        %v5265 = vunpack.c.l.b16 %v4433
        %v5266 = vunpack.c.l.b16 %v4446
        %v5267 = vunpack.c.l.b16 %v4459
        %v5268 = vunpack.c.l.b16 %v4472
        %v5269 = vunpack.c.l.b16 %v4485
        %v5270 = vunpack.c.l.b16 %v4498
        %v5271 = vunpack.c.l.b16 %v4511
        %v5272 = vunpack.c.l.b16 %v4524
        %v5273 = vunpack.c.l.b16 %v4537
        %v5274 = vunpack.c.l.b16 %v4550
        %v5275 = vunpack.c.l.b16 %v4563
        %v5276 = vunpack.c.l.b16 %v4576
        %v5277 = vunpack.c.l.b16 %v4589
        %v5278 = vunpack.c.l.b16 %v4602
        %v5279 = vunpack.c.l.b16 %v4615
        %v5280 = vunpack.c.l.b16 %v4628
        %v5281 = vunpack.c.l.b16 %v4641
        %v5282 = vunpack.c.l.b16 %v4654
        %v5283 = vunpack.c.l.b16 %v4667
        %v5284 = vunpack.c.l.b16 %v4680
        %v5285 = vunpack.c.l.b16 %v4693
        %v5286 = vunpack.c.l.b16 %v4706
        %v5287 = vunpack.c.l.b16 %v4719
        %v5288 = vunpack.c.l.b16 %v4732
        %v5289 = vunpack.c.l.b16 %v4745
        %v5290 = vunpack.c.l.b16 %v4758
        %v5291 = vunpack.c.l.b16 %v4771
        %v5292 = vunpack.c.l.b16 %v4784
        %v5293 = vunpack.c.l.b16 %v4797
        %v5294 = vunpack.c.l.b16 %v4810
        %v5295 = vunpack.c.l.b16 %v4823
        %v5296 = vunpack.c.l.b16 %v4836
        %v5297 = vunpack.c.l.b16 %v4849
        %v5298 = vunpack.c.l.b16 %v4862
        %v5299 = vunpack.c.l.b16 %v4875
        %v5300 = vunpack.c.l.b16 %v4888
        %v5301 = vunpack.c.l.b16 %v4901
        %v5302 = vunpack.c.l.b16 %v4914
        %v5303 = vunpack.c.l.b16 %v4927
        %v5304 = vunpack.c.l.b16 %v4940
        %v5305 = vunpack.c.l.b16 %v4953
        %v5306 = vunpack.c.l.b16 %v4966
        %v5307 = vunpack.c.l.b16 %v4979
        %v5308 = vunpack.c.l.b16 %v4992
        %v5309 = vunpack.c.l.b16 %v5005
        %v5310 = vunpack.c.l.b16 %v5018
        %v5311 = vunpack.c.l.b16 %v5031
        %v5312 = vunpack.c.l.b16 %v5044
        %v5313 = vunpack.c.l.b16 %v5057
        %vm5314 = vcmask 1041409
        %v5315 = vsel %vm5314, %v5252, %v5250
        %vm5316 = vcmask 1042434
        %v5317 = vsel %vm5316, %v5254, %v5315
        %vm5318 = vcmask 1043459
        %v5319 = vsel %vm5318, %v5256, %v5317
        %vm5320 = vcmask 1044484
        %v5321 = vsel %vm5320, %v5258, %v5319
        %vm5322 = vcmask 1045509
        %v5323 = vsel %vm5322, %v5260, %v5321
        %vm5324 = vcmask 1046534
        %v5325 = vsel %vm5324, %v5262, %v5323
        %vm5326 = vcmask 1047559
        %v5327 = vsel %vm5326, %v5264, %v5325
        %v5328 = vsel %vm5314, %v5253, %v5251
        %v5329 = vsel %vm5316, %v5255, %v5328
        %v5330 = vsel %vm5318, %v5257, %v5329
        %v5331 = vsel %vm5320, %v5259, %v5330
        %v5332 = vsel %vm5322, %v5261, %v5331
        %v5333 = vsel %vm5324, %v5263, %v5332
        %v5334 = vsel %vm5326, %v5265, %v5333
        %v5335 = vsel %vm5314, %v5268, %v5266
        %v5336 = vsel %vm5316, %v5270, %v5335
        %v5337 = vsel %vm5318, %v5272, %v5336
        %v5338 = vsel %vm5320, %v5274, %v5337
        %v5339 = vsel %vm5322, %v5276, %v5338
        %v5340 = vsel %vm5324, %v5278, %v5339
        %v5341 = vsel %vm5326, %v5280, %v5340
        %v5342 = vsel %vm5314, %v5269, %v5267
        %v5343 = vsel %vm5316, %v5271, %v5342
        %v5344 = vsel %vm5318, %v5273, %v5343
        %v5345 = vsel %vm5320, %v5275, %v5344
        %v5346 = vsel %vm5322, %v5277, %v5345
        %v5347 = vsel %vm5324, %v5279, %v5346
        %v5348 = vsel %vm5326, %v5281, %v5347
        %v5349 = vsel %vm5314, %v5284, %v5282
        %v5350 = vsel %vm5316, %v5286, %v5349
        %v5351 = vsel %vm5318, %v5288, %v5350
        %v5352 = vsel %vm5320, %v5290, %v5351
        %v5353 = vsel %vm5322, %v5292, %v5352
        %v5354 = vsel %vm5324, %v5294, %v5353
        %v5355 = vsel %vm5326, %v5296, %v5354
        %v5356 = vsel %vm5314, %v5285, %v5283
        %v5357 = vsel %vm5316, %v5287, %v5356
        %v5358 = vsel %vm5318, %v5289, %v5357
        %v5359 = vsel %vm5320, %v5291, %v5358
        %v5360 = vsel %vm5322, %v5293, %v5359
        %v5361 = vsel %vm5324, %v5295, %v5360
        %v5362 = vsel %vm5326, %v5297, %v5361
        %v5363 = vsel %vm5314, %v5300, %v5298
        %v5364 = vsel %vm5316, %v5302, %v5363
        %v5365 = vsel %vm5318, %v5304, %v5364
        %v5366 = vsel %vm5320, %v5306, %v5365
        %v5367 = vsel %vm5322, %v5308, %v5366
        %v5368 = vsel %vm5324, %v5310, %v5367
        %v5369 = vsel %vm5326, %v5312, %v5368
        %v5370 = vsel %vm5314, %v5301, %v5299
        %v5371 = vsel %vm5316, %v5303, %v5370
        %v5372 = vsel %vm5318, %v5305, %v5371
        %v5373 = vsel %vm5320, %v5307, %v5372
        %v5374 = vsel %vm5322, %v5309, %v5373
        %v5375 = vsel %vm5324, %v5311, %v5374
        %v5376 = vsel %vm5326, %v5313, %v5375
        %v5377 = vpack.c.b16 %v5341, %v5327
        %v5378 = vpack.c.b16 %v5348, %v5334
        %v5379 = vpack.c.b16 %v5369, %v5355
        %v5380 = vpack.c.b16 %v5376, %v5362
        %v5417 = vunpack.c.l.b16 %v5154
        %v5418 = vunpack.c.l.b16 %v5155
        %v5419 = vunpack.c.l.b16 %v5156
        %v5420 = vunpack.c.l.b16 %v5157
        %v5421 = vunpack.c.l.b16 %v5158
        %v5422 = vunpack.c.l.b16 %v5159
        %v5423 = vunpack.c.l.b16 %v5160
        %v5424 = vunpack.c.l.b16 %v5161
        %v5425 = vunpack.c.l.b16 %v5162
        %v5426 = vunpack.c.l.b16 %v5163
        %v5427 = vunpack.c.l.b16 %v5164
        %v5428 = vunpack.c.l.b16 %v5165
        %v5429 = vunpack.c.l.b16 %v5166
        %v5430 = vunpack.c.l.b16 %v5167
        %v5431 = vunpack.c.l.b16 %v5168
        %v5432 = vunpack.c.l.b16 %v5169
        %v5433 = vunpack.c.l.b16 %v5170
        %v5434 = vunpack.c.l.b16 %v5171
        %v5435 = vunpack.c.l.b16 %v5172
        %v5436 = vunpack.c.l.b16 %v5173
        %v5437 = vunpack.c.l.b16 %v5174
        %v5438 = vunpack.c.l.b16 %v5175
        %v5439 = vunpack.c.l.b16 %v5176
        %v5440 = vunpack.c.l.b16 %v5177
        %v5441 = vunpack.c.l.b16 %v5178
        %v5442 = vunpack.c.l.b16 %v5179
        %v5443 = vunpack.c.l.b16 %v5180
        %v5444 = vunpack.c.l.b16 %v5181
        %v5445 = vunpack.c.l.b16 %v5182
        %v5446 = vunpack.c.l.b16 %v5183
        %v5447 = vunpack.c.l.b16 %v5184
        %v5448 = vunpack.c.l.b16 %v5185
        %v5449 = vpack.c.b16 %v5418, %v5417
        %v5450 = vpack.c.b16 %v5420, %v5419
        %v5451 = vpack.c.b16 %v5422, %v5421
        %v5452 = vpack.c.b16 %v5424, %v5423
        %v5453 = vpack.c.b16 %v5426, %v5425
        %v5454 = vpack.c.b16 %v5428, %v5427
        %v5455 = vpack.c.b16 %v5430, %v5429
        %v5456 = vpack.c.b16 %v5432, %v5431
        %v5457 = vpack.c.b16 %v5434, %v5433
        %v5458 = vpack.c.b16 %v5436, %v5435
        %v5459 = vpack.c.b16 %v5438, %v5437
        %v5460 = vpack.c.b16 %v5440, %v5439
        %v5461 = vpack.c.b16 %v5442, %v5441
        %v5462 = vpack.c.b16 %v5444, %v5443
        %v5463 = vpack.c.b16 %v5446, %v5445
        %v5464 = vpack.c.b16 %v5448, %v5447
        %5481 = vmatprep.subr.bf16.mxu0 0
        %5482 = vmatpush1.bf16.msra.mxu0 %v5449
        %5483 = vmatprep.subr.bf16.mxu0 0
        %5484 = vmatpush1.bf16.msra.mxu0 %v5450
        %5485 = vmatprep.subr.bf16.mxu0 0
        %5486 = vmatpush1.bf16.msra.mxu0 %v5451
        %5487 = vmatprep.subr.bf16.mxu0 0
        %5488 = vmatpush1.bf16.msra.mxu0 %v5452
        %5489 = vmatprep.subr.bf16.mxu0 0
        %5490 = vmatpush1.bf16.msra.mxu0 %v5453
        %5491 = vmatprep.subr.bf16.mxu0 0
        %5492 = vmatpush1.bf16.msra.mxu0 %v5454
        %5493 = vmatprep.subr.bf16.mxu0 0
        %5494 = vmatpush1.bf16.msra.mxu0 %v5455
        %5495 = vmatprep.subr.bf16.mxu0 0
        %5496 = vmatpush1.bf16.msra.mxu0 %v5456
        %5497 = vmatprep.subr.bf16.mxu0 0
        %5498 = vmatpush1.bf16.msra.mxu0 %v5457
        %5499 = vmatprep.subr.bf16.mxu0 0
        %5500 = vmatpush1.bf16.msra.mxu0 %v5458
        %5501 = vmatprep.subr.bf16.mxu0 0
        %5502 = vmatpush1.bf16.msra.mxu0 %v5459
        %5503 = vmatprep.subr.bf16.mxu0 0
        %5504 = vmatpush1.bf16.msra.mxu0 %v5460
        %5505 = vmatprep.subr.bf16.mxu0 0
        %5506 = vmatpush1.bf16.msra.mxu0 %v5461
        %5507 = vmatprep.subr.bf16.mxu0 0
        %5508 = vmatpush1.bf16.msra.mxu0 %v5462
        %5509 = vmatprep.subr.bf16.mxu0 0
        %5510 = vmatpush1.bf16.msra.mxu0 %v5463
        %5511 = vmatprep.subr.bf16.mxu0 0
        %5512 = vmatpush1.bf16.msra.mxu0 %v5464
        %5513 = vmatprep.mubr.bf16.mxu0 %v5378
        %5514 = vmatmul.mubr.bf16.gmra.mrb[0].mxu0 %v5377
        %v5515 = vpop.f32.mrb[0].mxu0
        %v5516 = vadd.f32 0.0, %v5515
        %v5517 = vpop.f32.mrb[0].mxu0
        %v5518 = vpop.f32.mrb[0].mxu0
        %v5519 = vadd.f32 0.0, %v5518
        %v5520 = vpop.f32.mrb[0].mxu0
        %5521 = vmatprep.mubr.bf16.mxu0 %v5380
        %5522 = vmatmul.mubr.bf16.gmra.mrb[0].mxu0 %v5379
        %v5523 = vpop.f32.mrb[0].mxu0
        %v5524 = vadd.f32 0.0, %v5523
        %v5525 = vpop.f32.mrb[0].mxu0
        %v5526 = vpop.f32.mrb[0].mxu0
        %v5527 = vadd.f32 0.0, %v5526
        %v5528 = vpop.f32.mrb[0].mxu0
        %5529 = vdwg.mxu0
        %v5594 = vunpack.c.l.b16 %v5058
        %v5595 = vunpack.c.l.b16 %v5059
        %v5596 = vunpack.c.l.b16 %v5060
        %v5597 = vunpack.c.l.b16 %v5061
        %v5598 = vunpack.c.l.b16 %v5062
        %v5599 = vunpack.c.l.b16 %v5063
        %v5600 = vunpack.c.l.b16 %v5064
        %v5601 = vunpack.c.l.b16 %v5065
        %v5602 = vunpack.c.l.b16 %v5066
        %v5603 = vunpack.c.l.b16 %v5067
        %v5604 = vunpack.c.l.b16 %v5068
        %v5605 = vunpack.c.l.b16 %v5069
        %v5606 = vunpack.c.l.b16 %v5070
        %v5607 = vunpack.c.l.b16 %v5071
        %v5608 = vunpack.c.l.b16 %v5072
        %v5609 = vunpack.c.l.b16 %v5073
        %v5610 = vunpack.c.l.b16 %v5074
        %v5611 = vunpack.c.l.b16 %v5075
        %v5612 = vunpack.c.l.b16 %v5076
        %v5613 = vunpack.c.l.b16 %v5077
        %v5614 = vunpack.c.l.b16 %v5078
        %v5615 = vunpack.c.l.b16 %v5079
        %v5616 = vunpack.c.l.b16 %v5080
        %v5617 = vunpack.c.l.b16 %v5081
        %v5618 = vunpack.c.l.b16 %v5082
        %v5619 = vunpack.c.l.b16 %v5083
        %v5620 = vunpack.c.l.b16 %v5084
        %v5621 = vunpack.c.l.b16 %v5085
        %v5622 = vunpack.c.l.b16 %v5086
        %v5623 = vunpack.c.l.b16 %v5087
        %v5624 = vunpack.c.l.b16 %v5088
        %v5625 = vunpack.c.l.b16 %v5089
        %v5626 = vunpack.c.l.b16 %v5090
        %v5627 = vunpack.c.l.b16 %v5091
        %v5628 = vunpack.c.l.b16 %v5092
        %v5629 = vunpack.c.l.b16 %v5093
        %v5630 = vunpack.c.l.b16 %v5094
        %v5631 = vunpack.c.l.b16 %v5095
        %v5632 = vunpack.c.l.b16 %v5096
        %v5633 = vunpack.c.l.b16 %v5097
        %v5634 = vunpack.c.l.b16 %v5098
        %v5635 = vunpack.c.l.b16 %v5099
        %v5636 = vunpack.c.l.b16 %v5100
        %v5637 = vunpack.c.l.b16 %v5101
        %v5638 = vunpack.c.l.b16 %v5102
        %v5639 = vunpack.c.l.b16 %v5103
        %v5640 = vunpack.c.l.b16 %v5104
        %v5641 = vunpack.c.l.b16 %v5105
        %v5642 = vunpack.c.l.b16 %v5106
        %v5643 = vunpack.c.l.b16 %v5107
        %v5644 = vunpack.c.l.b16 %v5108
        %v5645 = vunpack.c.l.b16 %v5109
        %v5646 = vunpack.c.l.b16 %v5110
        %v5647 = vunpack.c.l.b16 %v5111
        %v5648 = vunpack.c.l.b16 %v5112
        %v5649 = vunpack.c.l.b16 %v5113
        %v5650 = vunpack.c.l.b16 %v5114
        %v5651 = vunpack.c.l.b16 %v5115
        %v5652 = vunpack.c.l.b16 %v5116
        %v5653 = vunpack.c.l.b16 %v5117
        %v5654 = vunpack.c.l.b16 %v5118
        %v5655 = vunpack.c.l.b16 %v5119
        %v5656 = vunpack.c.l.b16 %v5120
        %v5657 = vunpack.c.l.b16 %v5121
        %v5658 = vsel %vm5314, %v5596, %v5594
        %v5659 = vsel %vm5316, %v5598, %v5658
        %v5660 = vsel %vm5318, %v5600, %v5659
        %v5661 = vsel %vm5320, %v5602, %v5660
        %v5662 = vsel %vm5322, %v5604, %v5661
        %v5663 = vsel %vm5324, %v5606, %v5662
        %v5664 = vsel %vm5326, %v5608, %v5663
        %v5665 = vsel %vm5314, %v5597, %v5595
        %v5666 = vsel %vm5316, %v5599, %v5665
        %v5667 = vsel %vm5318, %v5601, %v5666
        %v5668 = vsel %vm5320, %v5603, %v5667
        %v5669 = vsel %vm5322, %v5605, %v5668
        %v5670 = vsel %vm5324, %v5607, %v5669
        %v5671 = vsel %vm5326, %v5609, %v5670
        %v5672 = vsel %vm5314, %v5612, %v5610
        %v5673 = vsel %vm5316, %v5614, %v5672
        %v5674 = vsel %vm5318, %v5616, %v5673
        %v5675 = vsel %vm5320, %v5618, %v5674
        %v5676 = vsel %vm5322, %v5620, %v5675
        %v5677 = vsel %vm5324, %v5622, %v5676
        %v5678 = vsel %vm5326, %v5624, %v5677
        %v5679 = vsel %vm5314, %v5613, %v5611
        %v5680 = vsel %vm5316, %v5615, %v5679
        %v5681 = vsel %vm5318, %v5617, %v5680
        %v5682 = vsel %vm5320, %v5619, %v5681
        %v5683 = vsel %vm5322, %v5621, %v5682
        %v5684 = vsel %vm5324, %v5623, %v5683
        %v5685 = vsel %vm5326, %v5625, %v5684
        %v5686 = vsel %vm5314, %v5628, %v5626
        %v5687 = vsel %vm5316, %v5630, %v5686
        %v5688 = vsel %vm5318, %v5632, %v5687
        %v5689 = vsel %vm5320, %v5634, %v5688
        %v5690 = vsel %vm5322, %v5636, %v5689
        %v5691 = vsel %vm5324, %v5638, %v5690
        %v5692 = vsel %vm5326, %v5640, %v5691
        %v5693 = vsel %vm5314, %v5629, %v5627
        %v5694 = vsel %vm5316, %v5631, %v5693
        %v5695 = vsel %vm5318, %v5633, %v5694
        %v5696 = vsel %vm5320, %v5635, %v5695
        %v5697 = vsel %vm5322, %v5637, %v5696
        %v5698 = vsel %vm5324, %v5639, %v5697
        %v5699 = vsel %vm5326, %v5641, %v5698
        %v5700 = vsel %vm5314, %v5644, %v5642
        %v5701 = vsel %vm5316, %v5646, %v5700
        %v5702 = vsel %vm5318, %v5648, %v5701
        %v5703 = vsel %vm5320, %v5650, %v5702
        %v5704 = vsel %vm5322, %v5652, %v5703
        %v5705 = vsel %vm5324, %v5654, %v5704
        %v5706 = vsel %vm5326, %v5656, %v5705
        %v5707 = vsel %vm5314, %v5645, %v5643
        %v5708 = vsel %vm5316, %v5647, %v5707
        %v5709 = vsel %vm5318, %v5649, %v5708
        %v5710 = vsel %vm5320, %v5651, %v5709
        %v5711 = vsel %vm5322, %v5653, %v5710
        %v5712 = vsel %vm5324, %v5655, %v5711
        %v5713 = vsel %vm5326, %v5657, %v5712
        %v5714 = vpack.c.b16 %v5678, %v5664
        %v5715 = vpack.c.b16 %v5685, %v5671
        %v5716 = vpack.c.b16 %v5706, %v5692
        %v5717 = vpack.c.b16 %v5713, %v5699
        %v5754 = vunpack.c.l.b16 %v5122
        %v5755 = vunpack.c.l.b16 %v5123
        %v5756 = vunpack.c.l.b16 %v5124
        %v5757 = vunpack.c.l.b16 %v5125
        %v5758 = vunpack.c.l.b16 %v5126
        %v5759 = vunpack.c.l.b16 %v5127
        %v5760 = vunpack.c.l.b16 %v5128
        %v5761 = vunpack.c.l.b16 %v5129
        %v5762 = vunpack.c.l.b16 %v5130
        %v5763 = vunpack.c.l.b16 %v5131
        %v5764 = vunpack.c.l.b16 %v5132
        %v5765 = vunpack.c.l.b16 %v5133
        %v5766 = vunpack.c.l.b16 %v5134
        %v5767 = vunpack.c.l.b16 %v5135
        %v5768 = vunpack.c.l.b16 %v5136
        %v5769 = vunpack.c.l.b16 %v5137
        %v5770 = vunpack.c.l.b16 %v5138
        %v5771 = vunpack.c.l.b16 %v5139
        %v5772 = vunpack.c.l.b16 %v5140
        %v5773 = vunpack.c.l.b16 %v5141
        %v5774 = vunpack.c.l.b16 %v5142
        %v5775 = vunpack.c.l.b16 %v5143
        %v5776 = vunpack.c.l.b16 %v5144
        %v5777 = vunpack.c.l.b16 %v5145
        %v5778 = vunpack.c.l.b16 %v5146
        %v5779 = vunpack.c.l.b16 %v5147
        %v5780 = vunpack.c.l.b16 %v5148
        %v5781 = vunpack.c.l.b16 %v5149
        %v5782 = vunpack.c.l.b16 %v5150
        %v5783 = vunpack.c.l.b16 %v5151
        %v5784 = vunpack.c.l.b16 %v5152
        %v5785 = vunpack.c.l.b16 %v5153
        %v5786 = vpack.c.b16 %v5755, %v5754
        %v5787 = vpack.c.b16 %v5757, %v5756
        %v5788 = vpack.c.b16 %v5759, %v5758
        %v5789 = vpack.c.b16 %v5761, %v5760
        %v5790 = vpack.c.b16 %v5763, %v5762
        %v5791 = vpack.c.b16 %v5765, %v5764
        %v5792 = vpack.c.b16 %v5767, %v5766
        %v5793 = vpack.c.b16 %v5769, %v5768
        %v5794 = vpack.c.b16 %v5771, %v5770
        %v5795 = vpack.c.b16 %v5773, %v5772
        %v5796 = vpack.c.b16 %v5775, %v5774
        %v5797 = vpack.c.b16 %v5777, %v5776
        %v5798 = vpack.c.b16 %v5779, %v5778
        %v5799 = vpack.c.b16 %v5781, %v5780
        %v5800 = vpack.c.b16 %v5783, %v5782
        %v5801 = vpack.c.b16 %v5785, %v5784
        %5818 = vmatprep.subr.bf16.mxu0 0
        %5819 = vmatpush1.bf16.msra.mxu0 %v5786
        %5820 = vmatprep.subr.bf16.mxu0 0
        %5821 = vmatpush1.bf16.msra.mxu0 %v5787
        %5822 = vmatprep.subr.bf16.mxu0 0
        %5823 = vmatpush1.bf16.msra.mxu0 %v5788
        %5824 = vmatprep.subr.bf16.mxu0 0
        %5825 = vmatpush1.bf16.msra.mxu0 %v5789
        %5826 = vmatprep.subr.bf16.mxu0 0
        %5827 = vmatpush1.bf16.msra.mxu0 %v5790
        %5828 = vmatprep.subr.bf16.mxu0 0
        %5829 = vmatpush1.bf16.msra.mxu0 %v5791
        %5830 = vmatprep.subr.bf16.mxu0 0
        %5831 = vmatpush1.bf16.msra.mxu0 %v5792
        %5832 = vmatprep.subr.bf16.mxu0 0
        %5833 = vmatpush1.bf16.msra.mxu0 %v5793
        %5834 = vmatprep.subr.bf16.mxu0 0
        %5835 = vmatpush1.bf16.msra.mxu0 %v5794
        %5836 = vmatprep.subr.bf16.mxu0 0
        %5837 = vmatpush1.bf16.msra.mxu0 %v5795
        %5838 = vmatprep.subr.bf16.mxu0 0
        %5839 = vmatpush1.bf16.msra.mxu0 %v5796
        %5840 = vmatprep.subr.bf16.mxu0 0
        %5841 = vmatpush1.bf16.msra.mxu0 %v5797
        %5842 = vmatprep.subr.bf16.mxu0 0
        %5843 = vmatpush1.bf16.msra.mxu0 %v5798
        %5844 = vmatprep.subr.bf16.mxu0 0
        %5845 = vmatpush1.bf16.msra.mxu0 %v5799
        %5846 = vmatprep.subr.bf16.mxu0 0
        %5847 = vmatpush1.bf16.msra.mxu0 %v5800
        %5848 = vmatprep.subr.bf16.mxu0 0
        %5849 = vmatpush1.bf16.msra.mxu0 %v5801
        %5850 = vmatprep.mubr.bf16.mxu0 %v5715
        %5851 = vmatmul.mubr.bf16.gmra.mrb[0].mxu0 %v5714
        %v5852 = vpop.f32.mrb[0].mxu0
        %v5853 = vadd.f32 %v5516, %v5852
        %v5854 = vpop.f32.mrb[0].mxu0
        %v5855 = vpop.f32.mrb[0].mxu0
        %v5856 = vadd.f32 %v5519, %v5855
        %v5857 = vpop.f32.mrb[0].mxu0
        %5858 = vmatprep.mubr.bf16.mxu0 %v5717
        %5859 = vmatmul.mubr.bf16.gmra.mrb[0].mxu0 %v5716
        %v5860 = vpop.f32.mrb[0].mxu0
        %v5861 = vadd.f32 %v5524, %v5860
        %v5862 = vpop.f32.mrb[0].mxu0
        %v5863 = vpop.f32.mrb[0].mxu0
        %v5864 = vadd.f32 %v5527, %v5863
        %v5865 = vpop.f32.mrb[0].mxu0
        %5866 = vdwg.mxu0
        %v5867 = vld [vmem:[%s3] sm:$0x1]
        %v5869 = vlaneseq
        %v5870 = vshrl.u32 %v5869, 7
        %v5871 = vsub.s32 0, %v5870
        %v5872 = vrot.slane %v5867, %v5871
        %v5874 = vadd.f32 %v5853, %v5872
        %v5875 = vadd.f32 %v5856, %v5872
        %v5876 = vadd.f32 %v5861, %v5872
        %v5877 = vadd.f32 %v5864, %v5872
        %v5878 = vmax.f32 %v5874, 0.0
        %v5879 = vmax.f32 %v5875, 0.0
        %v5880 = vmax.f32 %v5876, 0.0
        %v5881 = vmax.f32 %v5877, 0.0
        %v5882 = vpack.c.bf16 %v5879, %v5878
        %v5883 = vpack.c.bf16 %v5881, %v5880
        %v5884 = vld [vmem:[%s5] sm:$0x1]
        %5885 = vst [vmem:[%s1336] sm:$0xff] %v5878
        %v5886 = vld [vmem:[%s4] sm:$0xf]
        %v5887 = vld [vmem:[%s4 + $0x4] sm:$0xf]
        %v5888 = vld [vmem:[%s4 + $0x8] sm:$0xf]
        %v5889 = vld [vmem:[%s4 + $0xc] sm:$0xf]
        %v5890 = vld [vmem:[%s4 + $0x10] sm:$0xf]
        %v5891 = vld [vmem:[%s4 + $0x14] sm:$0xf]
        %v5892 = vld [vmem:[%s4 + $0x18] sm:$0xf]
        %v5893 = vld [vmem:[%s4 + $0x1c] sm:$0xf]
        %v5894 = vld [vmem:[%s4 + $0x20] sm:$0xf]
        %v5895 = vld [vmem:[%s4 + $0x24] sm:$0xf]
        %v5896 = vld [vmem:[%s4 + $0x28] sm:$0xf]
        %v5897 = vld [vmem:[%s4 + $0x2c] sm:$0xf]
        %v5898 = vld [vmem:[%s4 + $0x30] sm:$0xf]
        %v5899 = vld [vmem:[%s4 + $0x34] sm:$0xf]
        %v5900 = vld [vmem:[%s4 + $0x38] sm:$0xf]
        %v5901 = vld [vmem:[%s4 + $0x3c] sm:$0xf]
        %v5918 = vunpack.c.l.b16 %v5886
        %v5919 = vunpack.c.l.b16 %v5887
        %v5920 = vunpack.c.l.b16 %v5888
        %v5921 = vunpack.c.l.b16 %v5889
        %v5922 = vunpack.c.l.b16 %v5890
        %v5923 = vunpack.c.l.b16 %v5891
        %v5924 = vunpack.c.l.b16 %v5892
        %v5925 = vunpack.c.l.b16 %v5893
        %v5926 = vunpack.c.l.b16 %v5894
        %v5927 = vunpack.c.l.b16 %v5895
        %v5928 = vunpack.c.l.b16 %v5896
        %v5929 = vunpack.c.l.b16 %v5897
        %v5930 = vunpack.c.l.b16 %v5898
        %v5931 = vunpack.c.l.b16 %v5899
        %v5932 = vunpack.c.l.b16 %v5900
        %v5933 = vunpack.c.l.b16 %v5901
        %v5934 = vpack.c.b16 %v5919, %v5918
        %v5935 = vpack.c.b16 %v5921, %v5920
        %v5936 = vpack.c.b16 %v5923, %v5922
        %v5937 = vpack.c.b16 %v5925, %v5924
        %v5938 = vpack.c.b16 %v5927, %v5926
        %v5939 = vpack.c.b16 %v5929, %v5928
        %v5940 = vpack.c.b16 %v5931, %v5930
        %v5941 = vpack.c.b16 %v5933, %v5932
        %5950 = vmatprep.subr.bf16.mxu0 0
        %5951 = vmatpush1.bf16.msra.mxu0 %v5934
        %5952 = vmatprep.subr.bf16.mxu0 0
        %5953 = vmatpush1.bf16.msra.mxu0 %v5935
        %5954 = vmatprep.subr.bf16.mxu0 0
        %5955 = vmatpush1.bf16.msra.mxu0 %v5936
        %5956 = vmatprep.subr.bf16.mxu0 0
        %5957 = vmatpush1.bf16.msra.mxu0 %v5937
        %5958 = vmatprep.subr.bf16.mxu0 0
        %5959 = vmatpush1.bf16.msra.mxu0 %v5938
        %5960 = vmatprep.subr.bf16.mxu0 0
        %5961 = vmatpush1.bf16.msra.mxu0 %v5939
        %5962 = vmatprep.subr.bf16.mxu0 0
        %5963 = vmatpush1.bf16.msra.mxu0 %v5940
        %5964 = vmatprep.subr.bf16.mxu0 0
        %5965 = vmatpush1.bf16.msra.mxu0 %v5941
        %5966 = vmatprep.subr.bf16.mxu0 0
        %5967 = vmatpush1.bf16.msra.mxu0 0
        %5968 = vmatprep.subr.bf16.mxu0 0
        %5969 = vmatpush1.bf16.msra.mxu0 0
        %5970 = vmatprep.subr.bf16.mxu0 0
        %5971 = vmatpush1.bf16.msra.mxu0 0
        %5972 = vmatprep.subr.bf16.mxu0 0
        %5973 = vmatpush1.bf16.msra.mxu0 0
        %5974 = vmatprep.subr.bf16.mxu0 0
        %5975 = vmatpush1.bf16.msra.mxu0 0
        %5976 = vmatprep.subr.bf16.mxu0 0
        %5977 = vmatpush1.bf16.msra.mxu0 0
        %5978 = vmatprep.subr.bf16.mxu0 0
        %5979 = vmatpush1.bf16.msra.mxu0 0
        %5980 = vmatprep.subr.bf16.mxu0 0
        %5981 = vmatpush1.bf16.msra.mxu0 0
        %5982 = vmatprep.mubr.bf16.mxu0 0
        %5983 = vmatmul.mubr.bf16.gmra.mrb[0].mxu0 %v5882
        %v5984 = vpop.f32.mrb[0].mxu0
        %v5985 = vadd.f32 0.0, %v5984
        %v5986 = vpop.f32.mrb[0].mxu0
        %v5987 = vpop.f32.mrb[0].mxu0
        %v5988 = vpop.f32.mrb[0].mxu0
        %5989 = vdwg.mxu0
        %v5991 = vlaneseq
        %v5992 = vshrl.u32 %v5991, 7
        %v5993 = vsub.s32 0, %v5992
        %v5994 = vrot.slane %v5884, %v5993
        %v5996 = vadd.f32 %v5994, %v5985
        %5997 = vst [vmem:[%s1336 + $0x8] sm:$0xff] %v5879
        %v5998 = vld [vmem:[%s4 + $0x40] sm:$0xf]
        %v5999 = vld [vmem:[%s4 + $0x44] sm:$0xf]
        %v6000 = vld [vmem:[%s4 + $0x48] sm:$0xf]
        %v6001 = vld [vmem:[%s4 + $0x4c] sm:$0xf]
        %v6002 = vld [vmem:[%s4 + $0x50] sm:$0xf]
        %v6003 = vld [vmem:[%s4 + $0x54] sm:$0xf]
        %v6004 = vld [vmem:[%s4 + $0x58] sm:$0xf]
        %v6005 = vld [vmem:[%s4 + $0x5c] sm:$0xf]
        %v6006 = vld [vmem:[%s4 + $0x60] sm:$0xf]
        %v6007 = vld [vmem:[%s4 + $0x64] sm:$0xf]
        %v6008 = vld [vmem:[%s4 + $0x68] sm:$0xf]
        %v6009 = vld [vmem:[%s4 + $0x6c] sm:$0xf]
        %v6010 = vld [vmem:[%s4 + $0x70] sm:$0xf]
        %v6011 = vld [vmem:[%s4 + $0x74] sm:$0xf]
        %v6012 = vld [vmem:[%s4 + $0x78] sm:$0xf]
        %v6013 = vld [vmem:[%s4 + $0x7c] sm:$0xf]
        %v6015 = vrot.slane %v5882, 4
        %v6033 = vunpack.c.l.b16 %v5998
        %v6034 = vunpack.c.l.b16 %v5999
        %v6035 = vunpack.c.l.b16 %v6000
        %v6036 = vunpack.c.l.b16 %v6001
        %v6037 = vunpack.c.l.b16 %v6002
        %v6038 = vunpack.c.l.b16 %v6003
        %v6039 = vunpack.c.l.b16 %v6004
        %v6040 = vunpack.c.l.b16 %v6005
        %v6041 = vunpack.c.l.b16 %v6006
        %v6042 = vunpack.c.l.b16 %v6007
        %v6043 = vunpack.c.l.b16 %v6008
        %v6044 = vunpack.c.l.b16 %v6009
        %v6045 = vunpack.c.l.b16 %v6010
        %v6046 = vunpack.c.l.b16 %v6011
        %v6047 = vunpack.c.l.b16 %v6012
        %v6048 = vunpack.c.l.b16 %v6013
        %v6049 = vpack.c.b16 %v6034, %v6033
        %v6050 = vpack.c.b16 %v6036, %v6035
        %v6051 = vpack.c.b16 %v6038, %v6037
        %v6052 = vpack.c.b16 %v6040, %v6039
        %v6053 = vpack.c.b16 %v6042, %v6041
        %v6054 = vpack.c.b16 %v6044, %v6043
        %v6055 = vpack.c.b16 %v6046, %v6045
        %v6056 = vpack.c.b16 %v6048, %v6047
        %6065 = vmatprep.subr.bf16.mxu0 0
        %6066 = vmatpush1.bf16.msra.mxu0 %v6049
        %6067 = vmatprep.subr.bf16.mxu0 0
        %6068 = vmatpush1.bf16.msra.mxu0 %v6050
        %6069 = vmatprep.subr.bf16.mxu0 0
        %6070 = vmatpush1.bf16.msra.mxu0 %v6051
        %6071 = vmatprep.subr.bf16.mxu0 0
        %6072 = vmatpush1.bf16.msra.mxu0 %v6052
        %6073 = vmatprep.subr.bf16.mxu0 0
        %6074 = vmatpush1.bf16.msra.mxu0 %v6053
        %6075 = vmatprep.subr.bf16.mxu0 0
        %6076 = vmatpush1.bf16.msra.mxu0 %v6054
        %6077 = vmatprep.subr.bf16.mxu0 0
        %6078 = vmatpush1.bf16.msra.mxu0 %v6055
        %6079 = vmatprep.subr.bf16.mxu0 0
        %6080 = vmatpush1.bf16.msra.mxu0 %v6056
        %6081 = vmatprep.subr.bf16.mxu0 0
        %6082 = vmatpush1.bf16.msra.mxu0 0
        %6083 = vmatprep.subr.bf16.mxu0 0
        %6084 = vmatpush1.bf16.msra.mxu0 0
        %6085 = vmatprep.subr.bf16.mxu0 0
        %6086 = vmatpush1.bf16.msra.mxu0 0
        %6087 = vmatprep.subr.bf16.mxu0 0
        %6088 = vmatpush1.bf16.msra.mxu0 0
        %6089 = vmatprep.subr.bf16.mxu0 0
        %6090 = vmatpush1.bf16.msra.mxu0 0
        %6091 = vmatprep.subr.bf16.mxu0 0
        %6092 = vmatpush1.bf16.msra.mxu0 0
        %6093 = vmatprep.subr.bf16.mxu0 0
        %6094 = vmatpush1.bf16.msra.mxu0 0
        %6095 = vmatprep.subr.bf16.mxu0 0
        %6096 = vmatpush1.bf16.msra.mxu0 0
        %6097 = vmatprep.mubr.bf16.mxu0 0
        %6098 = vmatmul.mubr.bf16.gmra.mrb[0].mxu0 %v6015
        %v6099 = vpop.f32.mrb[0].mxu0
        %v6100 = vadd.f32 0.0, %v6099
        %v6101 = vpop.f32.mrb[0].mxu0
        %v6102 = vpop.f32.mrb[0].mxu0
        %v6103 = vpop.f32.mrb[0].mxu0
        %6104 = vdwg.mxu0
        %v6105 = vadd.f32 %v5996, %v6100
        %6106 = vst [vmem:[%s1336 + $0x10] sm:$0xff] %v5880
        %v6107 = vld [vmem:[%s4 + $0x80] sm:$0xf]
        %v6108 = vld [vmem:[%s4 + $0x84] sm:$0xf]
        %v6109 = vld [vmem:[%s4 + $0x88] sm:$0xf]
        %v6110 = vld [vmem:[%s4 + $0x8c] sm:$0xf]
        %v6111 = vld [vmem:[%s4 + $0x90] sm:$0xf]
        %v6112 = vld [vmem:[%s4 + $0x94] sm:$0xf]
        %v6113 = vld [vmem:[%s4 + $0x98] sm:$0xf]
        %v6114 = vld [vmem:[%s4 + $0x9c] sm:$0xf]
        %v6115 = vld [vmem:[%s4 + $0xa0] sm:$0xf]
        %v6116 = vld [vmem:[%s4 + $0xa4] sm:$0xf]
        %v6117 = vld [vmem:[%s4 + $0xa8] sm:$0xf]
        %v6118 = vld [vmem:[%s4 + $0xac] sm:$0xf]
        %v6119 = vld [vmem:[%s4 + $0xb0] sm:$0xf]
        %v6120 = vld [vmem:[%s4 + $0xb4] sm:$0xf]
        %v6121 = vld [vmem:[%s4 + $0xb8] sm:$0xf]
        %v6122 = vld [vmem:[%s4 + $0xbc] sm:$0xf]
        %v6139 = vunpack.c.l.b16 %v6107
        %v6140 = vunpack.c.l.b16 %v6108
        %v6141 = vunpack.c.l.b16 %v6109
        %v6142 = vunpack.c.l.b16 %v6110
        %v6143 = vunpack.c.l.b16 %v6111
        %v6144 = vunpack.c.l.b16 %v6112
        %v6145 = vunpack.c.l.b16 %v6113
        %v6146 = vunpack.c.l.b16 %v6114
        %v6147 = vunpack.c.l.b16 %v6115
        %v6148 = vunpack.c.l.b16 %v6116
        %v6149 = vunpack.c.l.b16 %v6117
        %v6150 = vunpack.c.l.b16 %v6118
        %v6151 = vunpack.c.l.b16 %v6119
        %v6152 = vunpack.c.l.b16 %v6120
        %v6153 = vunpack.c.l.b16 %v6121
        %v6154 = vunpack.c.l.b16 %v6122
        %v6155 = vpack.c.b16 %v6140, %v6139
        %v6156 = vpack.c.b16 %v6142, %v6141
        %v6157 = vpack.c.b16 %v6144, %v6143
        %v6158 = vpack.c.b16 %v6146, %v6145
        %v6159 = vpack.c.b16 %v6148, %v6147
        %v6160 = vpack.c.b16 %v6150, %v6149
        %v6161 = vpack.c.b16 %v6152, %v6151
        %v6162 = vpack.c.b16 %v6154, %v6153
        %6171 = vmatprep.subr.bf16.mxu0 0
        %6172 = vmatpush1.bf16.msra.mxu0 %v6155
        %6173 = vmatprep.subr.bf16.mxu0 0
        %6174 = vmatpush1.bf16.msra.mxu0 %v6156
        %6175 = vmatprep.subr.bf16.mxu0 0
        %6176 = vmatpush1.bf16.msra.mxu0 %v6157
        %6177 = vmatprep.subr.bf16.mxu0 0
        %6178 = vmatpush1.bf16.msra.mxu0 %v6158
        %6179 = vmatprep.subr.bf16.mxu0 0
        %6180 = vmatpush1.bf16.msra.mxu0 %v6159
        %6181 = vmatprep.subr.bf16.mxu0 0
        %6182 = vmatpush1.bf16.msra.mxu0 %v6160
        %6183 = vmatprep.subr.bf16.mxu0 0
        %6184 = vmatpush1.bf16.msra.mxu0 %v6161
        %6185 = vmatprep.subr.bf16.mxu0 0
        %6186 = vmatpush1.bf16.msra.mxu0 %v6162
        %6187 = vmatprep.subr.bf16.mxu0 0
        %6188 = vmatpush1.bf16.msra.mxu0 0
        %6189 = vmatprep.subr.bf16.mxu0 0
        %6190 = vmatpush1.bf16.msra.mxu0 0
        %6191 = vmatprep.subr.bf16.mxu0 0
        %6192 = vmatpush1.bf16.msra.mxu0 0
        %6193 = vmatprep.subr.bf16.mxu0 0
        %6194 = vmatpush1.bf16.msra.mxu0 0
        %6195 = vmatprep.subr.bf16.mxu0 0
        %6196 = vmatpush1.bf16.msra.mxu0 0
        %6197 = vmatprep.subr.bf16.mxu0 0
        %6198 = vmatpush1.bf16.msra.mxu0 0
        %6199 = vmatprep.subr.bf16.mxu0 0
        %6200 = vmatpush1.bf16.msra.mxu0 0
        %6201 = vmatprep.subr.bf16.mxu0 0
        %6202 = vmatpush1.bf16.msra.mxu0 0
        %6203 = vmatprep.mubr.bf16.mxu0 0
        %6204 = vmatmul.mubr.bf16.gmra.mrb[0].mxu0 %v5883
        %v6205 = vpop.f32.mrb[0].mxu0
        %v6206 = vadd.f32 0.0, %v6205
        %v6207 = vpop.f32.mrb[0].mxu0
        %v6208 = vpop.f32.mrb[0].mxu0
        %v6209 = vpop.f32.mrb[0].mxu0
        %6210 = vdwg.mxu0
        %v6211 = vadd.f32 %v6105, %v6206
        %6212 = vst [vmem:[%s1336 + $0x18] sm:$0xff] %v5881
        %v6213 = vld [vmem:[%s4 + $0xc0] sm:$0xf]
        %v6214 = vld [vmem:[%s4 + $0xc4] sm:$0xf]
        %v6215 = vld [vmem:[%s4 + $0xc8] sm:$0xf]
        %v6216 = vld [vmem:[%s4 + $0xcc] sm:$0xf]
        %v6217 = vld [vmem:[%s4 + $0xd0] sm:$0xf]
        %v6218 = vld [vmem:[%s4 + $0xd4] sm:$0xf]
        %v6219 = vld [vmem:[%s4 + $0xd8] sm:$0xf]
        %v6220 = vld [vmem:[%s4 + $0xdc] sm:$0xf]
        %v6221 = vld [vmem:[%s4 + $0xe0] sm:$0xf]
        %v6222 = vld [vmem:[%s4 + $0xe4] sm:$0xf]
        %v6223 = vld [vmem:[%s4 + $0xe8] sm:$0xf]
        %v6224 = vld [vmem:[%s4 + $0xec] sm:$0xf]
        %v6225 = vld [vmem:[%s4 + $0xf0] sm:$0xf]
        %v6226 = vld [vmem:[%s4 + $0xf4] sm:$0xf]
        %v6227 = vld [vmem:[%s4 + $0xf8] sm:$0xf]
        %v6228 = vld [vmem:[%s4 + $0xfc] sm:$0xf]
        %v6230 = vrot.slane %v5883, 4
        %v6248 = vunpack.c.l.b16 %v6213
        %v6249 = vunpack.c.l.b16 %v6214
        %v6250 = vunpack.c.l.b16 %v6215
        %v6251 = vunpack.c.l.b16 %v6216
        %v6252 = vunpack.c.l.b16 %v6217
        %v6253 = vunpack.c.l.b16 %v6218
        %v6254 = vunpack.c.l.b16 %v6219
        %v6255 = vunpack.c.l.b16 %v6220
        %v6256 = vunpack.c.l.b16 %v6221
        %v6257 = vunpack.c.l.b16 %v6222
        %v6258 = vunpack.c.l.b16 %v6223
        %v6259 = vunpack.c.l.b16 %v6224
        %v6260 = vunpack.c.l.b16 %v6225
        %v6261 = vunpack.c.l.b16 %v6226
        %v6262 = vunpack.c.l.b16 %v6227
        %v6263 = vunpack.c.l.b16 %v6228
        %v6264 = vpack.c.b16 %v6249, %v6248
        %v6265 = vpack.c.b16 %v6251, %v6250
        %v6266 = vpack.c.b16 %v6253, %v6252
        %v6267 = vpack.c.b16 %v6255, %v6254
        %v6268 = vpack.c.b16 %v6257, %v6256
        %v6269 = vpack.c.b16 %v6259, %v6258
        %v6270 = vpack.c.b16 %v6261, %v6260
        %v6271 = vpack.c.b16 %v6263, %v6262
        %6280 = vmatprep.subr.bf16.mxu0 0
        %6281 = vmatpush1.bf16.msra.mxu0 %v6264
        %6282 = vmatprep.subr.bf16.mxu0 0
        %6283 = vmatpush1.bf16.msra.mxu0 %v6265
        %6284 = vmatprep.subr.bf16.mxu0 0
        %6285 = vmatpush1.bf16.msra.mxu0 %v6266
        %6286 = vmatprep.subr.bf16.mxu0 0
        %6287 = vmatpush1.bf16.msra.mxu0 %v6267
        %6288 = vmatprep.subr.bf16.mxu0 0
        %6289 = vmatpush1.bf16.msra.mxu0 %v6268
        %6290 = vmatprep.subr.bf16.mxu0 0
        %6291 = vmatpush1.bf16.msra.mxu0 %v6269
        %6292 = vmatprep.subr.bf16.mxu0 0
        %6293 = vmatpush1.bf16.msra.mxu0 %v6270
        %6294 = vmatprep.subr.bf16.mxu0 0
        %6295 = vmatpush1.bf16.msra.mxu0 %v6271
        %6296 = vmatprep.subr.bf16.mxu0 0
        %6297 = vmatpush1.bf16.msra.mxu0 0
        %6298 = vmatprep.subr.bf16.mxu0 0
        %6299 = vmatpush1.bf16.msra.mxu0 0
        %6300 = vmatprep.subr.bf16.mxu0 0
        %6301 = vmatpush1.bf16.msra.mxu0 0
        %6302 = vmatprep.subr.bf16.mxu0 0
        %6303 = vmatpush1.bf16.msra.mxu0 0
        %6304 = vmatprep.subr.bf16.mxu0 0
        %6305 = vmatpush1.bf16.msra.mxu0 0
        %6306 = vmatprep.subr.bf16.mxu0 0
        %6307 = vmatpush1.bf16.msra.mxu0 0
        %6308 = vmatprep.subr.bf16.mxu0 0
        %6309 = vmatpush1.bf16.msra.mxu0 0
        %6310 = vmatprep.subr.bf16.mxu0 0
        %6311 = vmatpush1.bf16.msra.mxu0 0
        %6312 = vmatprep.mubr.bf16.mxu0 0
        %6313 = vmatmul.mubr.bf16.gmra.mrb[0].mxu0 %v6230
        %v6314 = vpop.f32.mrb[0].mxu0
        %v6315 = vadd.f32 0.0, %v6314
        %v6316 = vpop.f32.mrb[0].mxu0
        %v6317 = vpop.f32.mrb[0].mxu0
        %v6318 = vpop.f32.mrb[0].mxu0
        %6319 = vdwg.mxu0
        %v6320 = vadd.f32 %v6211, %v6315
        %6321 = vst [vmem:[%s1343] sm:$0xff] %v6320
        %s6322 = sand.u32 %s164, 1
        %s6323 = scalar_lea.sflag [#allocation4], %s6322
        %s6324 = sand.u32 %s164, 1
        %s6325 = smul.addr %s6324, 32
        %s6326 = scalar_lea.vmem [#allocation3], %s6325
        %s6327 = sand.u32 %s190, 1
        %s6328 = scalar_lea.sflag [#allocation6], %s6327
        %s6329 = sand.u32 %s190, 1
        %s6330 = smul.addr %s6329, 8
        %s6331 = scalar_lea.vmem [#allocation5], %s6330
        // Predicated region
        $region83: #{network_cuong_forward.1} parent=77 // pred_check
          %p6332 = pneg %p174
        $region84: #{network_cuong_forward.1} parent=77 // pred_check_branch
          %6334 = sbr.rel (%p6332) target = $region86
        $region85: #{network_cuong_forward.1} parent=77 // pred_region
          %s6336 = ssub.s32 512, 512
          %6337 = vsyncadd %s6323, %s6336
          %s6338 = smul.addr %s25, 4
          %s6339 = smul.addr %s6338, 128
          %s6340 = scalar_lea.hbm %s6, %s6339
          %s6342 = sshll.u32 %s6326, 4
          %s6343 = int_to_ptr.vmem [resolvable:$true] %s6342
          %6345 = dma.vmem_to_hbm [thread:$0]  %s6343, 512, %s6340, %s6323
        $region86: #{network_cuong_forward.1} parent=77 // pred_fallthru
          _
        // Predicated region
        $region87: #{network_cuong_forward.1} parent=77 // pred_check
          %p6346 = pneg %p200
        $region88: #{network_cuong_forward.1} parent=77 // pred_check_branch
          %6348 = sbr.rel (%p6346) target = $region90
        $region89: #{network_cuong_forward.1} parent=77 // pred_region
          %s6350 = ssub.s32 128, 128
          %6351 = vsyncadd %s6328, %s6350
          %s6352 = smul.addr %s25, 128
          %s6353 = scalar_lea.hbm %s7, %s6352
          %s6355 = sshll.u32 %s6331, 4
          %s6356 = int_to_ptr.vmem [resolvable:$true] %s6355
          %6358 = dma.vmem_to_hbm [thread:$0]  %s6356, 128, %s6353, %s6328
        $region90: #{network_cuong_forward.1} parent=77 // pred_fallthru
          _
      $region78: #{network_cuong_forward.1} parent=5 // pred_fallthru
        _
      %p6359 = scmp.le.s32.totalorder 2, %s20
      // Predicated region
      $region91: #{network_cuong_forward.1} parent=5 // pred_check
        %p6360 = pneg %p6359
      $region92: #{network_cuong_forward.1} parent=5 // pred_check_branch
        %6362 = sbr.rel (%p6360) target = $region94
      $region93: #{network_cuong_forward.1} parent=5 // pred_region
        %s6363 = ssub.s32 %s20, 2
        // Predicated region
        $region95: #{network_cuong_forward.1} parent=93 // pred_check
          %p6364 = pneg %p180
        $region96: #{network_cuong_forward.1} parent=93 // pred_check_branch
          %6366 = sbr.rel (%p6364) target = $region98
        $region97: #{network_cuong_forward.1} parent=93 // pred_region
          %s6367 = sand.u32 %s165, 1
          %s6368 = scalar_lea.sflag [#allocation4], %s6367
          %s6369 = sand.u32 %s165, 1
          %s6370 = smul.addr %s6369, 32
          %s6371 = scalar_lea.vmem [#allocation3], %s6370
          %6372 = dma.done %s6368, 512
        $region98: #{network_cuong_forward.1} parent=93 // pred_fallthru
          _
        // Predicated region
        $region99: #{network_cuong_forward.1} parent=93 // pred_check
          %p6373 = pneg %p206
        $region100: #{network_cuong_forward.1} parent=93 // pred_check_branch
          %6375 = sbr.rel (%p6373) target = $region102
        $region101: #{network_cuong_forward.1} parent=93 // pred_region
          %s6376 = sand.u32 %s191, 1
          %s6377 = scalar_lea.sflag [#allocation6], %s6376
          %s6378 = sand.u32 %s191, 1
          %s6379 = smul.addr %s6378, 8
          %s6380 = scalar_lea.vmem [#allocation5], %s6379
          %6381 = dma.done %s6377, 128
        $region102: #{network_cuong_forward.1} parent=93 // pred_fallthru
          _
      $region94: #{network_cuong_forward.1} parent=5 // pred_fallthru
        _
    $region6: #{network_cuong_forward.1} parent=1 // loop_footer
      %s24 = sadd.s32 1, %s20
    $region7: #{network_cuong_forward.1} parent=1 // loop_footer_branch
      %19 = sbr.rel target = $region3
    $region8: #{network_cuong_forward.1} parent=1 // loop_exit
      _
    %6382 = vsyncpa [#allocation4], 1
    %s6383 = scalar_lea.sflag [#allocation4], 1
    %6384 = vsyncpa %s6383, 1
    %6385 = vsyncpa [#allocation6], 1
    %s6386 = scalar_lea.sflag [#allocation6], 1
    %6387 = vsyncpa %s6386, 1

</llo_original>
